<compile_context>
chip_gen: v6e
topology: v6e:2x2x1
jax: 0.10.0
libtpu: 0.0.40
codegen_flags: <defaults>
</compile_context>

<pallas_src>
import jax
import jax.numpy as jnp
from jax.experimental import pallas as pl
from jax.experimental.pallas import tpu as pltpu


def _fused_encoder_kernel(x_ref,
                          m1_ref, c1_ref, b1_ref,
                          m2_ref, c2_ref, b2_ref,
                          m3_ref, c3_ref, b3_ref,
                          m4_ref, c4_ref, b4_ref,
                          o_ref):
    # x_ref: (Cin0*H0, N*W0) activation; per layer:
    #   m_ref: (3, Cout*Ho, Cin*H) weight/row-selection operators (one per kw)
    #   c_ref: (3, N*W, N*Wo)      0/1 column selectors (one per kw)
    #   b_ref: (Cout*Ho, 1)        bias column
    a = x_ref[...]
    layers = ((m1_ref, c1_ref, b1_ref),
              (m2_ref, c2_ref, b2_ref),
              (m3_ref, c3_ref, b3_ref),
              (m4_ref, c4_ref, b4_ref))
    for m_ref, c_ref, b_ref in layers:
        acc = None
        for kw in range(3):  # unrolled at trace time
            t = jnp.dot(a, c_ref[kw], preferred_element_type=jnp.float32)
            p = jnp.dot(m_ref[kw], t, preferred_element_type=jnp.float32)
            acc = p if acc is None else acc + p
        a = jnp.maximum(acc + b_ref[...], 0.0)  # bias (broadcast over cols) + ReLU
    o_ref[...] = a.astype(o_ref.dtype)


def _conv_out_size(d):
    # Conv2d(k=3, stride=2, pad=1) output size.
    return (d + 2 - 3) // 2 + 1


def init_encoder_params(key):
    """Deterministic params matching the PyTorch module's layer shapes."""
    chans = [(3, 8), (8, 16), (16, 32), (32, 64)]
    params = []
    for (cin, cout) in chans:
        key, kw_key, kb_key = jax.random.split(key, 3)
        fan_in = cin * 3 * 3
        bound = 1.0 / jnp.sqrt(fan_in)  # PyTorch default conv init range
        w = jax.random.uniform(kw_key, (cout, cin, 3, 3), jnp.float32, -bound, bound)
        b = jax.random.uniform(kb_key, (cout,), jnp.float32, -bound, bound)
        params.append((w, b))
    return params


def pack_encoder_params(params, batch, height, width):
    """Pre-pack PyTorch-layout conv weights into per-layer (M, C, bias_col)
    matmul operators.  Done ONCE, outside the forward hot path."""
    packed = []
    H, W = height, width
    N = batch
    for (w, b) in params:
        cout, cin = int(w.shape[0]), int(w.shape[1])
        Ho, Wo = _conv_out_size(H), _conv_out_size(W)

        # M_kw[(co*Ho + i), (ci*H + r)] = w[co, ci, kh, kw] with
        # kh = r - 2i + 1 (stride 2, pad 1); zero when kh is outside [0, 2].
        i_idx = jnp.arange(Ho)
        r_idx = jnp.arange(H)
        kh = r_idx[None, :] - 2 * i_idx[:, None] + 1            # (Ho, H)
        valid = ((kh >= 0) & (kh <= 2)).astype(jnp.float32)     # (Ho, H)
        kh_c = jnp.clip(kh, 0, 2)

        c_idx = jnp.arange(W)
        j_idx = jnp.arange(Wo)

        Ms, Cs = [], []
        for kw in range(3):
            w_kw = w[:, :, :, kw]                               # (Cout, Cin, 3)
            m = w_kw[:, :, kh_c] * valid[None, None, :, :]      # (Cout, Cin, Ho, H)
            m = jnp.transpose(m, (0, 2, 1, 3)).reshape(cout * Ho, cin * H)
            Ms.append(m)
            # C_kw[(n*W + c), (n*Wo + j)] = 1 iff c == 2j + kw - 1 (in range).
            colmatch = (c_idx[:, None] == (2 * j_idx[None, :] + kw - 1))
            colmatch = colmatch.astype(jnp.float32)             # (W, Wo)
            Cs.append(jnp.kron(jnp.eye(N, dtype=jnp.float32), colmatch))

        M = jnp.stack(Ms)                      # (3, Cout*Ho, Cin*H)
        C = jnp.stack(Cs)                      # (3, N*W, N*Wo)
        bcol = jnp.repeat(b, Ho).reshape(cout * Ho, 1)
        packed.append((M, C, bcol))
        H, W = Ho, Wo
    return packed


def encoder_forward(x_nchw, packed):
    """Forward pass of Encoder. Input NCHW (PyTorch convention), output NCHW."""
    N, Cin, H, W = x_nchw.shape
    Ho, Wo = H, W
    for _ in range(len(packed)):
        Ho, Wo = _conv_out_size(Ho), _conv_out_size(Wo)

    # NCHW -> channel-major matrix A[(cin*H + r), (n*W + c)]  (single small op)
    a0 = jnp.transpose(x_nchw, (1, 2, 0, 3)).reshape(Cin * H, N * W)

    flat_inputs = [a0]
    for (M, C, bcol) in packed:
        flat_inputs.extend((M, C, bcol))

    coho_last = packed[-1][0].shape[1]     # Cout_last * Ho
    nwo_last = packed[-1][1].shape[2]      # N * Wo
    cout_last = coho_last // Ho

    vmem = pl.BlockSpec(memory_space=pltpu.MemorySpace.VMEM)
    out_mat = pl.pallas_call(
        _fused_encoder_kernel,
        out_shape=jax.ShapeDtypeStruct((coho_last, nwo_last), jnp.float32),
        in_specs=[vmem] * len(flat_inputs),
        out_specs=vmem,
    )(*flat_inputs)

    # (Cout*Ho, N*Wo) -> NCHW
    out = out_mat.reshape(cout_last, Ho, N, Wo).transpose(2, 0, 1, 3)
    return out


if __name__ == "__main__":
    key = jax.random.PRNGKey(0)
    key, kx = jax.random.split(key)

    # Small input consistent with the module: batch=2, 3 channels, 32x32.
    N, H, W = 2, 32, 32
    x = jax.random.uniform(kx, (N, 3, H, W), jnp.float32)
    params = init_encoder_params(key)

    # Weight packing hoisted out of the forward path (done once).
    packed = pack_encoder_params(params, N, H, W)

    fwd = jax.jit(encoder_forward)
    out = jax.block_until_ready(fwd(x, packed))

    # Reference: plain XLA convs with PyTorch semantics.
    def ref_forward(xr, ps):
        y = xr
        for (w, b) in ps:
            y = jax.lax.conv_general_dilated(
                y, w, window_strides=(2, 2), padding=((1, 1), (1, 1)),
                dimension_numbers=("NCHW", "OIHW", "NCHW"),
                precision=jax.lax.Precision.HIGHEST)
            y = jnp.maximum(y + b.reshape(1, -1, 1, 1), 0.0)
        return y

    ref = jax.block_until_ready(ref_forward(x, params))

    assert out.shape == (2, 64, 2, 2), out.shape
    assert out.dtype == jnp.float32
    assert bool(jnp.all(out >= 0.0))  # ReLU output
    assert bool(jnp.allclose(out, ref, atol=2e-2, rtol=2e-2)), float(
        jnp.max(jnp.abs(out - ref)))
    print("KERNEL_OK")
</pallas_src>

<mosaic_0001>
module attributes {stable_mosaic.version = 11 : i64} {
  func.func @_fused_encoder_kernel(%arg0: memref<96x64xf32, #tpu.memory_space<vmem>>, %arg1: memref<3x128x96xf32, #tpu.memory_space<vmem>>, %arg2: memref<3x64x32xf32, #tpu.memory_space<vmem>>, %arg3: memref<128x1xf32, #tpu.memory_space<vmem>>, %arg4: memref<3x128x128xf32, #tpu.memory_space<vmem>>, %arg5: memref<3x32x16xf32, #tpu.memory_space<vmem>>, %arg6: memref<128x1xf32, #tpu.memory_space<vmem>>, %arg7: memref<3x128x128xf32, #tpu.memory_space<vmem>>, %arg8: memref<3x16x8xf32, #tpu.memory_space<vmem>>, %arg9: memref<128x1xf32, #tpu.memory_space<vmem>>, %arg10: memref<3x128x128xf32, #tpu.memory_space<vmem>>, %arg11: memref<3x8x4xf32, #tpu.memory_space<vmem>>, %arg12: memref<128x1xf32, #tpu.memory_space<vmem>>, %arg13: memref<128x4xf32, #tpu.memory_space<vmem>>) attributes {dimension_semantics = [], scalar_prefetch = 0 : i64, scratch_operands = 0 : i64, tpu.core_type = #tpu.core_type<tc>} {
    %c0 = arith.constant 0 : index
    %c0_0 = arith.constant 0 : index
    %0 = vector.load %arg0[%c0, %c0_0] : memref<96x64xf32, #tpu.memory_space<vmem>>, vector<96x64xf32>
    %c0_1 = arith.constant 0 : index
    %c0_2 = arith.constant 0 : index
    %c0_3 = arith.constant 0 : index
    %1 = vector.load %arg2[%c0_1, %c0_2, %c0_3] : memref<3x64x32xf32, #tpu.memory_space<vmem>>, vector<1x64x32xf32>
    %2 = vector.shape_cast %1 : vector<1x64x32xf32> to vector<64x32xf32>
    %cst = arith.constant dense<0.000000e+00> : vector<96x32xf32>
    %3 = tpu.matmul %0, %2, %cst {dimension_numbers = #tpu.dot_dimension_numbers<[1], [0], [0], [1], [0, 0, 1, 1], [], []>} : vector<96x64xf32>, vector<64x32xf32>, vector<96x32xf32> -> vector<96x32xf32>
    %c0_4 = arith.constant 0 : index
    %c0_5 = arith.constant 0 : index
    %c0_6 = arith.constant 0 : index
    %4 = vector.load %arg1[%c0_4, %c0_5, %c0_6] : memref<3x128x96xf32, #tpu.memory_space<vmem>>, vector<1x128x96xf32>
    %5 = vector.shape_cast %4 : vector<1x128x96xf32> to vector<128x96xf32>
    %cst_7 = arith.constant dense<0.000000e+00> : vector<128x32xf32>
    %6 = tpu.matmul %5, %3, %cst_7 {dimension_numbers = #tpu.dot_dimension_numbers<[1], [0], [0], [1], [0, 0, 1, 1], [], []>} : vector<128x96xf32>, vector<96x32xf32>, vector<128x32xf32> -> vector<128x32xf32>
    %c1 = arith.constant 1 : index
    %c0_8 = arith.constant 0 : index
    %c0_9 = arith.constant 0 : index
    %7 = vector.load %arg2[%c1, %c0_8, %c0_9] : memref<3x64x32xf32, #tpu.memory_space<vmem>>, vector<1x64x32xf32>
    %8 = vector.shape_cast %7 : vector<1x64x32xf32> to vector<64x32xf32>
    %cst_10 = arith.constant dense<0.000000e+00> : vector<96x32xf32>
    %9 = tpu.matmul %0, %8, %cst_10 {dimension_numbers = #tpu.dot_dimension_numbers<[1], [0], [0], [1], [0, 0, 1, 1], [], []>} : vector<96x64xf32>, vector<64x32xf32>, vector<96x32xf32> -> vector<96x32xf32>
    %c1_11 = arith.constant 1 : index
    %c0_12 = arith.constant 0 : index
    %c0_13 = arith.constant 0 : index
    %10 = vector.load %arg1[%c1_11, %c0_12, %c0_13] : memref<3x128x96xf32, #tpu.memory_space<vmem>>, vector<1x128x96xf32>
    %11 = vector.shape_cast %10 : vector<1x128x96xf32> to vector<128x96xf32>
    %cst_14 = arith.constant dense<0.000000e+00> : vector<128x32xf32>
    %12 = tpu.matmul %11, %9, %cst_14 {dimension_numbers = #tpu.dot_dimension_numbers<[1], [0], [0], [1], [0, 0, 1, 1], [], []>} : vector<128x96xf32>, vector<96x32xf32>, vector<128x32xf32> -> vector<128x32xf32>
    %13 = arith.addf %6, %12 : vector<128x32xf32>
    %c2 = arith.constant 2 : index
    %c0_15 = arith.constant 0 : index
    %c0_16 = arith.constant 0 : index
    %14 = vector.load %arg2[%c2, %c0_15, %c0_16] : memref<3x64x32xf32, #tpu.memory_space<vmem>>, vector<1x64x32xf32>
    %15 = vector.shape_cast %14 : vector<1x64x32xf32> to vector<64x32xf32>
    %cst_17 = arith.constant dense<0.000000e+00> : vector<96x32xf32>
    %16 = tpu.matmul %0, %15, %cst_17 {dimension_numbers = #tpu.dot_dimension_numbers<[1], [0], [0], [1], [0, 0, 1, 1], [], []>} : vector<96x64xf32>, vector<64x32xf32>, vector<96x32xf32> -> vector<96x32xf32>
    %c2_18 = arith.constant 2 : index
    %c0_19 = arith.constant 0 : index
    %c0_20 = arith.constant 0 : index
    %17 = vector.load %arg1[%c2_18, %c0_19, %c0_20] : memref<3x128x96xf32, #tpu.memory_space<vmem>>, vector<1x128x96xf32>
    %18 = vector.shape_cast %17 : vector<1x128x96xf32> to vector<128x96xf32>
    %cst_21 = arith.constant dense<0.000000e+00> : vector<128x32xf32>
    %19 = tpu.matmul %18, %16, %cst_21 {dimension_numbers = #tpu.dot_dimension_numbers<[1], [0], [0], [1], [0, 0, 1, 1], [], []>} : vector<128x96xf32>, vector<96x32xf32>, vector<128x32xf32> -> vector<128x32xf32>
    %20 = arith.addf %13, %19 : vector<128x32xf32>
    %c0_22 = arith.constant 0 : index
    %c0_23 = arith.constant 0 : index
    %21 = vector.load %arg3[%c0_22, %c0_23] : memref<128x1xf32, #tpu.memory_space<vmem>>, vector<128x1xf32>
    %22 = vector.broadcast %21 : vector<128x1xf32> to vector<128x32xf32>
    %23 = arith.addf %20, %22 : vector<128x32xf32>
    %cst_24 = arith.constant 0.000000e+00 : f32
    %24 = vector.broadcast %cst_24 : f32 to vector<128x32xf32>
    %25 = arith.maximumf %23, %24 : vector<128x32xf32>
    %c0_25 = arith.constant 0 : index
    %c0_26 = arith.constant 0 : index
    %c0_27 = arith.constant 0 : index
    %26 = vector.load %arg5[%c0_25, %c0_26, %c0_27] : memref<3x32x16xf32, #tpu.memory_space<vmem>>, vector<1x32x16xf32>
    %27 = vector.shape_cast %26 : vector<1x32x16xf32> to vector<32x16xf32>
    %cst_28 = arith.constant dense<0.000000e+00> : vector<128x16xf32>
    %28 = tpu.matmul %25, %27, %cst_28 {dimension_numbers = #tpu.dot_dimension_numbers<[1], [0], [0], [1], [0, 0, 1, 1], [], []>} : vector<128x32xf32>, vector<32x16xf32>, vector<128x16xf32> -> vector<128x16xf32>
    %c0_29 = arith.constant 0 : index
    %c0_30 = arith.constant 0 : index
    %c0_31 = arith.constant 0 : index
    %29 = vector.load %arg4[%c0_29, %c0_30, %c0_31] : memref<3x128x128xf32, #tpu.memory_space<vmem>>, vector<1x128x128xf32>
    %30 = vector.shape_cast %29 : vector<1x128x128xf32> to vector<128x128xf32>
    %cst_32 = arith.constant dense<0.000000e+00> : vector<128x16xf32>
    %31 = tpu.matmul %30, %28, %cst_32 {dimension_numbers = #tpu.dot_dimension_numbers<[1], [0], [0], [1], [0, 0, 1, 1], [], []>} : vector<128x128xf32>, vector<128x16xf32>, vector<128x16xf32> -> vector<128x16xf32>
    %c1_33 = arith.constant 1 : index
    %c0_34 = arith.constant 0 : index
    %c0_35 = arith.constant 0 : index
    %32 = vector.load %arg5[%c1_33, %c0_34, %c0_35] : memref<3x32x16xf32, #tpu.memory_space<vmem>>, vector<1x32x16xf32>
    %33 = vector.shape_cast %32 : vector<1x32x16xf32> to vector<32x16xf32>
    %cst_36 = arith.constant dense<0.000000e+00> : vector<128x16xf32>
    %34 = tpu.matmul %25, %33, %cst_36 {dimension_numbers = #tpu.dot_dimension_numbers<[1], [0], [0], [1], [0, 0, 1, 1], [], []>} : vector<128x32xf32>, vector<32x16xf32>, vector<128x16xf32> -> vector<128x16xf32>
    %c1_37 = arith.constant 1 : index
    %c0_38 = arith.constant 0 : index
    %c0_39 = arith.constant 0 : index
    %35 = vector.load %arg4[%c1_37, %c0_38, %c0_39] : memref<3x128x128xf32, #tpu.memory_space<vmem>>, vector<1x128x128xf32>
    %36 = vector.shape_cast %35 : vector<1x128x128xf32> to vector<128x128xf32>
    %cst_40 = arith.constant dense<0.000000e+00> : vector<128x16xf32>
    %37 = tpu.matmul %36, %34, %cst_40 {dimension_numbers = #tpu.dot_dimension_numbers<[1], [0], [0], [1], [0, 0, 1, 1], [], []>} : vector<128x128xf32>, vector<128x16xf32>, vector<128x16xf32> -> vector<128x16xf32>
    %38 = arith.addf %31, %37 : vector<128x16xf32>
    %c2_41 = arith.constant 2 : index
    %c0_42 = arith.constant 0 : index
    %c0_43 = arith.constant 0 : index
    %39 = vector.load %arg5[%c2_41, %c0_42, %c0_43] : memref<3x32x16xf32, #tpu.memory_space<vmem>>, vector<1x32x16xf32>
    %40 = vector.shape_cast %39 : vector<1x32x16xf32> to vector<32x16xf32>
    %cst_44 = arith.constant dense<0.000000e+00> : vector<128x16xf32>
    %41 = tpu.matmul %25, %40, %cst_44 {dimension_numbers = #tpu.dot_dimension_numbers<[1], [0], [0], [1], [0, 0, 1, 1], [], []>} : vector<128x32xf32>, vector<32x16xf32>, vector<128x16xf32> -> vector<128x16xf32>
    %c2_45 = arith.constant 2 : index
    %c0_46 = arith.constant 0 : index
    %c0_47 = arith.constant 0 : index
    %42 = vector.load %arg4[%c2_45, %c0_46, %c0_47] : memref<3x128x128xf32, #tpu.memory_space<vmem>>, vector<1x128x128xf32>
    %43 = vector.shape_cast %42 : vector<1x128x128xf32> to vector<128x128xf32>
    %cst_48 = arith.constant dense<0.000000e+00> : vector<128x16xf32>
    %44 = tpu.matmul %43, %41, %cst_48 {dimension_numbers = #tpu.dot_dimension_numbers<[1], [0], [0], [1], [0, 0, 1, 1], [], []>} : vector<128x128xf32>, vector<128x16xf32>, vector<128x16xf32> -> vector<128x16xf32>
    %45 = arith.addf %38, %44 : vector<128x16xf32>
    %c0_49 = arith.constant 0 : index
    %c0_50 = arith.constant 0 : index
    %46 = vector.load %arg6[%c0_49, %c0_50] : memref<128x1xf32, #tpu.memory_space<vmem>>, vector<128x1xf32>
    %47 = vector.broadcast %46 : vector<128x1xf32> to vector<128x16xf32>
    %48 = arith.addf %45, %47 : vector<128x16xf32>
    %cst_51 = arith.constant 0.000000e+00 : f32
    %49 = vector.broadcast %cst_51 : f32 to vector<128x16xf32>
    %50 = arith.maximumf %48, %49 : vector<128x16xf32>
    %c0_52 = arith.constant 0 : index
    %c0_53 = arith.constant 0 : index
    %c0_54 = arith.constant 0 : index
    %51 = vector.load %arg8[%c0_52, %c0_53, %c0_54] : memref<3x16x8xf32, #tpu.memory_space<vmem>>, vector<1x16x8xf32>
    %52 = vector.shape_cast %51 : vector<1x16x8xf32> to vector<16x8xf32>
    %cst_55 = arith.constant dense<0.000000e+00> : vector<128x8xf32>
    %53 = tpu.matmul %50, %52, %cst_55 {dimension_numbers = #tpu.dot_dimension_numbers<[1], [0], [0], [1], [0, 0, 1, 1], [], []>} : vector<128x16xf32>, vector<16x8xf32>, vector<128x8xf32> -> vector<128x8xf32>
    %c0_56 = arith.constant 0 : index
    %c0_57 = arith.constant 0 : index
    %c0_58 = arith.constant 0 : index
    %54 = vector.load %arg7[%c0_56, %c0_57, %c0_58] : memref<3x128x128xf32, #tpu.memory_space<vmem>>, vector<1x128x128xf32>
    %55 = vector.shape_cast %54 : vector<1x128x128xf32> to vector<128x128xf32>
    %cst_59 = arith.constant dense<0.000000e+00> : vector<128x8xf32>
    %56 = tpu.matmul %55, %53, %cst_59 {dimension_numbers = #tpu.dot_dimension_numbers<[1], [0], [0], [1], [0, 0, 1, 1], [], []>} : vector<128x128xf32>, vector<128x8xf32>, vector<128x8xf32> -> vector<128x8xf32>
    %c1_60 = arith.constant 1 : index
    %c0_61 = arith.constant 0 : index
    %c0_62 = arith.constant 0 : index
    %57 = vector.load %arg8[%c1_60, %c0_61, %c0_62] : memref<3x16x8xf32, #tpu.memory_space<vmem>>, vector<1x16x8xf32>
    %58 = vector.shape_cast %57 : vector<1x16x8xf32> to vector<16x8xf32>
    %cst_63 = arith.constant dense<0.000000e+00> : vector<128x8xf32>
    %59 = tpu.matmul %50, %58, %cst_63 {dimension_numbers = #tpu.dot_dimension_numbers<[1], [0], [0], [1], [0, 0, 1, 1], [], []>} : vector<128x16xf32>, vector<16x8xf32>, vector<128x8xf32> -> vector<128x8xf32>
    %c1_64 = arith.constant 1 : index
    %c0_65 = arith.constant 0 : index
    %c0_66 = arith.constant 0 : index
    %60 = vector.load %arg7[%c1_64, %c0_65, %c0_66] : memref<3x128x128xf32, #tpu.memory_space<vmem>>, vector<1x128x128xf32>
    %61 = vector.shape_cast %60 : vector<1x128x128xf32> to vector<128x128xf32>
    %cst_67 = arith.constant dense<0.000000e+00> : vector<128x8xf32>
    %62 = tpu.matmul %61, %59, %cst_67 {dimension_numbers = #tpu.dot_dimension_numbers<[1], [0], [0], [1], [0, 0, 1, 1], [], []>} : vector<128x128xf32>, vector<128x8xf32>, vector<128x8xf32> -> vector<128x8xf32>
    %63 = arith.addf %56, %62 : vector<128x8xf32>
    %c2_68 = arith.constant 2 : index
    %c0_69 = arith.constant 0 : index
    %c0_70 = arith.constant 0 : index
    %64 = vector.load %arg8[%c2_68, %c0_69, %c0_70] : memref<3x16x8xf32, #tpu.memory_space<vmem>>, vector<1x16x8xf32>
    %65 = vector.shape_cast %64 : vector<1x16x8xf32> to vector<16x8xf32>
    %cst_71 = arith.constant dense<0.000000e+00> : vector<128x8xf32>
    %66 = tpu.matmul %50, %65, %cst_71 {dimension_numbers = #tpu.dot_dimension_numbers<[1], [0], [0], [1], [0, 0, 1, 1], [], []>} : vector<128x16xf32>, vector<16x8xf32>, vector<128x8xf32> -> vector<128x8xf32>
    %c2_72 = arith.constant 2 : index
    %c0_73 = arith.constant 0 : index
    %c0_74 = arith.constant 0 : index
    %67 = vector.load %arg7[%c2_72, %c0_73, %c0_74] : memref<3x128x128xf32, #tpu.memory_space<vmem>>, vector<1x128x128xf32>
    %68 = vector.shape_cast %67 : vector<1x128x128xf32> to vector<128x128xf32>
    %cst_75 = arith.constant dense<0.000000e+00> : vector<128x8xf32>
    %69 = tpu.matmul %68, %66, %cst_75 {dimension_numbers = #tpu.dot_dimension_numbers<[1], [0], [0], [1], [0, 0, 1, 1], [], []>} : vector<128x128xf32>, vector<128x8xf32>, vector<128x8xf32> -> vector<128x8xf32>
    %70 = arith.addf %63, %69 : vector<128x8xf32>
    %c0_76 = arith.constant 0 : index
    %c0_77 = arith.constant 0 : index
    %71 = vector.load %arg9[%c0_76, %c0_77] : memref<128x1xf32, #tpu.memory_space<vmem>>, vector<128x1xf32>
    %72 = vector.broadcast %71 : vector<128x1xf32> to vector<128x8xf32>
    %73 = arith.addf %70, %72 : vector<128x8xf32>
    %cst_78 = arith.constant 0.000000e+00 : f32
    %74 = vector.broadcast %cst_78 : f32 to vector<128x8xf32>
    %75 = arith.maximumf %73, %74 : vector<128x8xf32>
    %c0_79 = arith.constant 0 : index
    %c0_80 = arith.constant 0 : index
    %c0_81 = arith.constant 0 : index
    %76 = vector.load %arg11[%c0_79, %c0_80, %c0_81] : memref<3x8x4xf32, #tpu.memory_space<vmem>>, vector<1x8x4xf32>
    %77 = vector.shape_cast %76 : vector<1x8x4xf32> to vector<8x4xf32>
    %cst_82 = arith.constant dense<0.000000e+00> : vector<128x4xf32>
    %78 = tpu.matmul %75, %77, %cst_82 {dimension_numbers = #tpu.dot_dimension_numbers<[1], [0], [0], [1], [0, 0, 1, 1], [], []>} : vector<128x8xf32>, vector<8x4xf32>, vector<128x4xf32> -> vector<128x4xf32>
    %c0_83 = arith.constant 0 : index
    %c0_84 = arith.constant 0 : index
    %c0_85 = arith.constant 0 : index
    %79 = vector.load %arg10[%c0_83, %c0_84, %c0_85] : memref<3x128x128xf32, #tpu.memory_space<vmem>>, vector<1x128x128xf32>
    %80 = vector.shape_cast %79 : vector<1x128x128xf32> to vector<128x128xf32>
    %cst_86 = arith.constant dense<0.000000e+00> : vector<128x4xf32>
    %81 = tpu.matmul %80, %78, %cst_86 {dimension_numbers = #tpu.dot_dimension_numbers<[1], [0], [0], [1], [0, 0, 1, 1], [], []>} : vector<128x128xf32>, vector<128x4xf32>, vector<128x4xf32> -> vector<128x4xf32>
    %c1_87 = arith.constant 1 : index
    %c0_88 = arith.constant 0 : index
    %c0_89 = arith.constant 0 : index
    %82 = vector.load %arg11[%c1_87, %c0_88, %c0_89] : memref<3x8x4xf32, #tpu.memory_space<vmem>>, vector<1x8x4xf32>
    %83 = vector.shape_cast %82 : vector<1x8x4xf32> to vector<8x4xf32>
    %cst_90 = arith.constant dense<0.000000e+00> : vector<128x4xf32>
    %84 = tpu.matmul %75, %83, %cst_90 {dimension_numbers = #tpu.dot_dimension_numbers<[1], [0], [0], [1], [0, 0, 1, 1], [], []>} : vector<128x8xf32>, vector<8x4xf32>, vector<128x4xf32> -> vector<128x4xf32>
    %c1_91 = arith.constant 1 : index
    %c0_92 = arith.constant 0 : index
    %c0_93 = arith.constant 0 : index
    %85 = vector.load %arg10[%c1_91, %c0_92, %c0_93] : memref<3x128x128xf32, #tpu.memory_space<vmem>>, vector<1x128x128xf32>
    %86 = vector.shape_cast %85 : vector<1x128x128xf32> to vector<128x128xf32>
    %cst_94 = arith.constant dense<0.000000e+00> : vector<128x4xf32>
    %87 = tpu.matmul %86, %84, %cst_94 {dimension_numbers = #tpu.dot_dimension_numbers<[1], [0], [0], [1], [0, 0, 1, 1], [], []>} : vector<128x128xf32>, vector<128x4xf32>, vector<128x4xf32> -> vector<128x4xf32>
    %88 = arith.addf %81, %87 : vector<128x4xf32>
    %c2_95 = arith.constant 2 : index
    %c0_96 = arith.constant 0 : index
    %c0_97 = arith.constant 0 : index
    %89 = vector.load %arg11[%c2_95, %c0_96, %c0_97] : memref<3x8x4xf32, #tpu.memory_space<vmem>>, vector<1x8x4xf32>
    %90 = vector.shape_cast %89 : vector<1x8x4xf32> to vector<8x4xf32>
    %cst_98 = arith.constant dense<0.000000e+00> : vector<128x4xf32>
    %91 = tpu.matmul %75, %90, %cst_98 {dimension_numbers = #tpu.dot_dimension_numbers<[1], [0], [0], [1], [0, 0, 1, 1], [], []>} : vector<128x8xf32>, vector<8x4xf32>, vector<128x4xf32> -> vector<128x4xf32>
    %c2_99 = arith.constant 2 : index
    %c0_100 = arith.constant 0 : index
    %c0_101 = arith.constant 0 : index
    %92 = vector.load %arg10[%c2_99, %c0_100, %c0_101] : memref<3x128x128xf32, #tpu.memory_space<vmem>>, vector<1x128x128xf32>
    %93 = vector.shape_cast %92 : vector<1x128x128xf32> to vector<128x128xf32>
    %cst_102 = arith.constant dense<0.000000e+00> : vector<128x4xf32>
    %94 = tpu.matmul %93, %91, %cst_102 {dimension_numbers = #tpu.dot_dimension_numbers<[1], [0], [0], [1], [0, 0, 1, 1], [], []>} : vector<128x128xf32>, vector<128x4xf32>, vector<128x4xf32> -> vector<128x4xf32>
    %95 = arith.addf %88, %94 : vector<128x4xf32>
    %c0_103 = arith.constant 0 : index
    %c0_104 = arith.constant 0 : index
    %96 = vector.load %arg12[%c0_103, %c0_104] : memref<128x1xf32, #tpu.memory_space<vmem>>, vector<128x1xf32>
    %97 = vector.broadcast %96 : vector<128x1xf32> to vector<128x4xf32>
    %98 = arith.addf %95, %97 : vector<128x4xf32>
    %cst_105 = arith.constant 0.000000e+00 : f32
    %99 = vector.broadcast %cst_105 : f32 to vector<128x4xf32>
    %100 = arith.maximumf %98, %99 : vector<128x4xf32>
    %c0_106 = arith.constant 0 : index
    %c0_107 = arith.constant 0 : index
    %101 = vector.load %arg13[%c0_106, %c0_107] : memref<128x4xf32, #tpu.memory_space<vmem>>, vector<128x4xf32>
    tpu.vector_store %arg13[%c0_106, %c0_107], %100 {strides = array<i32>} : memref<128x4xf32, #tpu.memory_space<vmem>>, vector<128x4xf32>,
    return
  }
}

</mosaic_0001>

<llo_original>
// kernel: encoder_forward.1
$region0: #{encoder_forward.1}
  #allocation0 [shape = 'u32[]', space=smem, size = 0x4, offset = 0x4, fixed_abs, tag = 'smem constant byte address 0x4 - core index']
  #allocation1 [shape = 'u32[144,128]{1,0:T(1,128)}', space=vmem, size = 0x12000, scoped, tag = 'internal scratch']
  %s0 = inlined_call_operand.vmem [shape: f32[96,64], index: 0, kind: input, shape index: {}]
  %s1 = inlined_call_operand.vmem [shape: f32[3,128,96], index: 1, kind: input, shape index: {}]
  %s2 = inlined_call_operand.vmem [shape: f32[3,64,32], index: 2, kind: input, shape index: {}]
  %s3 = inlined_call_operand.vmem [shape: f32[128,1], index: 3, kind: input, shape index: {}]
  %s4 = inlined_call_operand.vmem [shape: f32[3,128,128], index: 4, kind: input, shape index: {}]
  %s5 = inlined_call_operand.vmem [shape: f32[3,32,16], index: 5, kind: input, shape index: {}]
  %s6 = inlined_call_operand.vmem [shape: f32[128,1], index: 6, kind: input, shape index: {}]
  %s7 = inlined_call_operand.vmem [shape: f32[3,128,128], index: 7, kind: input, shape index: {}]
  %s8 = inlined_call_operand.vmem [shape: f32[3,16,8], index: 8, kind: input, shape index: {}]
  %s9 = inlined_call_operand.vmem [shape: f32[128,1], index: 9, kind: input, shape index: {}]
  %s10 = inlined_call_operand.vmem [shape: f32[3,128,128], index: 10, kind: input, shape index: {}]
  %s11 = inlined_call_operand.vmem [shape: f32[3,8,4], index: 11, kind: input, shape index: {}]
  %s12 = inlined_call_operand.vmem [shape: f32[128,1], index: 12, kind: input, shape index: {}]
  %s13 = inlined_call_operand.vmem [shape: f32[128,4], index: 13, kind: output, shape index: {}]
  %s14 = sld [smem:[#allocation0]]
  $region62: #{encoder_forward.1} parent=0
    _
  %s16 = ssub.s32 1, %s14
  %s17 = scalar_select 0, %s16, %s14
  // Predicated region
  $region2: #{encoder_forward.1} parent=0 // pred_check
    _
  $region3: #{encoder_forward.1} parent=0 // pred_check_branch
    %19 = sbr.rel (0) target = $region5
  $region4: #{encoder_forward.1} parent=0 // pred_region
    _
  $region5: #{encoder_forward.1} parent=0 // pred_fallthru
    _
  // Predicated region
  $region6: #{encoder_forward.1} parent=0 // pred_check
    _
  $region7: #{encoder_forward.1} parent=0 // pred_check_branch
    %21 = sbr.rel (0) target = $region9
  $region8: #{encoder_forward.1} parent=0 // pred_region
    _
  $region9: #{encoder_forward.1} parent=0 // pred_fallthru
    _
  // Predicated region
  $region10: #{encoder_forward.1} parent=0 // pred_check
    _
  $region11: #{encoder_forward.1} parent=0 // pred_check_branch
    %23 = sbr.rel (0) target = $region13
  $region12: #{encoder_forward.1} parent=0 // pred_region
    _
  $region13: #{encoder_forward.1} parent=0 // pred_fallthru
    _
  // Predicated region
  $region14: #{encoder_forward.1} parent=0 // pred_check
    _
  $region15: #{encoder_forward.1} parent=0 // pred_check_branch
    %25 = sbr.rel (0) target = $region17
  $region16: #{encoder_forward.1} parent=0 // pred_region
    _
  $region17: #{encoder_forward.1} parent=0 // pred_fallthru
    _
  // Predicated region
  $region18: #{encoder_forward.1} parent=0 // pred_check
    _
  $region19: #{encoder_forward.1} parent=0 // pred_check_branch
    %27 = sbr.rel (0) target = $region21
  $region20: #{encoder_forward.1} parent=0 // pred_region
    _
  $region21: #{encoder_forward.1} parent=0 // pred_fallthru
    _
  // Predicated region
  $region22: #{encoder_forward.1} parent=0 // pred_check
    _
  $region23: #{encoder_forward.1} parent=0 // pred_check_branch
    %29 = sbr.rel (0) target = $region25
  $region24: #{encoder_forward.1} parent=0 // pred_region
    _
  $region25: #{encoder_forward.1} parent=0 // pred_fallthru
    _
  // Predicated region
  $region26: #{encoder_forward.1} parent=0 // pred_check
    _
  $region27: #{encoder_forward.1} parent=0 // pred_check_branch
    %31 = sbr.rel (0) target = $region29
  $region28: #{encoder_forward.1} parent=0 // pred_region
    _
  $region29: #{encoder_forward.1} parent=0 // pred_fallthru
    _
  // Predicated region
  $region30: #{encoder_forward.1} parent=0 // pred_check
    _
  $region31: #{encoder_forward.1} parent=0 // pred_check_branch
    %33 = sbr.rel (0) target = $region33
  $region32: #{encoder_forward.1} parent=0 // pred_region
    _
  $region33: #{encoder_forward.1} parent=0 // pred_fallthru
    _
  // Predicated region
  $region34: #{encoder_forward.1} parent=0 // pred_check
    _
  $region35: #{encoder_forward.1} parent=0 // pred_check_branch
    %35 = sbr.rel (0) target = $region37
  $region36: #{encoder_forward.1} parent=0 // pred_region
    _
  $region37: #{encoder_forward.1} parent=0 // pred_fallthru
    _
  // Predicated region
  $region38: #{encoder_forward.1} parent=0 // pred_check
    _
  $region39: #{encoder_forward.1} parent=0 // pred_check_branch
    %37 = sbr.rel (0) target = $region41
  $region40: #{encoder_forward.1} parent=0 // pred_region
    _
  $region41: #{encoder_forward.1} parent=0 // pred_fallthru
    _
  // Predicated region
  $region42: #{encoder_forward.1} parent=0 // pred_check
    _
  $region43: #{encoder_forward.1} parent=0 // pred_check_branch
    %39 = sbr.rel (0) target = $region45
  $region44: #{encoder_forward.1} parent=0 // pred_region
    _
  $region45: #{encoder_forward.1} parent=0 // pred_fallthru
    _
  // Predicated region
  $region46: #{encoder_forward.1} parent=0 // pred_check
    _
  $region47: #{encoder_forward.1} parent=0 // pred_check_branch
    %41 = sbr.rel (0) target = $region49
  $region48: #{encoder_forward.1} parent=0 // pred_region
    _
  $region49: #{encoder_forward.1} parent=0 // pred_fallthru
    _
  // Predicated region
  $region50: #{encoder_forward.1} parent=0 // pred_check
    _
  $region51: #{encoder_forward.1} parent=0 // pred_check_branch
    %43 = sbr.rel (0) target = $region53
  $region52: #{encoder_forward.1} parent=0 // pred_region
    _
  $region53: #{encoder_forward.1} parent=0 // pred_fallthru
    _
  %v44 = vld [vmem:[%s0] sm:$0xff]
  %v45 = vld [vmem:[%s0 + $0x8] sm:$0xff]
  %v46 = vld [vmem:[%s0 + $0x10] sm:$0xff]
  %v47 = vld [vmem:[%s0 + $0x18] sm:$0xff]
  %v48 = vld [vmem:[%s0 + $0x20] sm:$0xff]
  %v49 = vld [vmem:[%s0 + $0x28] sm:$0xff]
  %v50 = vld [vmem:[%s0 + $0x30] sm:$0xff]
  %v51 = vld [vmem:[%s0 + $0x38] sm:$0xff]
  %v52 = vld [vmem:[%s0 + $0x40] sm:$0xff]
  %v53 = vld [vmem:[%s0 + $0x48] sm:$0xff]
  %v54 = vld [vmem:[%s0 + $0x50] sm:$0xff]
  %v55 = vld [vmem:[%s0 + $0x58] sm:$0xff]
  %v56 = vld [vmem:[%s2] sm:$0xff]
  %v57 = vld [vmem:[%s2 + $0x8] sm:$0xff]
  %v58 = vld [vmem:[%s2 + $0x10] sm:$0xff]
  %v59 = vld [vmem:[%s2 + $0x18] sm:$0xff]
  %v60 = vld [vmem:[%s2 + $0x20] sm:$0xff]
  %v61 = vld [vmem:[%s2 + $0x28] sm:$0xff]
  %v62 = vld [vmem:[%s2 + $0x30] sm:$0xff]
  %v63 = vld [vmem:[%s2 + $0x38] sm:$0xff]
  %vm64 = vcmask 523264
  %v66 = vsel %vm64, %v44, 0
  %v69 = vsel %vm64, %v45, 0
  %v72 = vsel %vm64, %v46, 0
  %v75 = vsel %vm64, %v47, 0
  %v78 = vsel %vm64, %v48, 0
  %v81 = vsel %vm64, %v49, 0
  %v84 = vsel %vm64, %v50, 0
  %v87 = vsel %vm64, %v51, 0
  %v90 = vsel %vm64, %v52, 0
  %v93 = vsel %vm64, %v53, 0
  %v96 = vsel %vm64, %v54, 0
  %v99 = vsel %vm64, %v55, 0
  %101 = vmatprep.subr.mxu0 0.0
  %102 = vmatpush1.msra.mxu0 0.0
  %103 = vmatprep.subr.mxu0 0.0
  %104 = vmatpush1.msra.mxu0 0.0
  %105 = vmatprep.subr.mxu0 0.0
  %106 = vmatpush1.msra.mxu0 0.0
  %107 = vmatprep.subr.mxu0 0.0
  %108 = vmatpush1.msra.mxu0 0.0
  %109 = vmatprep.subr.mxu0 0.0
  %110 = vmatpush1.msra.mxu0 0.0
  %111 = vmatprep.subr.mxu0 0.0
  %112 = vmatpush1.msra.mxu0 0.0
  %113 = vmatprep.subr.mxu0 0.0
  %114 = vmatpush1.msra.mxu0 0.0
  %115 = vmatprep.subr.mxu0 0.0
  %116 = vmatpush1.msra.mxu0 0.0
  %117 = vmatprep.subr.mxu0 0.0
  %118 = vmatpush1.msra.mxu0 %v63
  %119 = vmatprep.subr.mxu0 0.0
  %120 = vmatpush1.msra.mxu0 %v62
  %121 = vmatprep.subr.mxu0 0.0
  %122 = vmatpush1.msra.mxu0 %v61
  %123 = vmatprep.subr.mxu0 0.0
  %124 = vmatpush1.msra.mxu0 %v60
  %125 = vmatprep.subr.mxu0 0.0
  %126 = vmatpush1.msra.mxu0 %v59
  %127 = vmatprep.subr.mxu0 0.0
  %128 = vmatpush1.msra.mxu0 %v58
  %129 = vmatprep.subr.mxu0 0.0
  %130 = vmatpush1.msra.mxu0 %v57
  %131 = vmatprep.subr.mxu0 0.0
  %132 = vmatpush1.msra.mxu0 %v56
  %133 = vmatprep.subr.mxu0 0.0
  %134 = vmatpush2.msra.mxu0 0.0
  %135 = vmatprep.subr.mxu0 0.0
  %136 = vmatpush2.msra.mxu0 0.0
  %137 = vmatprep.subr.mxu0 0.0
  %138 = vmatpush2.msra.mxu0 0.0
  %139 = vmatprep.subr.mxu0 0.0
  %140 = vmatpush2.msra.mxu0 0.0
  %141 = vmatprep.subr.mxu0 0.0
  %142 = vmatpush2.msra.mxu0 0.0
  %143 = vmatprep.subr.mxu0 0.0
  %144 = vmatpush2.msra.mxu0 0.0
  %145 = vmatprep.subr.mxu0 0.0
  %146 = vmatpush2.msra.mxu0 0.0
  %147 = vmatprep.subr.mxu0 0.0
  %148 = vmatpush2.msra.mxu0 0.0
  %149 = vmatprep.subr.mxu0 0.0
  %150 = vmatpush2.msra.mxu0 0.0
  %151 = vmatprep.subr.mxu0 0.0
  %152 = vmatpush2.msra.mxu0 0.0
  %153 = vmatprep.subr.mxu0 0.0
  %154 = vmatpush2.msra.mxu0 0.0
  %155 = vmatprep.subr.mxu0 0.0
  %156 = vmatpush2.msra.mxu0 0.0
  %157 = vmatprep.subr.mxu0 0.0
  %158 = vmatpush2.msra.mxu0 0.0
  %159 = vmatprep.subr.mxu0 0.0
  %160 = vmatpush2.msra.mxu0 0.0
  %161 = vmatprep.subr.mxu0 0.0
  %162 = vmatpush2.msra.mxu0 0.0
  %163 = vmatprep.subr.mxu0 0.0
  %164 = vmatpush2.msra.mxu0 0.0
  %165 = vmatprep.mubr.f32.mxu0 0.0
  %166 = vmatmul.mubr.f32.gmra.mxu0 %v66
  %v167 = vpop.f32.mrf.mxu0
  %v168 = vadd.f32 0.0, %v167
  %v169 = vpop.f32.mrf.mxu0
  %170 = vmatprep.mubr.f32.mxu0 0.0
  %171 = vmatmul.mubr.f32.gmra.mxu0 %v69
  %v172 = vpop.f32.mrf.mxu0
  %v173 = vadd.f32 0.0, %v172
  %v174 = vpop.f32.mrf.mxu0
  %175 = vmatprep.mubr.f32.mxu0 0.0
  %176 = vmatmul.mubr.f32.gmra.mxu0 %v72
  %v177 = vpop.f32.mrf.mxu0
  %v178 = vadd.f32 0.0, %v177
  %v179 = vpop.f32.mrf.mxu0
  %180 = vmatprep.mubr.f32.mxu0 0.0
  %181 = vmatmul.mubr.f32.gmra.mxu0 %v75
  %v182 = vpop.f32.mrf.mxu0
  %v183 = vadd.f32 0.0, %v182
  %v184 = vpop.f32.mrf.mxu0
  %185 = vmatprep.mubr.f32.mxu0 0.0
  %186 = vmatmul.mubr.f32.gmra.mxu0 %v78
  %v187 = vpop.f32.mrf.mxu0
  %v188 = vadd.f32 0.0, %v187
  %v189 = vpop.f32.mrf.mxu0
  %190 = vmatprep.mubr.f32.mxu0 0.0
  %191 = vmatmul.mubr.f32.gmra.mxu0 %v81
  %v192 = vpop.f32.mrf.mxu0
  %v193 = vadd.f32 0.0, %v192
  %v194 = vpop.f32.mrf.mxu0
  %195 = vmatprep.mubr.f32.mxu0 0.0
  %196 = vmatmul.mubr.f32.gmra.mxu0 %v84
  %v197 = vpop.f32.mrf.mxu0
  %v198 = vadd.f32 0.0, %v197
  %v199 = vpop.f32.mrf.mxu0
  %200 = vmatprep.mubr.f32.mxu0 0.0
  %201 = vmatmul.mubr.f32.gmra.mxu0 %v87
  %v202 = vpop.f32.mrf.mxu0
  %v203 = vadd.f32 0.0, %v202
  %v204 = vpop.f32.mrf.mxu0
  %205 = vmatprep.mubr.f32.mxu0 0.0
  %206 = vmatmul.mubr.f32.gmra.mxu0 %v90
  %v207 = vpop.f32.mrf.mxu0
  %v208 = vadd.f32 0.0, %v207
  %v209 = vpop.f32.mrf.mxu0
  %210 = vmatprep.mubr.f32.mxu0 0.0
  %211 = vmatmul.mubr.f32.gmra.mxu0 %v93
  %v212 = vpop.f32.mrf.mxu0
  %v213 = vadd.f32 0.0, %v212
  %v214 = vpop.f32.mrf.mxu0
  %215 = vmatprep.mubr.f32.mxu0 0.0
  %216 = vmatmul.mubr.f32.gmra.mxu0 %v96
  %v217 = vpop.f32.mrf.mxu0
  %v218 = vadd.f32 0.0, %v217
  %v219 = vpop.f32.mrf.mxu0
  %220 = vmatprep.mubr.f32.mxu0 0.0
  %221 = vmatmul.mubr.f32.gmra.mxu0 %v99
  %v222 = vpop.f32.mrf.mxu0
  %v223 = vadd.f32 0.0, %v222
  %v224 = vpop.f32.mrf.mxu0
  %225 = vdwg.mxu0
  %v226 = vld [vmem:[%s1] sm:$0xff]
  %v227 = vld [vmem:[%s1 + $0x8] sm:$0xff]
  %v228 = vld [vmem:[%s1 + $0x10] sm:$0xff]
  %v229 = vld [vmem:[%s1 + $0x18] sm:$0xff]
  %v230 = vld [vmem:[%s1 + $0x20] sm:$0xff]
  %v231 = vld [vmem:[%s1 + $0x28] sm:$0xff]
  %v232 = vld [vmem:[%s1 + $0x30] sm:$0xff]
  %v233 = vld [vmem:[%s1 + $0x38] sm:$0xff]
  %v234 = vld [vmem:[%s1 + $0x40] sm:$0xff]
  %v235 = vld [vmem:[%s1 + $0x48] sm:$0xff]
  %v236 = vld [vmem:[%s1 + $0x50] sm:$0xff]
  %v237 = vld [vmem:[%s1 + $0x58] sm:$0xff]
  %v238 = vld [vmem:[%s1 + $0x60] sm:$0xff]
  %v239 = vld [vmem:[%s1 + $0x68] sm:$0xff]
  %v240 = vld [vmem:[%s1 + $0x70] sm:$0xff]
  %v241 = vld [vmem:[%s1 + $0x78] sm:$0xff]
  %s242 = scalar_lea.vmem %s2, 64
  %v243 = vld [vmem:[%s242] sm:$0xff]
  %v244 = vld [vmem:[%s242 + $0x8] sm:$0xff]
  %v245 = vld [vmem:[%s242 + $0x10] sm:$0xff]
  %v246 = vld [vmem:[%s242 + $0x18] sm:$0xff]
  %v247 = vld [vmem:[%s242 + $0x20] sm:$0xff]
  %v248 = vld [vmem:[%s242 + $0x28] sm:$0xff]
  %v249 = vld [vmem:[%s242 + $0x30] sm:$0xff]
  %v250 = vld [vmem:[%s242 + $0x38] sm:$0xff]
  %251 = vmatprep.subr.mxu0 0.0
  %252 = vmatpush1.msra.mxu0 0.0
  %253 = vmatprep.subr.mxu0 0.0
  %254 = vmatpush1.msra.mxu0 0.0
  %255 = vmatprep.subr.mxu0 0.0
  %256 = vmatpush1.msra.mxu0 0.0
  %257 = vmatprep.subr.mxu0 0.0
  %258 = vmatpush1.msra.mxu0 0.0
  %259 = vmatprep.subr.mxu0 0.0
  %260 = vmatpush1.msra.mxu0 0.0
  %261 = vmatprep.subr.mxu0 0.0
  %262 = vmatpush1.msra.mxu0 0.0
  %263 = vmatprep.subr.mxu0 0.0
  %264 = vmatpush1.msra.mxu0 0.0
  %265 = vmatprep.subr.mxu0 0.0
  %266 = vmatpush1.msra.mxu0 0.0
  %267 = vmatprep.subr.mxu0 0.0
  %268 = vmatpush1.msra.mxu0 %v250
  %269 = vmatprep.subr.mxu0 0.0
  %270 = vmatpush1.msra.mxu0 %v249
  %271 = vmatprep.subr.mxu0 0.0
  %272 = vmatpush1.msra.mxu0 %v248
  %273 = vmatprep.subr.mxu0 0.0
  %274 = vmatpush1.msra.mxu0 %v247
  %275 = vmatprep.subr.mxu0 0.0
  %276 = vmatpush1.msra.mxu0 %v246
  %277 = vmatprep.subr.mxu0 0.0
  %278 = vmatpush1.msra.mxu0 %v245
  %279 = vmatprep.subr.mxu0 0.0
  %280 = vmatpush1.msra.mxu0 %v244
  %281 = vmatprep.subr.mxu0 0.0
  %282 = vmatpush1.msra.mxu0 %v243
  %283 = vmatprep.subr.mxu0 0.0
  %284 = vmatpush2.msra.mxu0 0.0
  %285 = vmatprep.subr.mxu0 0.0
  %286 = vmatpush2.msra.mxu0 0.0
  %287 = vmatprep.subr.mxu0 0.0
  %288 = vmatpush2.msra.mxu0 0.0
  %289 = vmatprep.subr.mxu0 0.0
  %290 = vmatpush2.msra.mxu0 0.0
  %291 = vmatprep.subr.mxu0 0.0
  %292 = vmatpush2.msra.mxu0 0.0
  %293 = vmatprep.subr.mxu0 0.0
  %294 = vmatpush2.msra.mxu0 0.0
  %295 = vmatprep.subr.mxu0 0.0
  %296 = vmatpush2.msra.mxu0 0.0
  %297 = vmatprep.subr.mxu0 0.0
  %298 = vmatpush2.msra.mxu0 0.0
  %299 = vmatprep.subr.mxu0 0.0
  %300 = vmatpush2.msra.mxu0 0.0
  %301 = vmatprep.subr.mxu0 0.0
  %302 = vmatpush2.msra.mxu0 0.0
  %303 = vmatprep.subr.mxu0 0.0
  %304 = vmatpush2.msra.mxu0 0.0
  %305 = vmatprep.subr.mxu0 0.0
  %306 = vmatpush2.msra.mxu0 0.0
  %307 = vmatprep.subr.mxu0 0.0
  %308 = vmatpush2.msra.mxu0 0.0
  %309 = vmatprep.subr.mxu0 0.0
  %310 = vmatpush2.msra.mxu0 0.0
  %311 = vmatprep.subr.mxu0 0.0
  %312 = vmatpush2.msra.mxu0 0.0
  %313 = vmatprep.subr.mxu0 0.0
  %314 = vmatpush2.msra.mxu0 0.0
  %315 = vmatprep.mubr.f32.mxu0 0.0
  %316 = vmatmul.mubr.f32.gmra.mxu0 %v66
  %v317 = vpop.f32.mrf.mxu0
  %v318 = vadd.f32 0.0, %v317
  %v319 = vpop.f32.mrf.mxu0
  %320 = vmatprep.mubr.f32.mxu0 0.0
  %321 = vmatmul.mubr.f32.gmra.mxu0 %v69
  %v322 = vpop.f32.mrf.mxu0
  %v323 = vadd.f32 0.0, %v322
  %v324 = vpop.f32.mrf.mxu0
  %325 = vmatprep.mubr.f32.mxu0 0.0
  %326 = vmatmul.mubr.f32.gmra.mxu0 %v72
  %v327 = vpop.f32.mrf.mxu0
  %v328 = vadd.f32 0.0, %v327
  %v329 = vpop.f32.mrf.mxu0
  %330 = vmatprep.mubr.f32.mxu0 0.0
  %331 = vmatmul.mubr.f32.gmra.mxu0 %v75
  %v332 = vpop.f32.mrf.mxu0
  %v333 = vadd.f32 0.0, %v332
  %v334 = vpop.f32.mrf.mxu0
  %335 = vmatprep.mubr.f32.mxu0 0.0
  %336 = vmatmul.mubr.f32.gmra.mxu0 %v78
  %v337 = vpop.f32.mrf.mxu0
  %v338 = vadd.f32 0.0, %v337
  %v339 = vpop.f32.mrf.mxu0
  %340 = vmatprep.mubr.f32.mxu0 0.0
  %341 = vmatmul.mubr.f32.gmra.mxu0 %v81
  %v342 = vpop.f32.mrf.mxu0
  %v343 = vadd.f32 0.0, %v342
  %v344 = vpop.f32.mrf.mxu0
  %345 = vmatprep.mubr.f32.mxu0 0.0
  %346 = vmatmul.mubr.f32.gmra.mxu0 %v84
  %v347 = vpop.f32.mrf.mxu0
  %v348 = vadd.f32 0.0, %v347
  %v349 = vpop.f32.mrf.mxu0
  %350 = vmatprep.mubr.f32.mxu0 0.0
  %351 = vmatmul.mubr.f32.gmra.mxu0 %v87
  %v352 = vpop.f32.mrf.mxu0
  %v353 = vadd.f32 0.0, %v352
  %v354 = vpop.f32.mrf.mxu0
  %355 = vmatprep.mubr.f32.mxu0 0.0
  %356 = vmatmul.mubr.f32.gmra.mxu0 %v90
  %v357 = vpop.f32.mrf.mxu0
  %v358 = vadd.f32 0.0, %v357
  %v359 = vpop.f32.mrf.mxu0
  %360 = vmatprep.mubr.f32.mxu0 0.0
  %361 = vmatmul.mubr.f32.gmra.mxu0 %v93
  %v362 = vpop.f32.mrf.mxu0
  %v363 = vadd.f32 0.0, %v362
  %v364 = vpop.f32.mrf.mxu0
  %365 = vmatprep.mubr.f32.mxu0 0.0
  %366 = vmatmul.mubr.f32.gmra.mxu0 %v96
  %v367 = vpop.f32.mrf.mxu0
  %v368 = vadd.f32 0.0, %v367
  %v369 = vpop.f32.mrf.mxu0
  %370 = vmatprep.mubr.f32.mxu0 0.0
  %371 = vmatmul.mubr.f32.gmra.mxu0 %v99
  %v372 = vpop.f32.mrf.mxu0
  %v373 = vadd.f32 0.0, %v372
  %v374 = vpop.f32.mrf.mxu0
  %375 = vdwg.mxu0
  %s376 = scalar_lea.vmem %s1, 128
  %v377 = vld [vmem:[%s376] sm:$0xff]
  %v378 = vld [vmem:[%s376 + $0x8] sm:$0xff]
  %v379 = vld [vmem:[%s376 + $0x10] sm:$0xff]
  %v380 = vld [vmem:[%s376 + $0x18] sm:$0xff]
  %v381 = vld [vmem:[%s376 + $0x20] sm:$0xff]
  %v382 = vld [vmem:[%s376 + $0x28] sm:$0xff]
  %v383 = vld [vmem:[%s376 + $0x30] sm:$0xff]
  %v384 = vld [vmem:[%s376 + $0x38] sm:$0xff]
  %v385 = vld [vmem:[%s376 + $0x40] sm:$0xff]
  %v386 = vld [vmem:[%s376 + $0x48] sm:$0xff]
  %v387 = vld [vmem:[%s376 + $0x50] sm:$0xff]
  %v388 = vld [vmem:[%s376 + $0x58] sm:$0xff]
  %v389 = vld [vmem:[%s376 + $0x60] sm:$0xff]
  %v390 = vld [vmem:[%s376 + $0x68] sm:$0xff]
  %v391 = vld [vmem:[%s376 + $0x70] sm:$0xff]
  %v392 = vld [vmem:[%s376 + $0x78] sm:$0xff]
  %vm393 = vcmask 785408
  %v395 = vsel %vm393, %v377, 0
  %v398 = vsel %vm393, %v378, 0
  %v401 = vsel %vm393, %v379, 0
  %v404 = vsel %vm393, %v380, 0
  %v407 = vsel %vm393, %v381, 0
  %v410 = vsel %vm393, %v382, 0
  %v413 = vsel %vm393, %v383, 0
  %v416 = vsel %vm393, %v384, 0
  %v419 = vsel %vm393, %v385, 0
  %v422 = vsel %vm393, %v386, 0
  %v425 = vsel %vm393, %v387, 0
  %v428 = vsel %vm393, %v388, 0
  %v431 = vsel %vm393, %v389, 0
  %v434 = vsel %vm393, %v390, 0
  %v437 = vsel %vm393, %v391, 0
  %v440 = vsel %vm393, %v392, 0
  %442 = vmatprep.subr.mxu0 0.0
  %443 = vmatpush1.msra.mxu0 0.0
  %444 = vmatprep.subr.mxu0 0.0
  %445 = vmatpush1.msra.mxu0 0.0
  %446 = vmatprep.subr.mxu0 0.0
  %447 = vmatpush1.msra.mxu0 0.0
  %448 = vmatprep.subr.mxu0 0.0
  %449 = vmatpush1.msra.mxu0 0.0
  %450 = vmatprep.subr.mxu0 0.0
  %451 = vmatpush1.msra.mxu0 %v373
  %452 = vmatprep.subr.mxu0 0.0
  %453 = vmatpush1.msra.mxu0 %v368
  %454 = vmatprep.subr.mxu0 0.0
  %455 = vmatpush1.msra.mxu0 %v363
  %456 = vmatprep.subr.mxu0 0.0
  %457 = vmatpush1.msra.mxu0 %v358
  %458 = vmatprep.subr.mxu0 0.0
  %459 = vmatpush1.msra.mxu0 %v353
  %460 = vmatprep.subr.mxu0 0.0
  %461 = vmatpush1.msra.mxu0 %v348
  %462 = vmatprep.subr.mxu0 0.0
  %463 = vmatpush1.msra.mxu0 %v343
  %464 = vmatprep.subr.mxu0 0.0
  %465 = vmatpush1.msra.mxu0 %v338
  %466 = vmatprep.subr.mxu0 0.0
  %467 = vmatpush1.msra.mxu0 %v333
  %468 = vmatprep.subr.mxu0 0.0
  %469 = vmatpush1.msra.mxu0 %v328
  %470 = vmatprep.subr.mxu0 0.0
  %471 = vmatpush1.msra.mxu0 %v323
  %472 = vmatprep.subr.mxu0 0.0
  %473 = vmatpush1.msra.mxu0 %v318
  %474 = vmatprep.subr.mxu0 0.0
  %475 = vmatpush2.msra.mxu0 0.0
  %476 = vmatprep.subr.mxu0 0.0
  %477 = vmatpush2.msra.mxu0 0.0
  %478 = vmatprep.subr.mxu0 0.0
  %479 = vmatpush2.msra.mxu0 0.0
  %480 = vmatprep.subr.mxu0 0.0
  %481 = vmatpush2.msra.mxu0 0.0
  %482 = vmatprep.subr.mxu0 0.0
  %483 = vmatpush2.msra.mxu0 0.0
  %484 = vmatprep.subr.mxu0 0.0
  %485 = vmatpush2.msra.mxu0 0.0
  %486 = vmatprep.subr.mxu0 0.0
  %487 = vmatpush2.msra.mxu0 0.0
  %488 = vmatprep.subr.mxu0 0.0
  %489 = vmatpush2.msra.mxu0 0.0
  %490 = vmatprep.subr.mxu0 0.0
  %491 = vmatpush2.msra.mxu0 0.0
  %492 = vmatprep.subr.mxu0 0.0
  %493 = vmatpush2.msra.mxu0 0.0
  %494 = vmatprep.subr.mxu0 0.0
  %495 = vmatpush2.msra.mxu0 0.0
  %496 = vmatprep.subr.mxu0 0.0
  %497 = vmatpush2.msra.mxu0 0.0
  %498 = vmatprep.subr.mxu0 0.0
  %499 = vmatpush2.msra.mxu0 0.0
  %500 = vmatprep.subr.mxu0 0.0
  %501 = vmatpush2.msra.mxu0 0.0
  %502 = vmatprep.subr.mxu0 0.0
  %503 = vmatpush2.msra.mxu0 0.0
  %504 = vmatprep.subr.mxu0 0.0
  %505 = vmatpush2.msra.mxu0 0.0
  %506 = vmatprep.mubr.f32.mxu0 0.0
  %507 = vmatmul.mubr.f32.gmra.mxu0 %v395
  %v508 = vpop.f32.mrf.mxu0
  %v509 = vadd.f32 0.0, %v508
  %v510 = vpop.f32.mrf.mxu0
  %511 = vmatprep.mubr.f32.mxu0 0.0
  %512 = vmatmul.mubr.f32.gmra.mxu0 %v398
  %v513 = vpop.f32.mrf.mxu0
  %v514 = vadd.f32 0.0, %v513
  %v515 = vpop.f32.mrf.mxu0
  %516 = vmatprep.mubr.f32.mxu0 0.0
  %517 = vmatmul.mubr.f32.gmra.mxu0 %v401
  %v518 = vpop.f32.mrf.mxu0
  %v519 = vadd.f32 0.0, %v518
  %v520 = vpop.f32.mrf.mxu0
  %521 = vmatprep.mubr.f32.mxu0 0.0
  %522 = vmatmul.mubr.f32.gmra.mxu0 %v404
  %v523 = vpop.f32.mrf.mxu0
  %v524 = vadd.f32 0.0, %v523
  %v525 = vpop.f32.mrf.mxu0
  %526 = vmatprep.mubr.f32.mxu0 0.0
  %527 = vmatmul.mubr.f32.gmra.mxu0 %v407
  %v528 = vpop.f32.mrf.mxu0
  %v529 = vadd.f32 0.0, %v528
  %v530 = vpop.f32.mrf.mxu0
  %531 = vmatprep.mubr.f32.mxu0 0.0
  %532 = vmatmul.mubr.f32.gmra.mxu0 %v410
  %v533 = vpop.f32.mrf.mxu0
  %v534 = vadd.f32 0.0, %v533
  %v535 = vpop.f32.mrf.mxu0
  %536 = vmatprep.mubr.f32.mxu0 0.0
  %537 = vmatmul.mubr.f32.gmra.mxu0 %v413
  %v538 = vpop.f32.mrf.mxu0
  %v539 = vadd.f32 0.0, %v538
  %v540 = vpop.f32.mrf.mxu0
  %541 = vmatprep.mubr.f32.mxu0 0.0
  %542 = vmatmul.mubr.f32.gmra.mxu0 %v416
  %v543 = vpop.f32.mrf.mxu0
  %v544 = vadd.f32 0.0, %v543
  %v545 = vpop.f32.mrf.mxu0
  %546 = vmatprep.mubr.f32.mxu0 0.0
  %547 = vmatmul.mubr.f32.gmra.mxu0 %v419
  %v548 = vpop.f32.mrf.mxu0
  %v549 = vadd.f32 0.0, %v548
  %v550 = vpop.f32.mrf.mxu0
  %551 = vmatprep.mubr.f32.mxu0 0.0
  %552 = vmatmul.mubr.f32.gmra.mxu0 %v422
  %v553 = vpop.f32.mrf.mxu0
  %v554 = vadd.f32 0.0, %v553
  %v555 = vpop.f32.mrf.mxu0
  %556 = vmatprep.mubr.f32.mxu0 0.0
  %557 = vmatmul.mubr.f32.gmra.mxu0 %v425
  %v558 = vpop.f32.mrf.mxu0
  %v559 = vadd.f32 0.0, %v558
  %v560 = vpop.f32.mrf.mxu0
  %561 = vmatprep.mubr.f32.mxu0 0.0
  %562 = vmatmul.mubr.f32.gmra.mxu0 %v428
  %v563 = vpop.f32.mrf.mxu0
  %v564 = vadd.f32 0.0, %v563
  %v565 = vpop.f32.mrf.mxu0
  %566 = vmatprep.mubr.f32.mxu0 0.0
  %567 = vmatmul.mubr.f32.gmra.mxu0 %v431
  %v568 = vpop.f32.mrf.mxu0
  %v569 = vadd.f32 0.0, %v568
  %v570 = vpop.f32.mrf.mxu0
  %571 = vmatprep.mubr.f32.mxu0 0.0
  %572 = vmatmul.mubr.f32.gmra.mxu0 %v434
  %v573 = vpop.f32.mrf.mxu0
  %v574 = vadd.f32 0.0, %v573
  %v575 = vpop.f32.mrf.mxu0
  %576 = vmatprep.mubr.f32.mxu0 0.0
  %577 = vmatmul.mubr.f32.gmra.mxu0 %v437
  %v578 = vpop.f32.mrf.mxu0
  %v579 = vadd.f32 0.0, %v578
  %v580 = vpop.f32.mrf.mxu0
  %581 = vmatprep.mubr.f32.mxu0 0.0
  %582 = vmatmul.mubr.f32.gmra.mxu0 %v440
  %v583 = vpop.f32.mrf.mxu0
  %v584 = vadd.f32 0.0, %v583
  %v585 = vpop.f32.mrf.mxu0
  %586 = vdwg.mxu0
  %v588 = vsel %vm393, %v226, 0
  %v591 = vsel %vm393, %v227, 0
  %v594 = vsel %vm393, %v228, 0
  %v597 = vsel %vm393, %v229, 0
  %v600 = vsel %vm393, %v230, 0
  %v603 = vsel %vm393, %v231, 0
  %v606 = vsel %vm393, %v232, 0
  %v609 = vsel %vm393, %v233, 0
  %v612 = vsel %vm393, %v234, 0
  %v615 = vsel %vm393, %v235, 0
  %v618 = vsel %vm393, %v236, 0
  %v621 = vsel %vm393, %v237, 0
  %v624 = vsel %vm393, %v238, 0
  %v627 = vsel %vm393, %v239, 0
  %v630 = vsel %vm393, %v240, 0
  %v633 = vsel %vm393, %v241, 0
  %635 = vmatprep.subr.mxu0 0.0
  %636 = vmatpush1.msra.mxu0 0.0
  %637 = vmatprep.subr.mxu0 0.0
  %638 = vmatpush1.msra.mxu0 0.0
  %639 = vmatprep.subr.mxu0 0.0
  %640 = vmatpush1.msra.mxu0 0.0
  %641 = vmatprep.subr.mxu0 0.0
  %642 = vmatpush1.msra.mxu0 0.0
  %643 = vmatprep.subr.mxu0 0.0
  %644 = vmatpush1.msra.mxu0 %v223
  %645 = vmatprep.subr.mxu0 0.0
  %646 = vmatpush1.msra.mxu0 %v218
  %647 = vmatprep.subr.mxu0 0.0
  %648 = vmatpush1.msra.mxu0 %v213
  %649 = vmatprep.subr.mxu0 0.0
  %650 = vmatpush1.msra.mxu0 %v208
  %651 = vmatprep.subr.mxu0 0.0
  %652 = vmatpush1.msra.mxu0 %v203
  %653 = vmatprep.subr.mxu0 0.0
  %654 = vmatpush1.msra.mxu0 %v198
  %655 = vmatprep.subr.mxu0 0.0
  %656 = vmatpush1.msra.mxu0 %v193
  %657 = vmatprep.subr.mxu0 0.0
  %658 = vmatpush1.msra.mxu0 %v188
  %659 = vmatprep.subr.mxu0 0.0
  %660 = vmatpush1.msra.mxu0 %v183
  %661 = vmatprep.subr.mxu0 0.0
  %662 = vmatpush1.msra.mxu0 %v178
  %663 = vmatprep.subr.mxu0 0.0
  %664 = vmatpush1.msra.mxu0 %v173
  %665 = vmatprep.subr.mxu0 0.0
  %666 = vmatpush1.msra.mxu0 %v168
  %667 = vmatprep.subr.mxu0 0.0
  %668 = vmatpush2.msra.mxu0 0.0
  %669 = vmatprep.subr.mxu0 0.0
  %670 = vmatpush2.msra.mxu0 0.0
  %671 = vmatprep.subr.mxu0 0.0
  %672 = vmatpush2.msra.mxu0 0.0
  %673 = vmatprep.subr.mxu0 0.0
  %674 = vmatpush2.msra.mxu0 0.0
  %675 = vmatprep.subr.mxu0 0.0
  %676 = vmatpush2.msra.mxu0 0.0
  %677 = vmatprep.subr.mxu0 0.0
  %678 = vmatpush2.msra.mxu0 0.0
  %679 = vmatprep.subr.mxu0 0.0
  %680 = vmatpush2.msra.mxu0 0.0
  %681 = vmatprep.subr.mxu0 0.0
  %682 = vmatpush2.msra.mxu0 0.0
  %683 = vmatprep.subr.mxu0 0.0
  %684 = vmatpush2.msra.mxu0 0.0
  %685 = vmatprep.subr.mxu0 0.0
  %686 = vmatpush2.msra.mxu0 0.0
  %687 = vmatprep.subr.mxu0 0.0
  %688 = vmatpush2.msra.mxu0 0.0
  %689 = vmatprep.subr.mxu0 0.0
  %690 = vmatpush2.msra.mxu0 0.0
  %691 = vmatprep.subr.mxu0 0.0
  %692 = vmatpush2.msra.mxu0 0.0
  %693 = vmatprep.subr.mxu0 0.0
  %694 = vmatpush2.msra.mxu0 0.0
  %695 = vmatprep.subr.mxu0 0.0
  %696 = vmatpush2.msra.mxu0 0.0
  %697 = vmatprep.subr.mxu0 0.0
  %698 = vmatpush2.msra.mxu0 0.0
  %699 = vmatprep.mubr.f32.mxu0 0.0
  %700 = vmatmul.mubr.f32.gmra.mxu0 %v588
  %v701 = vpop.f32.mrf.mxu0
  %v702 = vadd.f32 %v509, %v701
  %v703 = vpop.f32.mrf.mxu0
  %704 = vmatprep.mubr.f32.mxu0 0.0
  %705 = vmatmul.mubr.f32.gmra.mxu0 %v591
  %v706 = vpop.f32.mrf.mxu0
  %v707 = vadd.f32 %v514, %v706
  %v708 = vpop.f32.mrf.mxu0
  %709 = vmatprep.mubr.f32.mxu0 0.0
  %710 = vmatmul.mubr.f32.gmra.mxu0 %v594
  %v711 = vpop.f32.mrf.mxu0
  %v712 = vadd.f32 %v519, %v711
  %v713 = vpop.f32.mrf.mxu0
  %714 = vmatprep.mubr.f32.mxu0 0.0
  %715 = vmatmul.mubr.f32.gmra.mxu0 %v597
  %v716 = vpop.f32.mrf.mxu0
  %v717 = vadd.f32 %v524, %v716
  %v718 = vpop.f32.mrf.mxu0
  %719 = vmatprep.mubr.f32.mxu0 0.0
  %720 = vmatmul.mubr.f32.gmra.mxu0 %v600
  %v721 = vpop.f32.mrf.mxu0
  %v722 = vadd.f32 %v529, %v721
  %v723 = vpop.f32.mrf.mxu0
  %724 = vmatprep.mubr.f32.mxu0 0.0
  %725 = vmatmul.mubr.f32.gmra.mxu0 %v603
  %v726 = vpop.f32.mrf.mxu0
  %v727 = vadd.f32 %v534, %v726
  %v728 = vpop.f32.mrf.mxu0
  %729 = vmatprep.mubr.f32.mxu0 0.0
  %730 = vmatmul.mubr.f32.gmra.mxu0 %v606
  %v731 = vpop.f32.mrf.mxu0
  %v732 = vadd.f32 %v539, %v731
  %v733 = vpop.f32.mrf.mxu0
  %734 = vmatprep.mubr.f32.mxu0 0.0
  %735 = vmatmul.mubr.f32.gmra.mxu0 %v609
  %v736 = vpop.f32.mrf.mxu0
  %v737 = vadd.f32 %v544, %v736
  %v738 = vpop.f32.mrf.mxu0
  %739 = vmatprep.mubr.f32.mxu0 0.0
  %740 = vmatmul.mubr.f32.gmra.mxu0 %v612
  %v741 = vpop.f32.mrf.mxu0
  %v742 = vadd.f32 %v549, %v741
  %v743 = vpop.f32.mrf.mxu0
  %744 = vmatprep.mubr.f32.mxu0 0.0
  %745 = vmatmul.mubr.f32.gmra.mxu0 %v615
  %v746 = vpop.f32.mrf.mxu0
  %v747 = vadd.f32 %v554, %v746
  %v748 = vpop.f32.mrf.mxu0
  %749 = vmatprep.mubr.f32.mxu0 0.0
  %750 = vmatmul.mubr.f32.gmra.mxu0 %v618
  %v751 = vpop.f32.mrf.mxu0
  %v752 = vadd.f32 %v559, %v751
  %v753 = vpop.f32.mrf.mxu0
  %754 = vmatprep.mubr.f32.mxu0 0.0
  %755 = vmatmul.mubr.f32.gmra.mxu0 %v621
  %v756 = vpop.f32.mrf.mxu0
  %v757 = vadd.f32 %v564, %v756
  %v758 = vpop.f32.mrf.mxu0
  %759 = vmatprep.mubr.f32.mxu0 0.0
  %760 = vmatmul.mubr.f32.gmra.mxu0 %v624
  %v761 = vpop.f32.mrf.mxu0
  %v762 = vadd.f32 %v569, %v761
  %v763 = vpop.f32.mrf.mxu0
  %764 = vmatprep.mubr.f32.mxu0 0.0
  %765 = vmatmul.mubr.f32.gmra.mxu0 %v627
  %v766 = vpop.f32.mrf.mxu0
  %v767 = vadd.f32 %v574, %v766
  %v768 = vpop.f32.mrf.mxu0
  %769 = vmatprep.mubr.f32.mxu0 0.0
  %770 = vmatmul.mubr.f32.gmra.mxu0 %v630
  %v771 = vpop.f32.mrf.mxu0
  %v772 = vadd.f32 %v579, %v771
  %v773 = vpop.f32.mrf.mxu0
  %774 = vmatprep.mubr.f32.mxu0 0.0
  %775 = vmatmul.mubr.f32.gmra.mxu0 %v633
  %v776 = vpop.f32.mrf.mxu0
  %v777 = vadd.f32 %v584, %v776
  %v778 = vpop.f32.mrf.mxu0
  %779 = vdwg.mxu0
  %s780 = scalar_lea.vmem %s2, 128
  %v781 = vld [vmem:[%s780] sm:$0xff]
  %v782 = vld [vmem:[%s780 + $0x8] sm:$0xff]
  %v783 = vld [vmem:[%s780 + $0x10] sm:$0xff]
  %v784 = vld [vmem:[%s780 + $0x18] sm:$0xff]
  %v785 = vld [vmem:[%s780 + $0x20] sm:$0xff]
  %v786 = vld [vmem:[%s780 + $0x28] sm:$0xff]
  %v787 = vld [vmem:[%s780 + $0x30] sm:$0xff]
  %v788 = vld [vmem:[%s780 + $0x38] sm:$0xff]
  %789 = vmatprep.subr.mxu0 0.0
  %790 = vmatpush1.msra.mxu0 0.0
  %791 = vmatprep.subr.mxu0 0.0
  %792 = vmatpush1.msra.mxu0 0.0
  %793 = vmatprep.subr.mxu0 0.0
  %794 = vmatpush1.msra.mxu0 0.0
  %795 = vmatprep.subr.mxu0 0.0
  %796 = vmatpush1.msra.mxu0 0.0
  %797 = vmatprep.subr.mxu0 0.0
  %798 = vmatpush1.msra.mxu0 0.0
  %799 = vmatprep.subr.mxu0 0.0
  %800 = vmatpush1.msra.mxu0 0.0
  %801 = vmatprep.subr.mxu0 0.0
  %802 = vmatpush1.msra.mxu0 0.0
  %803 = vmatprep.subr.mxu0 0.0
  %804 = vmatpush1.msra.mxu0 0.0
  %805 = vmatprep.subr.mxu0 0.0
  %806 = vmatpush1.msra.mxu0 %v788
  %807 = vmatprep.subr.mxu0 0.0
  %808 = vmatpush1.msra.mxu0 %v787
  %809 = vmatprep.subr.mxu0 0.0
  %810 = vmatpush1.msra.mxu0 %v786
  %811 = vmatprep.subr.mxu0 0.0
  %812 = vmatpush1.msra.mxu0 %v785
  %813 = vmatprep.subr.mxu0 0.0
  %814 = vmatpush1.msra.mxu0 %v784
  %815 = vmatprep.subr.mxu0 0.0
  %816 = vmatpush1.msra.mxu0 %v783
  %817 = vmatprep.subr.mxu0 0.0
  %818 = vmatpush1.msra.mxu0 %v782
  %819 = vmatprep.subr.mxu0 0.0
  %820 = vmatpush1.msra.mxu0 %v781
  %821 = vmatprep.subr.mxu0 0.0
  %822 = vmatpush2.msra.mxu0 0.0
  %823 = vmatprep.subr.mxu0 0.0
  %824 = vmatpush2.msra.mxu0 0.0
  %825 = vmatprep.subr.mxu0 0.0
  %826 = vmatpush2.msra.mxu0 0.0
  %827 = vmatprep.subr.mxu0 0.0
  %828 = vmatpush2.msra.mxu0 0.0
  %829 = vmatprep.subr.mxu0 0.0
  %830 = vmatpush2.msra.mxu0 0.0
  %831 = vmatprep.subr.mxu0 0.0
  %832 = vmatpush2.msra.mxu0 0.0
  %833 = vmatprep.subr.mxu0 0.0
  %834 = vmatpush2.msra.mxu0 0.0
  %835 = vmatprep.subr.mxu0 0.0
  %836 = vmatpush2.msra.mxu0 0.0
  %837 = vmatprep.subr.mxu0 0.0
  %838 = vmatpush2.msra.mxu0 0.0
  %839 = vmatprep.subr.mxu0 0.0
  %840 = vmatpush2.msra.mxu0 0.0
  %841 = vmatprep.subr.mxu0 0.0
  %842 = vmatpush2.msra.mxu0 0.0
  %843 = vmatprep.subr.mxu0 0.0
  %844 = vmatpush2.msra.mxu0 0.0
  %845 = vmatprep.subr.mxu0 0.0
  %846 = vmatpush2.msra.mxu0 0.0
  %847 = vmatprep.subr.mxu0 0.0
  %848 = vmatpush2.msra.mxu0 0.0
  %849 = vmatprep.subr.mxu0 0.0
  %850 = vmatpush2.msra.mxu0 0.0
  %851 = vmatprep.subr.mxu0 0.0
  %852 = vmatpush2.msra.mxu0 0.0
  %853 = vmatprep.mubr.f32.mxu0 0.0
  %854 = vmatmul.mubr.f32.gmra.mxu0 %v66
  %v855 = vpop.f32.mrf.mxu0
  %v856 = vadd.f32 0.0, %v855
  %v857 = vpop.f32.mrf.mxu0
  %858 = vmatprep.mubr.f32.mxu0 0.0
  %859 = vmatmul.mubr.f32.gmra.mxu0 %v69
  %v860 = vpop.f32.mrf.mxu0
  %v861 = vadd.f32 0.0, %v860
  %v862 = vpop.f32.mrf.mxu0
  %863 = vmatprep.mubr.f32.mxu0 0.0
  %864 = vmatmul.mubr.f32.gmra.mxu0 %v72
  %v865 = vpop.f32.mrf.mxu0
  %v866 = vadd.f32 0.0, %v865
  %v867 = vpop.f32.mrf.mxu0
  %868 = vmatprep.mubr.f32.mxu0 0.0
  %869 = vmatmul.mubr.f32.gmra.mxu0 %v75
  %v870 = vpop.f32.mrf.mxu0
  %v871 = vadd.f32 0.0, %v870
  %v872 = vpop.f32.mrf.mxu0
  %873 = vmatprep.mubr.f32.mxu0 0.0
  %874 = vmatmul.mubr.f32.gmra.mxu0 %v78
  %v875 = vpop.f32.mrf.mxu0
  %v876 = vadd.f32 0.0, %v875
  %v877 = vpop.f32.mrf.mxu0
  %878 = vmatprep.mubr.f32.mxu0 0.0
  %879 = vmatmul.mubr.f32.gmra.mxu0 %v81
  %v880 = vpop.f32.mrf.mxu0
  %v881 = vadd.f32 0.0, %v880
  %v882 = vpop.f32.mrf.mxu0
  %883 = vmatprep.mubr.f32.mxu0 0.0
  %884 = vmatmul.mubr.f32.gmra.mxu0 %v84
  %v885 = vpop.f32.mrf.mxu0
  %v886 = vadd.f32 0.0, %v885
  %v887 = vpop.f32.mrf.mxu0
  %888 = vmatprep.mubr.f32.mxu0 0.0
  %889 = vmatmul.mubr.f32.gmra.mxu0 %v87
  %v890 = vpop.f32.mrf.mxu0
  %v891 = vadd.f32 0.0, %v890
  %v892 = vpop.f32.mrf.mxu0
  %893 = vmatprep.mubr.f32.mxu0 0.0
  %894 = vmatmul.mubr.f32.gmra.mxu0 %v90
  %v895 = vpop.f32.mrf.mxu0
  %v896 = vadd.f32 0.0, %v895
  %v897 = vpop.f32.mrf.mxu0
  %898 = vmatprep.mubr.f32.mxu0 0.0
  %899 = vmatmul.mubr.f32.gmra.mxu0 %v93
  %v900 = vpop.f32.mrf.mxu0
  %v901 = vadd.f32 0.0, %v900
  %v902 = vpop.f32.mrf.mxu0
  %903 = vmatprep.mubr.f32.mxu0 0.0
  %904 = vmatmul.mubr.f32.gmra.mxu0 %v96
  %v905 = vpop.f32.mrf.mxu0
  %v906 = vadd.f32 0.0, %v905
  %v907 = vpop.f32.mrf.mxu0
  %908 = vmatprep.mubr.f32.mxu0 0.0
  %909 = vmatmul.mubr.f32.gmra.mxu0 %v99
  %v910 = vpop.f32.mrf.mxu0
  %v911 = vadd.f32 0.0, %v910
  %v912 = vpop.f32.mrf.mxu0
  %913 = vdwg.mxu0
  %s914 = scalar_lea.vmem %s1, 256
  %v915 = vld [vmem:[%s914] sm:$0xff]
  %v916 = vld [vmem:[%s914 + $0x8] sm:$0xff]
  %v917 = vld [vmem:[%s914 + $0x10] sm:$0xff]
  %v918 = vld [vmem:[%s914 + $0x18] sm:$0xff]
  %v919 = vld [vmem:[%s914 + $0x20] sm:$0xff]
  %v920 = vld [vmem:[%s914 + $0x28] sm:$0xff]
  %v921 = vld [vmem:[%s914 + $0x30] sm:$0xff]
  %v922 = vld [vmem:[%s914 + $0x38] sm:$0xff]
  %v923 = vld [vmem:[%s914 + $0x40] sm:$0xff]
  %v924 = vld [vmem:[%s914 + $0x48] sm:$0xff]
  %v925 = vld [vmem:[%s914 + $0x50] sm:$0xff]
  %v926 = vld [vmem:[%s914 + $0x58] sm:$0xff]
  %v927 = vld [vmem:[%s914 + $0x60] sm:$0xff]
  %v928 = vld [vmem:[%s914 + $0x68] sm:$0xff]
  %v929 = vld [vmem:[%s914 + $0x70] sm:$0xff]
  %v930 = vld [vmem:[%s914 + $0x78] sm:$0xff]
  %v932 = vsel %vm393, %v915, 0
  %v935 = vsel %vm393, %v916, 0
  %v938 = vsel %vm393, %v917, 0
  %v941 = vsel %vm393, %v918, 0
  %v944 = vsel %vm393, %v919, 0
  %v947 = vsel %vm393, %v920, 0
  %v950 = vsel %vm393, %v921, 0
  %v953 = vsel %vm393, %v922, 0
  %v956 = vsel %vm393, %v923, 0
  %v959 = vsel %vm393, %v924, 0
  %v962 = vsel %vm393, %v925, 0
  %v965 = vsel %vm393, %v926, 0
  %v968 = vsel %vm393, %v927, 0
  %v971 = vsel %vm393, %v928, 0
  %v974 = vsel %vm393, %v929, 0
  %v977 = vsel %vm393, %v930, 0
  %979 = vmatprep.subr.mxu0 0.0
  %980 = vmatpush1.msra.mxu0 0.0
  %981 = vmatprep.subr.mxu0 0.0
  %982 = vmatpush1.msra.mxu0 0.0
  %983 = vmatprep.subr.mxu0 0.0
  %984 = vmatpush1.msra.mxu0 0.0
  %985 = vmatprep.subr.mxu0 0.0
  %986 = vmatpush1.msra.mxu0 0.0
  %987 = vmatprep.subr.mxu0 0.0
  %988 = vmatpush1.msra.mxu0 %v911
  %989 = vmatprep.subr.mxu0 0.0
  %990 = vmatpush1.msra.mxu0 %v906
  %991 = vmatprep.subr.mxu0 0.0
  %992 = vmatpush1.msra.mxu0 %v901
  %993 = vmatprep.subr.mxu0 0.0
  %994 = vmatpush1.msra.mxu0 %v896
  %995 = vmatprep.subr.mxu0 0.0
  %996 = vmatpush1.msra.mxu0 %v891
  %997 = vmatprep.subr.mxu0 0.0
  %998 = vmatpush1.msra.mxu0 %v886
  %999 = vmatprep.subr.mxu0 0.0
  %1000 = vmatpush1.msra.mxu0 %v881
  %1001 = vmatprep.subr.mxu0 0.0
  %1002 = vmatpush1.msra.mxu0 %v876
  %1003 = vmatprep.subr.mxu0 0.0
  %1004 = vmatpush1.msra.mxu0 %v871
  %1005 = vmatprep.subr.mxu0 0.0
  %1006 = vmatpush1.msra.mxu0 %v866
  %1007 = vmatprep.subr.mxu0 0.0
  %1008 = vmatpush1.msra.mxu0 %v861
  %1009 = vmatprep.subr.mxu0 0.0
  %1010 = vmatpush1.msra.mxu0 %v856
  %1011 = vmatprep.subr.mxu0 0.0
  %1012 = vmatpush2.msra.mxu0 0.0
  %1013 = vmatprep.subr.mxu0 0.0
  %1014 = vmatpush2.msra.mxu0 0.0
  %1015 = vmatprep.subr.mxu0 0.0
  %1016 = vmatpush2.msra.mxu0 0.0
  %1017 = vmatprep.subr.mxu0 0.0
  %1018 = vmatpush2.msra.mxu0 0.0
  %1019 = vmatprep.subr.mxu0 0.0
  %1020 = vmatpush2.msra.mxu0 0.0
  %1021 = vmatprep.subr.mxu0 0.0
  %1022 = vmatpush2.msra.mxu0 0.0
  %1023 = vmatprep.subr.mxu0 0.0
  %1024 = vmatpush2.msra.mxu0 0.0
  %1025 = vmatprep.subr.mxu0 0.0
  %1026 = vmatpush2.msra.mxu0 0.0
  %1027 = vmatprep.subr.mxu0 0.0
  %1028 = vmatpush2.msra.mxu0 0.0
  %1029 = vmatprep.subr.mxu0 0.0
  %1030 = vmatpush2.msra.mxu0 0.0
  %1031 = vmatprep.subr.mxu0 0.0
  %1032 = vmatpush2.msra.mxu0 0.0
  %1033 = vmatprep.subr.mxu0 0.0
  %1034 = vmatpush2.msra.mxu0 0.0
  %1035 = vmatprep.subr.mxu0 0.0
  %1036 = vmatpush2.msra.mxu0 0.0
  %1037 = vmatprep.subr.mxu0 0.0
  %1038 = vmatpush2.msra.mxu0 0.0
  %1039 = vmatprep.subr.mxu0 0.0
  %1040 = vmatpush2.msra.mxu0 0.0
  %1041 = vmatprep.subr.mxu0 0.0
  %1042 = vmatpush2.msra.mxu0 0.0
  %1043 = vmatprep.mubr.f32.mxu0 0.0
  %1044 = vmatmul.mubr.f32.gmra.mxu0 %v932
  %v1045 = vpop.f32.mrf.mxu0
  %v1046 = vadd.f32 0.0, %v1045
  %v1047 = vpop.f32.mrf.mxu0
  %1048 = vmatprep.mubr.f32.mxu0 0.0
  %1049 = vmatmul.mubr.f32.gmra.mxu0 %v935
  %v1050 = vpop.f32.mrf.mxu0
  %v1051 = vadd.f32 0.0, %v1050
  %v1052 = vpop.f32.mrf.mxu0
  %1053 = vmatprep.mubr.f32.mxu0 0.0
  %1054 = vmatmul.mubr.f32.gmra.mxu0 %v938
  %v1055 = vpop.f32.mrf.mxu0
  %v1056 = vadd.f32 0.0, %v1055
  %v1057 = vpop.f32.mrf.mxu0
  %1058 = vmatprep.mubr.f32.mxu0 0.0
  %1059 = vmatmul.mubr.f32.gmra.mxu0 %v941
  %v1060 = vpop.f32.mrf.mxu0
  %v1061 = vadd.f32 0.0, %v1060
  %v1062 = vpop.f32.mrf.mxu0
  %1063 = vmatprep.mubr.f32.mxu0 0.0
  %1064 = vmatmul.mubr.f32.gmra.mxu0 %v944
  %v1065 = vpop.f32.mrf.mxu0
  %v1066 = vadd.f32 0.0, %v1065
  %v1067 = vpop.f32.mrf.mxu0
  %1068 = vmatprep.mubr.f32.mxu0 0.0
  %1069 = vmatmul.mubr.f32.gmra.mxu0 %v947
  %v1070 = vpop.f32.mrf.mxu0
  %v1071 = vadd.f32 0.0, %v1070
  %v1072 = vpop.f32.mrf.mxu0
  %1073 = vmatprep.mubr.f32.mxu0 0.0
  %1074 = vmatmul.mubr.f32.gmra.mxu0 %v950
  %v1075 = vpop.f32.mrf.mxu0
  %v1076 = vadd.f32 0.0, %v1075
  %v1077 = vpop.f32.mrf.mxu0
  %1078 = vmatprep.mubr.f32.mxu0 0.0
  %1079 = vmatmul.mubr.f32.gmra.mxu0 %v953
  %v1080 = vpop.f32.mrf.mxu0
  %v1081 = vadd.f32 0.0, %v1080
  %v1082 = vpop.f32.mrf.mxu0
  %1083 = vmatprep.mubr.f32.mxu0 0.0
  %1084 = vmatmul.mubr.f32.gmra.mxu0 %v956
  %v1085 = vpop.f32.mrf.mxu0
  %v1086 = vadd.f32 0.0, %v1085
  %v1087 = vpop.f32.mrf.mxu0
  %1088 = vmatprep.mubr.f32.mxu0 0.0
  %1089 = vmatmul.mubr.f32.gmra.mxu0 %v959
  %v1090 = vpop.f32.mrf.mxu0
  %v1091 = vadd.f32 0.0, %v1090
  %v1092 = vpop.f32.mrf.mxu0
  %1093 = vmatprep.mubr.f32.mxu0 0.0
  %1094 = vmatmul.mubr.f32.gmra.mxu0 %v962
  %v1095 = vpop.f32.mrf.mxu0
  %v1096 = vadd.f32 0.0, %v1095
  %v1097 = vpop.f32.mrf.mxu0
  %1098 = vmatprep.mubr.f32.mxu0 0.0
  %1099 = vmatmul.mubr.f32.gmra.mxu0 %v965
  %v1100 = vpop.f32.mrf.mxu0
  %v1101 = vadd.f32 0.0, %v1100
  %v1102 = vpop.f32.mrf.mxu0
  %1103 = vmatprep.mubr.f32.mxu0 0.0
  %1104 = vmatmul.mubr.f32.gmra.mxu0 %v968
  %v1105 = vpop.f32.mrf.mxu0
  %v1106 = vadd.f32 0.0, %v1105
  %v1107 = vpop.f32.mrf.mxu0
  %1108 = vmatprep.mubr.f32.mxu0 0.0
  %1109 = vmatmul.mubr.f32.gmra.mxu0 %v971
  %v1110 = vpop.f32.mrf.mxu0
  %v1111 = vadd.f32 0.0, %v1110
  %v1112 = vpop.f32.mrf.mxu0
  %1113 = vmatprep.mubr.f32.mxu0 0.0
  %1114 = vmatmul.mubr.f32.gmra.mxu0 %v974
  %v1115 = vpop.f32.mrf.mxu0
  %v1116 = vadd.f32 0.0, %v1115
  %v1117 = vpop.f32.mrf.mxu0
  %1118 = vmatprep.mubr.f32.mxu0 0.0
  %1119 = vmatmul.mubr.f32.gmra.mxu0 %v977
  %v1120 = vpop.f32.mrf.mxu0
  %v1121 = vadd.f32 0.0, %v1120
  %v1122 = vpop.f32.mrf.mxu0
  %1123 = vdwg.mxu0
  %v1124 = vadd.f32 %v702, %v1046
  %v1125 = vadd.f32 %v707, %v1051
  %v1126 = vadd.f32 %v712, %v1056
  %v1127 = vadd.f32 %v717, %v1061
  %v1128 = vadd.f32 %v722, %v1066
  %v1129 = vadd.f32 %v727, %v1071
  %v1130 = vadd.f32 %v732, %v1076
  %v1131 = vadd.f32 %v737, %v1081
  %v1132 = vadd.f32 %v742, %v1086
  %v1133 = vadd.f32 %v747, %v1091
  %v1134 = vadd.f32 %v752, %v1096
  %v1135 = vadd.f32 %v757, %v1101
  %v1136 = vadd.f32 %v762, %v1106
  %v1137 = vadd.f32 %v767, %v1111
  %v1138 = vadd.f32 %v772, %v1116
  %v1139 = vadd.f32 %v777, %v1121
  %v1140 = vld [vmem:[%s3] sm:$0xff]
  %v1141 = vld [vmem:[%s3 + $0x8] sm:$0xff]
  %v1142 = vld [vmem:[%s3 + $0x10] sm:$0xff]
  %v1143 = vld [vmem:[%s3 + $0x18] sm:$0xff]
  %v1144 = vld [vmem:[%s3 + $0x20] sm:$0xff]
  %v1145 = vld [vmem:[%s3 + $0x28] sm:$0xff]
  %v1146 = vld [vmem:[%s3 + $0x30] sm:$0xff]
  %v1147 = vld [vmem:[%s3 + $0x38] sm:$0xff]
  %v1148 = vld [vmem:[%s3 + $0x40] sm:$0xff]
  %v1149 = vld [vmem:[%s3 + $0x48] sm:$0xff]
  %v1150 = vld [vmem:[%s3 + $0x50] sm:$0xff]
  %v1151 = vld [vmem:[%s3 + $0x58] sm:$0xff]
  %v1152 = vld [vmem:[%s3 + $0x60] sm:$0xff]
  %v1153 = vld [vmem:[%s3 + $0x68] sm:$0xff]
  %v1154 = vld [vmem:[%s3 + $0x70] sm:$0xff]
  %v1155 = vld [vmem:[%s3 + $0x78] sm:$0xff]
  %1157 = vset.pattern.permute.xlu0 0
  %1158 = vperm.xlu0 %1157, %v1140
  %v1159 = vpop.permute.xlu0 %1158
  %1162 = vset.pattern.permute.xlu0 0
  %1163 = vperm.xlu0 %1162, %v1141
  %v1164 = vpop.permute.xlu0 %1163
  %1167 = vset.pattern.permute.xlu0 0
  %1168 = vperm.xlu0 %1167, %v1142
  %v1169 = vpop.permute.xlu0 %1168
  %1172 = vset.pattern.permute.xlu0 0
  %1173 = vperm.xlu0 %1172, %v1143
  %v1174 = vpop.permute.xlu0 %1173
  %1177 = vset.pattern.permute.xlu0 0
  %1178 = vperm.xlu0 %1177, %v1144
  %v1179 = vpop.permute.xlu0 %1178
  %1182 = vset.pattern.permute.xlu0 0
  %1183 = vperm.xlu0 %1182, %v1145
  %v1184 = vpop.permute.xlu0 %1183
  %1187 = vset.pattern.permute.xlu0 0
  %1188 = vperm.xlu0 %1187, %v1146
  %v1189 = vpop.permute.xlu0 %1188
  %1192 = vset.pattern.permute.xlu0 0
  %1193 = vperm.xlu0 %1192, %v1147
  %v1194 = vpop.permute.xlu0 %1193
  %1197 = vset.pattern.permute.xlu0 0
  %1198 = vperm.xlu0 %1197, %v1148
  %v1199 = vpop.permute.xlu0 %1198
  %1202 = vset.pattern.permute.xlu0 0
  %1203 = vperm.xlu0 %1202, %v1149
  %v1204 = vpop.permute.xlu0 %1203
  %1207 = vset.pattern.permute.xlu0 0
  %1208 = vperm.xlu0 %1207, %v1150
  %v1209 = vpop.permute.xlu0 %1208
  %1212 = vset.pattern.permute.xlu0 0
  %1213 = vperm.xlu0 %1212, %v1151
  %v1214 = vpop.permute.xlu0 %1213
  %1217 = vset.pattern.permute.xlu0 0
  %1218 = vperm.xlu0 %1217, %v1152
  %v1219 = vpop.permute.xlu0 %1218
  %1222 = vset.pattern.permute.xlu0 0
  %1223 = vperm.xlu0 %1222, %v1153
  %v1224 = vpop.permute.xlu0 %1223
  %1227 = vset.pattern.permute.xlu0 0
  %1228 = vperm.xlu0 %1227, %v1154
  %v1229 = vpop.permute.xlu0 %1228
  %1232 = vset.pattern.permute.xlu0 0
  %1233 = vperm.xlu0 %1232, %v1155
  %v1234 = vpop.permute.xlu0 %1233
  %v1236 = vadd.f32 %v1124, %v1159
  %v1237 = vadd.f32 %v1125, %v1164
  %v1238 = vadd.f32 %v1126, %v1169
  %v1239 = vadd.f32 %v1127, %v1174
  %v1240 = vadd.f32 %v1128, %v1179
  %v1241 = vadd.f32 %v1129, %v1184
  %v1242 = vadd.f32 %v1130, %v1189
  %v1243 = vadd.f32 %v1131, %v1194
  %v1244 = vadd.f32 %v1132, %v1199
  %v1245 = vadd.f32 %v1133, %v1204
  %v1246 = vadd.f32 %v1134, %v1209
  %v1247 = vadd.f32 %v1135, %v1214
  %v1248 = vadd.f32 %v1136, %v1219
  %v1249 = vadd.f32 %v1137, %v1224
  %v1250 = vadd.f32 %v1138, %v1229
  %v1251 = vadd.f32 %v1139, %v1234
  %v1252 = vmax.f32 %v1236, 0.0
  %v1253 = vmax.f32 %v1237, 0.0
  %v1254 = vmax.f32 %v1238, 0.0
  %v1255 = vmax.f32 %v1239, 0.0
  %v1256 = vmax.f32 %v1240, 0.0
  %v1257 = vmax.f32 %v1241, 0.0
  %v1258 = vmax.f32 %v1242, 0.0
  %v1259 = vmax.f32 %v1243, 0.0
  %v1260 = vmax.f32 %v1244, 0.0
  %v1261 = vmax.f32 %v1245, 0.0
  %v1262 = vmax.f32 %v1246, 0.0
  %v1263 = vmax.f32 %v1247, 0.0
  %v1264 = vmax.f32 %v1248, 0.0
  %v1265 = vmax.f32 %v1249, 0.0
  %v1266 = vmax.f32 %v1250, 0.0
  %v1267 = vmax.f32 %v1251, 0.0
  %v1268 = vld [vmem:[%s5] sm:$0xff]
  %v1269 = vld [vmem:[%s5 + $0x8] sm:$0xff]
  %v1270 = vld [vmem:[%s5 + $0x10] sm:$0xff]
  %v1271 = vld [vmem:[%s5 + $0x18] sm:$0xff]
  %vm1272 = vcmask 261120
  %v1274 = vsel %vm1272, %v1252, 0
  %v1277 = vsel %vm1272, %v1253, 0
  %v1280 = vsel %vm1272, %v1254, 0
  %v1283 = vsel %vm1272, %v1255, 0
  %v1286 = vsel %vm1272, %v1256, 0
  %v1289 = vsel %vm1272, %v1257, 0
  %v1292 = vsel %vm1272, %v1258, 0
  %v1295 = vsel %vm1272, %v1259, 0
  %v1298 = vsel %vm1272, %v1260, 0
  %v1301 = vsel %vm1272, %v1261, 0
  %v1304 = vsel %vm1272, %v1262, 0
  %v1307 = vsel %vm1272, %v1263, 0
  %v1310 = vsel %vm1272, %v1264, 0
  %v1313 = vsel %vm1272, %v1265, 0
  %v1316 = vsel %vm1272, %v1266, 0
  %v1319 = vsel %vm1272, %v1267, 0
  %1321 = vmatprep.subr.mxu0 0.0
  %1322 = vmatpush1.msra.mxu0 0.0
  %1323 = vmatprep.subr.mxu0 0.0
  %1324 = vmatpush1.msra.mxu0 0.0
  %1325 = vmatprep.subr.mxu0 0.0
  %1326 = vmatpush1.msra.mxu0 0.0
  %1327 = vmatprep.subr.mxu0 0.0
  %1328 = vmatpush1.msra.mxu0 0.0
  %1329 = vmatprep.subr.mxu0 0.0
  %1330 = vmatpush1.msra.mxu0 0.0
  %1331 = vmatprep.subr.mxu0 0.0
  %1332 = vmatpush1.msra.mxu0 0.0
  %1333 = vmatprep.subr.mxu0 0.0
  %1334 = vmatpush1.msra.mxu0 0.0
  %1335 = vmatprep.subr.mxu0 0.0
  %1336 = vmatpush1.msra.mxu0 0.0
  %1337 = vmatprep.subr.mxu0 0.0
  %1338 = vmatpush1.msra.mxu0 0.0
  %1339 = vmatprep.subr.mxu0 0.0
  %1340 = vmatpush1.msra.mxu0 0.0
  %1341 = vmatprep.subr.mxu0 0.0
  %1342 = vmatpush1.msra.mxu0 0.0
  %1343 = vmatprep.subr.mxu0 0.0
  %1344 = vmatpush1.msra.mxu0 0.0
  %1345 = vmatprep.subr.mxu0 0.0
  %1346 = vmatpush1.msra.mxu0 %v1271
  %1347 = vmatprep.subr.mxu0 0.0
  %1348 = vmatpush1.msra.mxu0 %v1270
  %1349 = vmatprep.subr.mxu0 0.0
  %1350 = vmatpush1.msra.mxu0 %v1269
  %1351 = vmatprep.subr.mxu0 0.0
  %1352 = vmatpush1.msra.mxu0 %v1268
  %1353 = vmatprep.subr.mxu0 0.0
  %1354 = vmatpush2.msra.mxu0 0.0
  %1355 = vmatprep.subr.mxu0 0.0
  %1356 = vmatpush2.msra.mxu0 0.0
  %1357 = vmatprep.subr.mxu0 0.0
  %1358 = vmatpush2.msra.mxu0 0.0
  %1359 = vmatprep.subr.mxu0 0.0
  %1360 = vmatpush2.msra.mxu0 0.0
  %1361 = vmatprep.subr.mxu0 0.0
  %1362 = vmatpush2.msra.mxu0 0.0
  %1363 = vmatprep.subr.mxu0 0.0
  %1364 = vmatpush2.msra.mxu0 0.0
  %1365 = vmatprep.subr.mxu0 0.0
  %1366 = vmatpush2.msra.mxu0 0.0
  %1367 = vmatprep.subr.mxu0 0.0
  %1368 = vmatpush2.msra.mxu0 0.0
  %1369 = vmatprep.subr.mxu0 0.0
  %1370 = vmatpush2.msra.mxu0 0.0
  %1371 = vmatprep.subr.mxu0 0.0
  %1372 = vmatpush2.msra.mxu0 0.0
  %1373 = vmatprep.subr.mxu0 0.0
  %1374 = vmatpush2.msra.mxu0 0.0
  %1375 = vmatprep.subr.mxu0 0.0
  %1376 = vmatpush2.msra.mxu0 0.0
  %1377 = vmatprep.subr.mxu0 0.0
  %1378 = vmatpush2.msra.mxu0 0.0
  %1379 = vmatprep.subr.mxu0 0.0
  %1380 = vmatpush2.msra.mxu0 0.0
  %1381 = vmatprep.subr.mxu0 0.0
  %1382 = vmatpush2.msra.mxu0 0.0
  %1383 = vmatprep.subr.mxu0 0.0
  %1384 = vmatpush2.msra.mxu0 0.0
  %1385 = vmatprep.mubr.f32.mxu0 0.0
  %1386 = vmatmul.mubr.f32.gmra.mxu0 %v1274
  %v1387 = vpop.f32.mrf.mxu0
  %v1388 = vadd.f32 0.0, %v1387
  %v1389 = vpop.f32.mrf.mxu0
  %1390 = vmatprep.mubr.f32.mxu0 0.0
  %1391 = vmatmul.mubr.f32.gmra.mxu0 %v1277
  %v1392 = vpop.f32.mrf.mxu0
  %v1393 = vadd.f32 0.0, %v1392
  %v1394 = vpop.f32.mrf.mxu0
  %1395 = vmatprep.mubr.f32.mxu0 0.0
  %1396 = vmatmul.mubr.f32.gmra.mxu0 %v1280
  %v1397 = vpop.f32.mrf.mxu0
  %v1398 = vadd.f32 0.0, %v1397
  %v1399 = vpop.f32.mrf.mxu0
  %1400 = vmatprep.mubr.f32.mxu0 0.0
  %1401 = vmatmul.mubr.f32.gmra.mxu0 %v1283
  %v1402 = vpop.f32.mrf.mxu0
  %v1403 = vadd.f32 0.0, %v1402
  %v1404 = vpop.f32.mrf.mxu0
  %1405 = vmatprep.mubr.f32.mxu0 0.0
  %1406 = vmatmul.mubr.f32.gmra.mxu0 %v1286
  %v1407 = vpop.f32.mrf.mxu0
  %v1408 = vadd.f32 0.0, %v1407
  %v1409 = vpop.f32.mrf.mxu0
  %1410 = vmatprep.mubr.f32.mxu0 0.0
  %1411 = vmatmul.mubr.f32.gmra.mxu0 %v1289
  %v1412 = vpop.f32.mrf.mxu0
  %v1413 = vadd.f32 0.0, %v1412
  %v1414 = vpop.f32.mrf.mxu0
  %1415 = vmatprep.mubr.f32.mxu0 0.0
  %1416 = vmatmul.mubr.f32.gmra.mxu0 %v1292
  %v1417 = vpop.f32.mrf.mxu0
  %v1418 = vadd.f32 0.0, %v1417
  %v1419 = vpop.f32.mrf.mxu0
  %1420 = vmatprep.mubr.f32.mxu0 0.0
  %1421 = vmatmul.mubr.f32.gmra.mxu0 %v1295
  %v1422 = vpop.f32.mrf.mxu0
  %v1423 = vadd.f32 0.0, %v1422
  %v1424 = vpop.f32.mrf.mxu0
  %1425 = vmatprep.mubr.f32.mxu0 0.0
  %1426 = vmatmul.mubr.f32.gmra.mxu0 %v1298
  %v1427 = vpop.f32.mrf.mxu0
  %v1428 = vadd.f32 0.0, %v1427
  %v1429 = vpop.f32.mrf.mxu0
  %1430 = vmatprep.mubr.f32.mxu0 0.0
  %1431 = vmatmul.mubr.f32.gmra.mxu0 %v1301
  %v1432 = vpop.f32.mrf.mxu0
  %v1433 = vadd.f32 0.0, %v1432
  %v1434 = vpop.f32.mrf.mxu0
  %1435 = vmatprep.mubr.f32.mxu0 0.0
  %1436 = vmatmul.mubr.f32.gmra.mxu0 %v1304
  %v1437 = vpop.f32.mrf.mxu0
  %v1438 = vadd.f32 0.0, %v1437
  %v1439 = vpop.f32.mrf.mxu0
  %1440 = vmatprep.mubr.f32.mxu0 0.0
  %1441 = vmatmul.mubr.f32.gmra.mxu0 %v1307
  %v1442 = vpop.f32.mrf.mxu0
  %v1443 = vadd.f32 0.0, %v1442
  %v1444 = vpop.f32.mrf.mxu0
  %1445 = vmatprep.mubr.f32.mxu0 0.0
  %1446 = vmatmul.mubr.f32.gmra.mxu0 %v1310
  %v1447 = vpop.f32.mrf.mxu0
  %v1448 = vadd.f32 0.0, %v1447
  %v1449 = vpop.f32.mrf.mxu0
  %1450 = vmatprep.mubr.f32.mxu0 0.0
  %1451 = vmatmul.mubr.f32.gmra.mxu0 %v1313
  %v1452 = vpop.f32.mrf.mxu0
  %v1453 = vadd.f32 0.0, %v1452
  %v1454 = vpop.f32.mrf.mxu0
  %1455 = vmatprep.mubr.f32.mxu0 0.0
  %1456 = vmatmul.mubr.f32.gmra.mxu0 %v1316
  %v1457 = vpop.f32.mrf.mxu0
  %v1458 = vadd.f32 0.0, %v1457
  %v1459 = vpop.f32.mrf.mxu0
  %1460 = vmatprep.mubr.f32.mxu0 0.0
  %1461 = vmatmul.mubr.f32.gmra.mxu0 %v1319
  %v1462 = vpop.f32.mrf.mxu0
  %v1463 = vadd.f32 0.0, %v1462
  %v1464 = vpop.f32.mrf.mxu0
  %1465 = vdwg.mxu0
  %v1466 = vld [vmem:[%s4] sm:$0xff]
  %v1467 = vld [vmem:[%s4 + $0x8] sm:$0xff]
  %v1468 = vld [vmem:[%s4 + $0x10] sm:$0xff]
  %v1469 = vld [vmem:[%s4 + $0x18] sm:$0xff]
  %v1470 = vld [vmem:[%s4 + $0x20] sm:$0xff]
  %v1471 = vld [vmem:[%s4 + $0x28] sm:$0xff]
  %v1472 = vld [vmem:[%s4 + $0x30] sm:$0xff]
  %v1473 = vld [vmem:[%s4 + $0x38] sm:$0xff]
  %v1474 = vld [vmem:[%s4 + $0x40] sm:$0xff]
  %v1475 = vld [vmem:[%s4 + $0x48] sm:$0xff]
  %v1476 = vld [vmem:[%s4 + $0x50] sm:$0xff]
  %v1477 = vld [vmem:[%s4 + $0x58] sm:$0xff]
  %v1478 = vld [vmem:[%s4 + $0x60] sm:$0xff]
  %v1479 = vld [vmem:[%s4 + $0x68] sm:$0xff]
  %v1480 = vld [vmem:[%s4 + $0x70] sm:$0xff]
  %v1481 = vld [vmem:[%s4 + $0x78] sm:$0xff]
  %s1482 = scalar_lea.vmem %s5, 32
  %v1483 = vld [vmem:[%s1482] sm:$0xff]
  %v1484 = vld [vmem:[%s1482 + $0x8] sm:$0xff]
  %v1485 = vld [vmem:[%s1482 + $0x10] sm:$0xff]
  %v1486 = vld [vmem:[%s1482 + $0x18] sm:$0xff]
  %1487 = vmatprep.subr.mxu0 0.0
  %1488 = vmatpush1.msra.mxu0 0.0
  %1489 = vmatprep.subr.mxu0 0.0
  %1490 = vmatpush1.msra.mxu0 0.0
  %1491 = vmatprep.subr.mxu0 0.0
  %1492 = vmatpush1.msra.mxu0 0.0
  %1493 = vmatprep.subr.mxu0 0.0
  %1494 = vmatpush1.msra.mxu0 0.0
  %1495 = vmatprep.subr.mxu0 0.0
  %1496 = vmatpush1.msra.mxu0 0.0
  %1497 = vmatprep.subr.mxu0 0.0
  %1498 = vmatpush1.msra.mxu0 0.0
  %1499 = vmatprep.subr.mxu0 0.0
  %1500 = vmatpush1.msra.mxu0 0.0
  %1501 = vmatprep.subr.mxu0 0.0
  %1502 = vmatpush1.msra.mxu0 0.0
  %1503 = vmatprep.subr.mxu0 0.0
  %1504 = vmatpush1.msra.mxu0 0.0
  %1505 = vmatprep.subr.mxu0 0.0
  %1506 = vmatpush1.msra.mxu0 0.0
  %1507 = vmatprep.subr.mxu0 0.0
  %1508 = vmatpush1.msra.mxu0 0.0
  %1509 = vmatprep.subr.mxu0 0.0
  %1510 = vmatpush1.msra.mxu0 0.0
  %1511 = vmatprep.subr.mxu0 0.0
  %1512 = vmatpush1.msra.mxu0 %v1486
  %1513 = vmatprep.subr.mxu0 0.0
  %1514 = vmatpush1.msra.mxu0 %v1485
  %1515 = vmatprep.subr.mxu0 0.0
  %1516 = vmatpush1.msra.mxu0 %v1484
  %1517 = vmatprep.subr.mxu0 0.0
  %1518 = vmatpush1.msra.mxu0 %v1483
  %1519 = vmatprep.subr.mxu0 0.0
  %1520 = vmatpush2.msra.mxu0 0.0
  %1521 = vmatprep.subr.mxu0 0.0
  %1522 = vmatpush2.msra.mxu0 0.0
  %1523 = vmatprep.subr.mxu0 0.0
  %1524 = vmatpush2.msra.mxu0 0.0
  %1525 = vmatprep.subr.mxu0 0.0
  %1526 = vmatpush2.msra.mxu0 0.0
  %1527 = vmatprep.subr.mxu0 0.0
  %1528 = vmatpush2.msra.mxu0 0.0
  %1529 = vmatprep.subr.mxu0 0.0
  %1530 = vmatpush2.msra.mxu0 0.0
  %1531 = vmatprep.subr.mxu0 0.0
  %1532 = vmatpush2.msra.mxu0 0.0
  %1533 = vmatprep.subr.mxu0 0.0
  %1534 = vmatpush2.msra.mxu0 0.0
  %1535 = vmatprep.subr.mxu0 0.0
  %1536 = vmatpush2.msra.mxu0 0.0
  %1537 = vmatprep.subr.mxu0 0.0
  %1538 = vmatpush2.msra.mxu0 0.0
  %1539 = vmatprep.subr.mxu0 0.0
  %1540 = vmatpush2.msra.mxu0 0.0
  %1541 = vmatprep.subr.mxu0 0.0
  %1542 = vmatpush2.msra.mxu0 0.0
  %1543 = vmatprep.subr.mxu0 0.0
  %1544 = vmatpush2.msra.mxu0 0.0
  %1545 = vmatprep.subr.mxu0 0.0
  %1546 = vmatpush2.msra.mxu0 0.0
  %1547 = vmatprep.subr.mxu0 0.0
  %1548 = vmatpush2.msra.mxu0 0.0
  %1549 = vmatprep.subr.mxu0 0.0
  %1550 = vmatpush2.msra.mxu0 0.0
  %1551 = vmatprep.mubr.f32.mxu0 0.0
  %1552 = vmatmul.mubr.f32.gmra.mxu0 %v1274
  %v1553 = vpop.f32.mrf.mxu0
  %v1554 = vadd.f32 0.0, %v1553
  %v1555 = vpop.f32.mrf.mxu0
  %1556 = vmatprep.mubr.f32.mxu0 0.0
  %1557 = vmatmul.mubr.f32.gmra.mxu0 %v1277
  %v1558 = vpop.f32.mrf.mxu0
  %v1559 = vadd.f32 0.0, %v1558
  %v1560 = vpop.f32.mrf.mxu0
  %1561 = vmatprep.mubr.f32.mxu0 0.0
  %1562 = vmatmul.mubr.f32.gmra.mxu0 %v1280
  %v1563 = vpop.f32.mrf.mxu0
  %v1564 = vadd.f32 0.0, %v1563
  %v1565 = vpop.f32.mrf.mxu0
  %1566 = vmatprep.mubr.f32.mxu0 0.0
  %1567 = vmatmul.mubr.f32.gmra.mxu0 %v1283
  %v1568 = vpop.f32.mrf.mxu0
  %v1569 = vadd.f32 0.0, %v1568
  %v1570 = vpop.f32.mrf.mxu0
  %1571 = vmatprep.mubr.f32.mxu0 0.0
  %1572 = vmatmul.mubr.f32.gmra.mxu0 %v1286
  %v1573 = vpop.f32.mrf.mxu0
  %v1574 = vadd.f32 0.0, %v1573
  %v1575 = vpop.f32.mrf.mxu0
  %1576 = vmatprep.mubr.f32.mxu0 0.0
  %1577 = vmatmul.mubr.f32.gmra.mxu0 %v1289
  %v1578 = vpop.f32.mrf.mxu0
  %v1579 = vadd.f32 0.0, %v1578
  %v1580 = vpop.f32.mrf.mxu0
  %1581 = vmatprep.mubr.f32.mxu0 0.0
  %1582 = vmatmul.mubr.f32.gmra.mxu0 %v1292
  %v1583 = vpop.f32.mrf.mxu0
  %v1584 = vadd.f32 0.0, %v1583
  %v1585 = vpop.f32.mrf.mxu0
  %1586 = vmatprep.mubr.f32.mxu0 0.0
  %1587 = vmatmul.mubr.f32.gmra.mxu0 %v1295
  %v1588 = vpop.f32.mrf.mxu0
  %v1589 = vadd.f32 0.0, %v1588
  %v1590 = vpop.f32.mrf.mxu0
  %1591 = vmatprep.mubr.f32.mxu0 0.0
  %1592 = vmatmul.mubr.f32.gmra.mxu0 %v1298
  %v1593 = vpop.f32.mrf.mxu0
  %v1594 = vadd.f32 0.0, %v1593
  %v1595 = vpop.f32.mrf.mxu0
  %1596 = vmatprep.mubr.f32.mxu0 0.0
  %1597 = vmatmul.mubr.f32.gmra.mxu0 %v1301
  %v1598 = vpop.f32.mrf.mxu0
  %v1599 = vadd.f32 0.0, %v1598
  %v1600 = vpop.f32.mrf.mxu0
  %1601 = vmatprep.mubr.f32.mxu0 0.0
  %1602 = vmatmul.mubr.f32.gmra.mxu0 %v1304
  %v1603 = vpop.f32.mrf.mxu0
  %v1604 = vadd.f32 0.0, %v1603
  %v1605 = vpop.f32.mrf.mxu0
  %1606 = vmatprep.mubr.f32.mxu0 0.0
  %1607 = vmatmul.mubr.f32.gmra.mxu0 %v1307
  %v1608 = vpop.f32.mrf.mxu0
  %v1609 = vadd.f32 0.0, %v1608
  %v1610 = vpop.f32.mrf.mxu0
  %1611 = vmatprep.mubr.f32.mxu0 0.0
  %1612 = vmatmul.mubr.f32.gmra.mxu0 %v1310
  %v1613 = vpop.f32.mrf.mxu0
  %v1614 = vadd.f32 0.0, %v1613
  %v1615 = vpop.f32.mrf.mxu0
  %1616 = vmatprep.mubr.f32.mxu0 0.0
  %1617 = vmatmul.mubr.f32.gmra.mxu0 %v1313
  %v1618 = vpop.f32.mrf.mxu0
  %v1619 = vadd.f32 0.0, %v1618
  %v1620 = vpop.f32.mrf.mxu0
  %1621 = vmatprep.mubr.f32.mxu0 0.0
  %1622 = vmatmul.mubr.f32.gmra.mxu0 %v1316
  %v1623 = vpop.f32.mrf.mxu0
  %v1624 = vadd.f32 0.0, %v1623
  %v1625 = vpop.f32.mrf.mxu0
  %1626 = vmatprep.mubr.f32.mxu0 0.0
  %1627 = vmatmul.mubr.f32.gmra.mxu0 %v1319
  %v1628 = vpop.f32.mrf.mxu0
  %v1629 = vadd.f32 0.0, %v1628
  %v1630 = vpop.f32.mrf.mxu0
  %1631 = vdwg.mxu0
  %s1632 = scalar_lea.vmem %s4, 128
  %v1633 = vld [vmem:[%s1632] sm:$0xff]
  %v1634 = vld [vmem:[%s1632 + $0x8] sm:$0xff]
  %v1635 = vld [vmem:[%s1632 + $0x10] sm:$0xff]
  %v1636 = vld [vmem:[%s1632 + $0x18] sm:$0xff]
  %v1637 = vld [vmem:[%s1632 + $0x20] sm:$0xff]
  %v1638 = vld [vmem:[%s1632 + $0x28] sm:$0xff]
  %v1639 = vld [vmem:[%s1632 + $0x30] sm:$0xff]
  %v1640 = vld [vmem:[%s1632 + $0x38] sm:$0xff]
  %v1641 = vld [vmem:[%s1632 + $0x40] sm:$0xff]
  %v1642 = vld [vmem:[%s1632 + $0x48] sm:$0xff]
  %v1643 = vld [vmem:[%s1632 + $0x50] sm:$0xff]
  %v1644 = vld [vmem:[%s1632 + $0x58] sm:$0xff]
  %v1645 = vld [vmem:[%s1632 + $0x60] sm:$0xff]
  %v1646 = vld [vmem:[%s1632 + $0x68] sm:$0xff]
  %v1647 = vld [vmem:[%s1632 + $0x70] sm:$0xff]
  %v1648 = vld [vmem:[%s1632 + $0x78] sm:$0xff]
  %1649 = vmatprep.subr.mxu0 0.0
  %1650 = vmatpush1.msra.mxu0 %v1629
  %1651 = vmatprep.subr.mxu0 0.0
  %1652 = vmatpush1.msra.mxu0 %v1624
  %1653 = vmatprep.subr.mxu0 0.0
  %1654 = vmatpush1.msra.mxu0 %v1619
  %1655 = vmatprep.subr.mxu0 0.0
  %1656 = vmatpush1.msra.mxu0 %v1614
  %1657 = vmatprep.subr.mxu0 0.0
  %1658 = vmatpush1.msra.mxu0 %v1609
  %1659 = vmatprep.subr.mxu0 0.0
  %1660 = vmatpush1.msra.mxu0 %v1604
  %1661 = vmatprep.subr.mxu0 0.0
  %1662 = vmatpush1.msra.mxu0 %v1599
  %1663 = vmatprep.subr.mxu0 0.0
  %1664 = vmatpush1.msra.mxu0 %v1594
  %1665 = vmatprep.subr.mxu0 0.0
  %1666 = vmatpush1.msra.mxu0 %v1589
  %1667 = vmatprep.subr.mxu0 0.0
  %1668 = vmatpush1.msra.mxu0 %v1584
  %1669 = vmatprep.subr.mxu0 0.0
  %1670 = vmatpush1.msra.mxu0 %v1579
  %1671 = vmatprep.subr.mxu0 0.0
  %1672 = vmatpush1.msra.mxu0 %v1574
  %1673 = vmatprep.subr.mxu0 0.0
  %1674 = vmatpush1.msra.mxu0 %v1569
  %1675 = vmatprep.subr.mxu0 0.0
  %1676 = vmatpush1.msra.mxu0 %v1564
  %1677 = vmatprep.subr.mxu0 0.0
  %1678 = vmatpush1.msra.mxu0 %v1559
  %1679 = vmatprep.subr.mxu0 0.0
  %1680 = vmatpush1.msra.mxu0 %v1554
  %1681 = vmatprep.subr.mxu0 0.0
  %1682 = vmatpush2.msra.mxu0 0.0
  %1683 = vmatprep.subr.mxu0 0.0
  %1684 = vmatpush2.msra.mxu0 0.0
  %1685 = vmatprep.subr.mxu0 0.0
  %1686 = vmatpush2.msra.mxu0 0.0
  %1687 = vmatprep.subr.mxu0 0.0
  %1688 = vmatpush2.msra.mxu0 0.0
  %1689 = vmatprep.subr.mxu0 0.0
  %1690 = vmatpush2.msra.mxu0 0.0
  %1691 = vmatprep.subr.mxu0 0.0
  %1692 = vmatpush2.msra.mxu0 0.0
  %1693 = vmatprep.subr.mxu0 0.0
  %1694 = vmatpush2.msra.mxu0 0.0
  %1695 = vmatprep.subr.mxu0 0.0
  %1696 = vmatpush2.msra.mxu0 0.0
  %1697 = vmatprep.subr.mxu0 0.0
  %1698 = vmatpush2.msra.mxu0 0.0
  %1699 = vmatprep.subr.mxu0 0.0
  %1700 = vmatpush2.msra.mxu0 0.0
  %1701 = vmatprep.subr.mxu0 0.0
  %1702 = vmatpush2.msra.mxu0 0.0
  %1703 = vmatprep.subr.mxu0 0.0
  %1704 = vmatpush2.msra.mxu0 0.0
  %1705 = vmatprep.subr.mxu0 0.0
  %1706 = vmatpush2.msra.mxu0 0.0
  %1707 = vmatprep.subr.mxu0 0.0
  %1708 = vmatpush2.msra.mxu0 0.0
  %1709 = vmatprep.subr.mxu0 0.0
  %1710 = vmatpush2.msra.mxu0 0.0
  %1711 = vmatprep.subr.mxu0 0.0
  %1712 = vmatpush2.msra.mxu0 0.0
  %1713 = vmatprep.mubr.f32.mxu0 0.0
  %1714 = vmatmul.mubr.f32.gmra.mxu0 %v1633
  %v1715 = vpop.f32.mrf.mxu0
  %v1716 = vadd.f32 0.0, %v1715
  %v1717 = vpop.f32.mrf.mxu0
  %1718 = vmatprep.mubr.f32.mxu0 0.0
  %1719 = vmatmul.mubr.f32.gmra.mxu0 %v1634
  %v1720 = vpop.f32.mrf.mxu0
  %v1721 = vadd.f32 0.0, %v1720
  %v1722 = vpop.f32.mrf.mxu0
  %1723 = vmatprep.mubr.f32.mxu0 0.0
  %1724 = vmatmul.mubr.f32.gmra.mxu0 %v1635
  %v1725 = vpop.f32.mrf.mxu0
  %v1726 = vadd.f32 0.0, %v1725
  %v1727 = vpop.f32.mrf.mxu0
  %1728 = vmatprep.mubr.f32.mxu0 0.0
  %1729 = vmatmul.mubr.f32.gmra.mxu0 %v1636
  %v1730 = vpop.f32.mrf.mxu0
  %v1731 = vadd.f32 0.0, %v1730
  %v1732 = vpop.f32.mrf.mxu0
  %1733 = vmatprep.mubr.f32.mxu0 0.0
  %1734 = vmatmul.mubr.f32.gmra.mxu0 %v1637
  %v1735 = vpop.f32.mrf.mxu0
  %v1736 = vadd.f32 0.0, %v1735
  %v1737 = vpop.f32.mrf.mxu0
  %1738 = vmatprep.mubr.f32.mxu0 0.0
  %1739 = vmatmul.mubr.f32.gmra.mxu0 %v1638
  %v1740 = vpop.f32.mrf.mxu0
  %v1741 = vadd.f32 0.0, %v1740
  %v1742 = vpop.f32.mrf.mxu0
  %1743 = vmatprep.mubr.f32.mxu0 0.0
  %1744 = vmatmul.mubr.f32.gmra.mxu0 %v1639
  %v1745 = vpop.f32.mrf.mxu0
  %v1746 = vadd.f32 0.0, %v1745
  %v1747 = vpop.f32.mrf.mxu0
  %1748 = vmatprep.mubr.f32.mxu0 0.0
  %1749 = vmatmul.mubr.f32.gmra.mxu0 %v1640
  %v1750 = vpop.f32.mrf.mxu0
  %v1751 = vadd.f32 0.0, %v1750
  %v1752 = vpop.f32.mrf.mxu0
  %1753 = vmatprep.mubr.f32.mxu0 0.0
  %1754 = vmatmul.mubr.f32.gmra.mxu0 %v1641
  %v1755 = vpop.f32.mrf.mxu0
  %v1756 = vadd.f32 0.0, %v1755
  %v1757 = vpop.f32.mrf.mxu0
  %1758 = vmatprep.mubr.f32.mxu0 0.0
  %1759 = vmatmul.mubr.f32.gmra.mxu0 %v1642
  %v1760 = vpop.f32.mrf.mxu0
  %v1761 = vadd.f32 0.0, %v1760
  %v1762 = vpop.f32.mrf.mxu0
  %1763 = vmatprep.mubr.f32.mxu0 0.0
  %1764 = vmatmul.mubr.f32.gmra.mxu0 %v1643
  %v1765 = vpop.f32.mrf.mxu0
  %v1766 = vadd.f32 0.0, %v1765
  %v1767 = vpop.f32.mrf.mxu0
  %1768 = vmatprep.mubr.f32.mxu0 0.0
  %1769 = vmatmul.mubr.f32.gmra.mxu0 %v1644
  %v1770 = vpop.f32.mrf.mxu0
  %v1771 = vadd.f32 0.0, %v1770
  %v1772 = vpop.f32.mrf.mxu0
  %1773 = vmatprep.mubr.f32.mxu0 0.0
  %1774 = vmatmul.mubr.f32.gmra.mxu0 %v1645
  %v1775 = vpop.f32.mrf.mxu0
  %v1776 = vadd.f32 0.0, %v1775
  %v1777 = vpop.f32.mrf.mxu0
  %1778 = vmatprep.mubr.f32.mxu0 0.0
  %1779 = vmatmul.mubr.f32.gmra.mxu0 %v1646
  %v1780 = vpop.f32.mrf.mxu0
  %v1781 = vadd.f32 0.0, %v1780
  %v1782 = vpop.f32.mrf.mxu0
  %1783 = vmatprep.mubr.f32.mxu0 0.0
  %1784 = vmatmul.mubr.f32.gmra.mxu0 %v1647
  %v1785 = vpop.f32.mrf.mxu0
  %v1786 = vadd.f32 0.0, %v1785
  %v1787 = vpop.f32.mrf.mxu0
  %1788 = vmatprep.mubr.f32.mxu0 0.0
  %1789 = vmatmul.mubr.f32.gmra.mxu0 %v1648
  %v1790 = vpop.f32.mrf.mxu0
  %v1791 = vadd.f32 0.0, %v1790
  %v1792 = vpop.f32.mrf.mxu0
  %1793 = vdwg.mxu0
  %1794 = vmatprep.subr.mxu0 0.0
  %1795 = vmatpush1.msra.mxu0 %v1463
  %1796 = vmatprep.subr.mxu0 0.0
  %1797 = vmatpush1.msra.mxu0 %v1458
  %1798 = vmatprep.subr.mxu0 0.0
  %1799 = vmatpush1.msra.mxu0 %v1453
  %1800 = vmatprep.subr.mxu0 0.0
  %1801 = vmatpush1.msra.mxu0 %v1448
  %1802 = vmatprep.subr.mxu0 0.0
  %1803 = vmatpush1.msra.mxu0 %v1443
  %1804 = vmatprep.subr.mxu0 0.0
  %1805 = vmatpush1.msra.mxu0 %v1438
  %1806 = vmatprep.subr.mxu0 0.0
  %1807 = vmatpush1.msra.mxu0 %v1433
  %1808 = vmatprep.subr.mxu0 0.0
  %1809 = vmatpush1.msra.mxu0 %v1428
  %1810 = vmatprep.subr.mxu0 0.0
  %1811 = vmatpush1.msra.mxu0 %v1423
  %1812 = vmatprep.subr.mxu0 0.0
  %1813 = vmatpush1.msra.mxu0 %v1418
  %1814 = vmatprep.subr.mxu0 0.0
  %1815 = vmatpush1.msra.mxu0 %v1413
  %1816 = vmatprep.subr.mxu0 0.0
  %1817 = vmatpush1.msra.mxu0 %v1408
  %1818 = vmatprep.subr.mxu0 0.0
  %1819 = vmatpush1.msra.mxu0 %v1403
  %1820 = vmatprep.subr.mxu0 0.0
  %1821 = vmatpush1.msra.mxu0 %v1398
  %1822 = vmatprep.subr.mxu0 0.0
  %1823 = vmatpush1.msra.mxu0 %v1393
  %1824 = vmatprep.subr.mxu0 0.0
  %1825 = vmatpush1.msra.mxu0 %v1388
  %1826 = vmatprep.subr.mxu0 0.0
  %1827 = vmatpush2.msra.mxu0 0.0
  %1828 = vmatprep.subr.mxu0 0.0
  %1829 = vmatpush2.msra.mxu0 0.0
  %1830 = vmatprep.subr.mxu0 0.0
  %1831 = vmatpush2.msra.mxu0 0.0
  %1832 = vmatprep.subr.mxu0 0.0
  %1833 = vmatpush2.msra.mxu0 0.0
  %1834 = vmatprep.subr.mxu0 0.0
  %1835 = vmatpush2.msra.mxu0 0.0
  %1836 = vmatprep.subr.mxu0 0.0
  %1837 = vmatpush2.msra.mxu0 0.0
  %1838 = vmatprep.subr.mxu0 0.0
  %1839 = vmatpush2.msra.mxu0 0.0
  %1840 = vmatprep.subr.mxu0 0.0
  %1841 = vmatpush2.msra.mxu0 0.0
  %1842 = vmatprep.subr.mxu0 0.0
  %1843 = vmatpush2.msra.mxu0 0.0
  %1844 = vmatprep.subr.mxu0 0.0
  %1845 = vmatpush2.msra.mxu0 0.0
  %1846 = vmatprep.subr.mxu0 0.0
  %1847 = vmatpush2.msra.mxu0 0.0
  %1848 = vmatprep.subr.mxu0 0.0
  %1849 = vmatpush2.msra.mxu0 0.0
  %1850 = vmatprep.subr.mxu0 0.0
  %1851 = vmatpush2.msra.mxu0 0.0
  %1852 = vmatprep.subr.mxu0 0.0
  %1853 = vmatpush2.msra.mxu0 0.0
  %1854 = vmatprep.subr.mxu0 0.0
  %1855 = vmatpush2.msra.mxu0 0.0
  %1856 = vmatprep.subr.mxu0 0.0
  %1857 = vmatpush2.msra.mxu0 0.0
  %1858 = vmatprep.mubr.f32.mxu0 0.0
  %1859 = vmatmul.mubr.f32.gmra.mxu0 %v1466
  %v1860 = vpop.f32.mrf.mxu0
  %v1861 = vadd.f32 %v1716, %v1860
  %v1862 = vpop.f32.mrf.mxu0
  %1863 = vmatprep.mubr.f32.mxu0 0.0
  %1864 = vmatmul.mubr.f32.gmra.mxu0 %v1467
  %v1865 = vpop.f32.mrf.mxu0
  %v1866 = vadd.f32 %v1721, %v1865
  %v1867 = vpop.f32.mrf.mxu0
  %1868 = vmatprep.mubr.f32.mxu0 0.0
  %1869 = vmatmul.mubr.f32.gmra.mxu0 %v1468
  %v1870 = vpop.f32.mrf.mxu0
  %v1871 = vadd.f32 %v1726, %v1870
  %v1872 = vpop.f32.mrf.mxu0
  %1873 = vmatprep.mubr.f32.mxu0 0.0
  %1874 = vmatmul.mubr.f32.gmra.mxu0 %v1469
  %v1875 = vpop.f32.mrf.mxu0
  %v1876 = vadd.f32 %v1731, %v1875
  %v1877 = vpop.f32.mrf.mxu0
  %1878 = vmatprep.mubr.f32.mxu0 0.0
  %1879 = vmatmul.mubr.f32.gmra.mxu0 %v1470
  %v1880 = vpop.f32.mrf.mxu0
  %v1881 = vadd.f32 %v1736, %v1880
  %v1882 = vpop.f32.mrf.mxu0
  %1883 = vmatprep.mubr.f32.mxu0 0.0
  %1884 = vmatmul.mubr.f32.gmra.mxu0 %v1471
  %v1885 = vpop.f32.mrf.mxu0
  %v1886 = vadd.f32 %v1741, %v1885
  %v1887 = vpop.f32.mrf.mxu0
  %1888 = vmatprep.mubr.f32.mxu0 0.0
  %1889 = vmatmul.mubr.f32.gmra.mxu0 %v1472
  %v1890 = vpop.f32.mrf.mxu0
  %v1891 = vadd.f32 %v1746, %v1890
  %v1892 = vpop.f32.mrf.mxu0
  %1893 = vmatprep.mubr.f32.mxu0 0.0
  %1894 = vmatmul.mubr.f32.gmra.mxu0 %v1473
  %v1895 = vpop.f32.mrf.mxu0
  %v1896 = vadd.f32 %v1751, %v1895
  %v1897 = vpop.f32.mrf.mxu0
  %1898 = vmatprep.mubr.f32.mxu0 0.0
  %1899 = vmatmul.mubr.f32.gmra.mxu0 %v1474
  %v1900 = vpop.f32.mrf.mxu0
  %v1901 = vadd.f32 %v1756, %v1900
  %v1902 = vpop.f32.mrf.mxu0
  %1903 = vmatprep.mubr.f32.mxu0 0.0
  %1904 = vmatmul.mubr.f32.gmra.mxu0 %v1475
  %v1905 = vpop.f32.mrf.mxu0
  %v1906 = vadd.f32 %v1761, %v1905
  %v1907 = vpop.f32.mrf.mxu0
  %1908 = vmatprep.mubr.f32.mxu0 0.0
  %1909 = vmatmul.mubr.f32.gmra.mxu0 %v1476
  %v1910 = vpop.f32.mrf.mxu0
  %v1911 = vadd.f32 %v1766, %v1910
  %v1912 = vpop.f32.mrf.mxu0
  %1913 = vmatprep.mubr.f32.mxu0 0.0
  %1914 = vmatmul.mubr.f32.gmra.mxu0 %v1477
  %v1915 = vpop.f32.mrf.mxu0
  %v1916 = vadd.f32 %v1771, %v1915
  %v1917 = vpop.f32.mrf.mxu0
  %1918 = vmatprep.mubr.f32.mxu0 0.0
  %1919 = vmatmul.mubr.f32.gmra.mxu0 %v1478
  %v1920 = vpop.f32.mrf.mxu0
  %v1921 = vadd.f32 %v1776, %v1920
  %v1922 = vpop.f32.mrf.mxu0
  %1923 = vmatprep.mubr.f32.mxu0 0.0
  %1924 = vmatmul.mubr.f32.gmra.mxu0 %v1479
  %v1925 = vpop.f32.mrf.mxu0
  %v1926 = vadd.f32 %v1781, %v1925
  %v1927 = vpop.f32.mrf.mxu0
  %1928 = vmatprep.mubr.f32.mxu0 0.0
  %1929 = vmatmul.mubr.f32.gmra.mxu0 %v1480
  %v1930 = vpop.f32.mrf.mxu0
  %v1931 = vadd.f32 %v1786, %v1930
  %v1932 = vpop.f32.mrf.mxu0
  %1933 = vmatprep.mubr.f32.mxu0 0.0
  %1934 = vmatmul.mubr.f32.gmra.mxu0 %v1481
  %v1935 = vpop.f32.mrf.mxu0
  %v1936 = vadd.f32 %v1791, %v1935
  %v1937 = vpop.f32.mrf.mxu0
  %1938 = vdwg.mxu0
  %s1939 = scalar_lea.vmem %s5, 64
  %v1940 = vld [vmem:[%s1939] sm:$0xff]
  %v1941 = vld [vmem:[%s1939 + $0x8] sm:$0xff]
  %v1942 = vld [vmem:[%s1939 + $0x10] sm:$0xff]
  %v1943 = vld [vmem:[%s1939 + $0x18] sm:$0xff]
  %1944 = vmatprep.subr.mxu0 0.0
  %1945 = vmatpush1.msra.mxu0 0.0
  %1946 = vmatprep.subr.mxu0 0.0
  %1947 = vmatpush1.msra.mxu0 0.0
  %1948 = vmatprep.subr.mxu0 0.0
  %1949 = vmatpush1.msra.mxu0 0.0
  %1950 = vmatprep.subr.mxu0 0.0
  %1951 = vmatpush1.msra.mxu0 0.0
  %1952 = vmatprep.subr.mxu0 0.0
  %1953 = vmatpush1.msra.mxu0 0.0
  %1954 = vmatprep.subr.mxu0 0.0
  %1955 = vmatpush1.msra.mxu0 0.0
  %1956 = vmatprep.subr.mxu0 0.0
  %1957 = vmatpush1.msra.mxu0 0.0
  %1958 = vmatprep.subr.mxu0 0.0
  %1959 = vmatpush1.msra.mxu0 0.0
  %1960 = vmatprep.subr.mxu0 0.0
  %1961 = vmatpush1.msra.mxu0 0.0
  %1962 = vmatprep.subr.mxu0 0.0
  %1963 = vmatpush1.msra.mxu0 0.0
  %1964 = vmatprep.subr.mxu0 0.0
  %1965 = vmatpush1.msra.mxu0 0.0
  %1966 = vmatprep.subr.mxu0 0.0
  %1967 = vmatpush1.msra.mxu0 0.0
  %1968 = vmatprep.subr.mxu0 0.0
  %1969 = vmatpush1.msra.mxu0 %v1943
  %1970 = vmatprep.subr.mxu0 0.0
  %1971 = vmatpush1.msra.mxu0 %v1942
  %1972 = vmatprep.subr.mxu0 0.0
  %1973 = vmatpush1.msra.mxu0 %v1941
  %1974 = vmatprep.subr.mxu0 0.0
  %1975 = vmatpush1.msra.mxu0 %v1940
  %1976 = vmatprep.subr.mxu0 0.0
  %1977 = vmatpush2.msra.mxu0 0.0
  %1978 = vmatprep.subr.mxu0 0.0
  %1979 = vmatpush2.msra.mxu0 0.0
  %1980 = vmatprep.subr.mxu0 0.0
  %1981 = vmatpush2.msra.mxu0 0.0
  %1982 = vmatprep.subr.mxu0 0.0
  %1983 = vmatpush2.msra.mxu0 0.0
  %1984 = vmatprep.subr.mxu0 0.0
  %1985 = vmatpush2.msra.mxu0 0.0
  %1986 = vmatprep.subr.mxu0 0.0
  %1987 = vmatpush2.msra.mxu0 0.0
  %1988 = vmatprep.subr.mxu0 0.0
  %1989 = vmatpush2.msra.mxu0 0.0
  %1990 = vmatprep.subr.mxu0 0.0
  %1991 = vmatpush2.msra.mxu0 0.0
  %1992 = vmatprep.subr.mxu0 0.0
  %1993 = vmatpush2.msra.mxu0 0.0
  %1994 = vmatprep.subr.mxu0 0.0
  %1995 = vmatpush2.msra.mxu0 0.0
  %1996 = vmatprep.subr.mxu0 0.0
  %1997 = vmatpush2.msra.mxu0 0.0
  %1998 = vmatprep.subr.mxu0 0.0
  %1999 = vmatpush2.msra.mxu0 0.0
  %2000 = vmatprep.subr.mxu0 0.0
  %2001 = vmatpush2.msra.mxu0 0.0
  %2002 = vmatprep.subr.mxu0 0.0
  %2003 = vmatpush2.msra.mxu0 0.0
  %2004 = vmatprep.subr.mxu0 0.0
  %2005 = vmatpush2.msra.mxu0 0.0
  %2006 = vmatprep.subr.mxu0 0.0
  %2007 = vmatpush2.msra.mxu0 0.0
  %2008 = vmatprep.mubr.f32.mxu0 0.0
  %2009 = vmatmul.mubr.f32.gmra.mxu0 %v1274
  %v2010 = vpop.f32.mrf.mxu0
  %v2011 = vadd.f32 0.0, %v2010
  %v2012 = vpop.f32.mrf.mxu0
  %2013 = vmatprep.mubr.f32.mxu0 0.0
  %2014 = vmatmul.mubr.f32.gmra.mxu0 %v1277
  %v2015 = vpop.f32.mrf.mxu0
  %v2016 = vadd.f32 0.0, %v2015
  %v2017 = vpop.f32.mrf.mxu0
  %2018 = vmatprep.mubr.f32.mxu0 0.0
  %2019 = vmatmul.mubr.f32.gmra.mxu0 %v1280
  %v2020 = vpop.f32.mrf.mxu0
  %v2021 = vadd.f32 0.0, %v2020
  %v2022 = vpop.f32.mrf.mxu0
  %2023 = vmatprep.mubr.f32.mxu0 0.0
  %2024 = vmatmul.mubr.f32.gmra.mxu0 %v1283
  %v2025 = vpop.f32.mrf.mxu0
  %v2026 = vadd.f32 0.0, %v2025
  %v2027 = vpop.f32.mrf.mxu0
  %2028 = vmatprep.mubr.f32.mxu0 0.0
  %2029 = vmatmul.mubr.f32.gmra.mxu0 %v1286
  %v2030 = vpop.f32.mrf.mxu0
  %v2031 = vadd.f32 0.0, %v2030
  %v2032 = vpop.f32.mrf.mxu0
  %2033 = vmatprep.mubr.f32.mxu0 0.0
  %2034 = vmatmul.mubr.f32.gmra.mxu0 %v1289
  %v2035 = vpop.f32.mrf.mxu0
  %v2036 = vadd.f32 0.0, %v2035
  %v2037 = vpop.f32.mrf.mxu0
  %2038 = vmatprep.mubr.f32.mxu0 0.0
  %2039 = vmatmul.mubr.f32.gmra.mxu0 %v1292
  %v2040 = vpop.f32.mrf.mxu0
  %v2041 = vadd.f32 0.0, %v2040
  %v2042 = vpop.f32.mrf.mxu0
  %2043 = vmatprep.mubr.f32.mxu0 0.0
  %2044 = vmatmul.mubr.f32.gmra.mxu0 %v1295
  %v2045 = vpop.f32.mrf.mxu0
  %v2046 = vadd.f32 0.0, %v2045
  %v2047 = vpop.f32.mrf.mxu0
  %2048 = vmatprep.mubr.f32.mxu0 0.0
  %2049 = vmatmul.mubr.f32.gmra.mxu0 %v1298
  %v2050 = vpop.f32.mrf.mxu0
  %v2051 = vadd.f32 0.0, %v2050
  %v2052 = vpop.f32.mrf.mxu0
  %2053 = vmatprep.mubr.f32.mxu0 0.0
  %2054 = vmatmul.mubr.f32.gmra.mxu0 %v1301
  %v2055 = vpop.f32.mrf.mxu0
  %v2056 = vadd.f32 0.0, %v2055
  %v2057 = vpop.f32.mrf.mxu0
  %2058 = vmatprep.mubr.f32.mxu0 0.0
  %2059 = vmatmul.mubr.f32.gmra.mxu0 %v1304
  %v2060 = vpop.f32.mrf.mxu0
  %v2061 = vadd.f32 0.0, %v2060
  %v2062 = vpop.f32.mrf.mxu0
  %2063 = vmatprep.mubr.f32.mxu0 0.0
  %2064 = vmatmul.mubr.f32.gmra.mxu0 %v1307
  %v2065 = vpop.f32.mrf.mxu0
  %v2066 = vadd.f32 0.0, %v2065
  %v2067 = vpop.f32.mrf.mxu0
  %2068 = vmatprep.mubr.f32.mxu0 0.0
  %2069 = vmatmul.mubr.f32.gmra.mxu0 %v1310
  %v2070 = vpop.f32.mrf.mxu0
  %v2071 = vadd.f32 0.0, %v2070
  %v2072 = vpop.f32.mrf.mxu0
  %2073 = vmatprep.mubr.f32.mxu0 0.0
  %2074 = vmatmul.mubr.f32.gmra.mxu0 %v1313
  %v2075 = vpop.f32.mrf.mxu0
  %v2076 = vadd.f32 0.0, %v2075
  %v2077 = vpop.f32.mrf.mxu0
  %2078 = vmatprep.mubr.f32.mxu0 0.0
  %2079 = vmatmul.mubr.f32.gmra.mxu0 %v1316
  %v2080 = vpop.f32.mrf.mxu0
  %v2081 = vadd.f32 0.0, %v2080
  %v2082 = vpop.f32.mrf.mxu0
  %2083 = vmatprep.mubr.f32.mxu0 0.0
  %2084 = vmatmul.mubr.f32.gmra.mxu0 %v1319
  %v2085 = vpop.f32.mrf.mxu0
  %v2086 = vadd.f32 0.0, %v2085
  %v2087 = vpop.f32.mrf.mxu0
  %2088 = vdwg.mxu0
  %s2089 = scalar_lea.vmem %s4, 256
  %v2090 = vld [vmem:[%s2089] sm:$0xff]
  %v2091 = vld [vmem:[%s2089 + $0x8] sm:$0xff]
  %v2092 = vld [vmem:[%s2089 + $0x10] sm:$0xff]
  %v2093 = vld [vmem:[%s2089 + $0x18] sm:$0xff]
  %v2094 = vld [vmem:[%s2089 + $0x20] sm:$0xff]
  %v2095 = vld [vmem:[%s2089 + $0x28] sm:$0xff]
  %v2096 = vld [vmem:[%s2089 + $0x30] sm:$0xff]
  %v2097 = vld [vmem:[%s2089 + $0x38] sm:$0xff]
  %v2098 = vld [vmem:[%s2089 + $0x40] sm:$0xff]
  %v2099 = vld [vmem:[%s2089 + $0x48] sm:$0xff]
  %v2100 = vld [vmem:[%s2089 + $0x50] sm:$0xff]
  %v2101 = vld [vmem:[%s2089 + $0x58] sm:$0xff]
  %v2102 = vld [vmem:[%s2089 + $0x60] sm:$0xff]
  %v2103 = vld [vmem:[%s2089 + $0x68] sm:$0xff]
  %v2104 = vld [vmem:[%s2089 + $0x70] sm:$0xff]
  %v2105 = vld [vmem:[%s2089 + $0x78] sm:$0xff]
  %2106 = vmatprep.subr.mxu0 0.0
  %2107 = vmatpush1.msra.mxu0 %v2086
  %2108 = vmatprep.subr.mxu0 0.0
  %2109 = vmatpush1.msra.mxu0 %v2081
  %2110 = vmatprep.subr.mxu0 0.0
  %2111 = vmatpush1.msra.mxu0 %v2076
  %2112 = vmatprep.subr.mxu0 0.0
  %2113 = vmatpush1.msra.mxu0 %v2071
  %2114 = vmatprep.subr.mxu0 0.0
  %2115 = vmatpush1.msra.mxu0 %v2066
  %2116 = vmatprep.subr.mxu0 0.0
  %2117 = vmatpush1.msra.mxu0 %v2061
  %2118 = vmatprep.subr.mxu0 0.0
  %2119 = vmatpush1.msra.mxu0 %v2056
  %2120 = vmatprep.subr.mxu0 0.0
  %2121 = vmatpush1.msra.mxu0 %v2051
  %2122 = vmatprep.subr.mxu0 0.0
  %2123 = vmatpush1.msra.mxu0 %v2046
  %2124 = vmatprep.subr.mxu0 0.0
  %2125 = vmatpush1.msra.mxu0 %v2041
  %2126 = vmatprep.subr.mxu0 0.0
  %2127 = vmatpush1.msra.mxu0 %v2036
  %2128 = vmatprep.subr.mxu0 0.0
  %2129 = vmatpush1.msra.mxu0 %v2031
  %2130 = vmatprep.subr.mxu0 0.0
  %2131 = vmatpush1.msra.mxu0 %v2026
  %2132 = vmatprep.subr.mxu0 0.0
  %2133 = vmatpush1.msra.mxu0 %v2021
  %2134 = vmatprep.subr.mxu0 0.0
  %2135 = vmatpush1.msra.mxu0 %v2016
  %2136 = vmatprep.subr.mxu0 0.0
  %2137 = vmatpush1.msra.mxu0 %v2011
  %2138 = vmatprep.subr.mxu0 0.0
  %2139 = vmatpush2.msra.mxu0 0.0
  %2140 = vmatprep.subr.mxu0 0.0
  %2141 = vmatpush2.msra.mxu0 0.0
  %2142 = vmatprep.subr.mxu0 0.0
  %2143 = vmatpush2.msra.mxu0 0.0
  %2144 = vmatprep.subr.mxu0 0.0
  %2145 = vmatpush2.msra.mxu0 0.0
  %2146 = vmatprep.subr.mxu0 0.0
  %2147 = vmatpush2.msra.mxu0 0.0
  %2148 = vmatprep.subr.mxu0 0.0
  %2149 = vmatpush2.msra.mxu0 0.0
  %2150 = vmatprep.subr.mxu0 0.0
  %2151 = vmatpush2.msra.mxu0 0.0
  %2152 = vmatprep.subr.mxu0 0.0
  %2153 = vmatpush2.msra.mxu0 0.0
  %2154 = vmatprep.subr.mxu0 0.0
  %2155 = vmatpush2.msra.mxu0 0.0
  %2156 = vmatprep.subr.mxu0 0.0
  %2157 = vmatpush2.msra.mxu0 0.0
  %2158 = vmatprep.subr.mxu0 0.0
  %2159 = vmatpush2.msra.mxu0 0.0
  %2160 = vmatprep.subr.mxu0 0.0
  %2161 = vmatpush2.msra.mxu0 0.0
  %2162 = vmatprep.subr.mxu0 0.0
  %2163 = vmatpush2.msra.mxu0 0.0
  %2164 = vmatprep.subr.mxu0 0.0
  %2165 = vmatpush2.msra.mxu0 0.0
  %2166 = vmatprep.subr.mxu0 0.0
  %2167 = vmatpush2.msra.mxu0 0.0
  %2168 = vmatprep.subr.mxu0 0.0
  %2169 = vmatpush2.msra.mxu0 0.0
  %2170 = vmatprep.mubr.f32.mxu0 0.0
  %2171 = vmatmul.mubr.f32.gmra.mxu0 %v2090
  %v2172 = vpop.f32.mrf.mxu0
  %v2173 = vadd.f32 0.0, %v2172
  %v2174 = vpop.f32.mrf.mxu0
  %2175 = vmatprep.mubr.f32.mxu0 0.0
  %2176 = vmatmul.mubr.f32.gmra.mxu0 %v2091
  %v2177 = vpop.f32.mrf.mxu0
  %v2178 = vadd.f32 0.0, %v2177
  %v2179 = vpop.f32.mrf.mxu0
  %2180 = vmatprep.mubr.f32.mxu0 0.0
  %2181 = vmatmul.mubr.f32.gmra.mxu0 %v2092
  %v2182 = vpop.f32.mrf.mxu0
  %v2183 = vadd.f32 0.0, %v2182
  %v2184 = vpop.f32.mrf.mxu0
  %2185 = vmatprep.mubr.f32.mxu0 0.0
  %2186 = vmatmul.mubr.f32.gmra.mxu0 %v2093
  %v2187 = vpop.f32.mrf.mxu0
  %v2188 = vadd.f32 0.0, %v2187
  %v2189 = vpop.f32.mrf.mxu0
  %2190 = vmatprep.mubr.f32.mxu0 0.0
  %2191 = vmatmul.mubr.f32.gmra.mxu0 %v2094
  %v2192 = vpop.f32.mrf.mxu0
  %v2193 = vadd.f32 0.0, %v2192
  %v2194 = vpop.f32.mrf.mxu0
  %2195 = vmatprep.mubr.f32.mxu0 0.0
  %2196 = vmatmul.mubr.f32.gmra.mxu0 %v2095
  %v2197 = vpop.f32.mrf.mxu0
  %v2198 = vadd.f32 0.0, %v2197
  %v2199 = vpop.f32.mrf.mxu0
  %2200 = vmatprep.mubr.f32.mxu0 0.0
  %2201 = vmatmul.mubr.f32.gmra.mxu0 %v2096
  %v2202 = vpop.f32.mrf.mxu0
  %v2203 = vadd.f32 0.0, %v2202
  %v2204 = vpop.f32.mrf.mxu0
  %2205 = vmatprep.mubr.f32.mxu0 0.0
  %2206 = vmatmul.mubr.f32.gmra.mxu0 %v2097
  %v2207 = vpop.f32.mrf.mxu0
  %v2208 = vadd.f32 0.0, %v2207
  %v2209 = vpop.f32.mrf.mxu0
  %2210 = vmatprep.mubr.f32.mxu0 0.0
  %2211 = vmatmul.mubr.f32.gmra.mxu0 %v2098
  %v2212 = vpop.f32.mrf.mxu0
  %v2213 = vadd.f32 0.0, %v2212
  %v2214 = vpop.f32.mrf.mxu0
  %2215 = vmatprep.mubr.f32.mxu0 0.0
  %2216 = vmatmul.mubr.f32.gmra.mxu0 %v2099
  %v2217 = vpop.f32.mrf.mxu0
  %v2218 = vadd.f32 0.0, %v2217
  %v2219 = vpop.f32.mrf.mxu0
  %2220 = vmatprep.mubr.f32.mxu0 0.0
  %2221 = vmatmul.mubr.f32.gmra.mxu0 %v2100
  %v2222 = vpop.f32.mrf.mxu0
  %v2223 = vadd.f32 0.0, %v2222
  %v2224 = vpop.f32.mrf.mxu0
  %2225 = vmatprep.mubr.f32.mxu0 0.0
  %2226 = vmatmul.mubr.f32.gmra.mxu0 %v2101
  %v2227 = vpop.f32.mrf.mxu0
  %v2228 = vadd.f32 0.0, %v2227
  %v2229 = vpop.f32.mrf.mxu0
  %2230 = vmatprep.mubr.f32.mxu0 0.0
  %2231 = vmatmul.mubr.f32.gmra.mxu0 %v2102
  %v2232 = vpop.f32.mrf.mxu0
  %v2233 = vadd.f32 0.0, %v2232
  %v2234 = vpop.f32.mrf.mxu0
  %2235 = vmatprep.mubr.f32.mxu0 0.0
  %2236 = vmatmul.mubr.f32.gmra.mxu0 %v2103
  %v2237 = vpop.f32.mrf.mxu0
  %v2238 = vadd.f32 0.0, %v2237
  %v2239 = vpop.f32.mrf.mxu0
  %2240 = vmatprep.mubr.f32.mxu0 0.0
  %2241 = vmatmul.mubr.f32.gmra.mxu0 %v2104
  %v2242 = vpop.f32.mrf.mxu0
  %v2243 = vadd.f32 0.0, %v2242
  %v2244 = vpop.f32.mrf.mxu0
  %2245 = vmatprep.mubr.f32.mxu0 0.0
  %2246 = vmatmul.mubr.f32.gmra.mxu0 %v2105
  %v2247 = vpop.f32.mrf.mxu0
  %v2248 = vadd.f32 0.0, %v2247
  %v2249 = vpop.f32.mrf.mxu0
  %2250 = vdwg.mxu0
  %v2251 = vadd.f32 %v1861, %v2173
  %v2252 = vadd.f32 %v1866, %v2178
  %v2253 = vadd.f32 %v1871, %v2183
  %v2254 = vadd.f32 %v1876, %v2188
  %v2255 = vadd.f32 %v1881, %v2193
  %v2256 = vadd.f32 %v1886, %v2198
  %v2257 = vadd.f32 %v1891, %v2203
  %v2258 = vadd.f32 %v1896, %v2208
  %v2259 = vadd.f32 %v1901, %v2213
  %v2260 = vadd.f32 %v1906, %v2218
  %v2261 = vadd.f32 %v1911, %v2223
  %v2262 = vadd.f32 %v1916, %v2228
  %v2263 = vadd.f32 %v1921, %v2233
  %v2264 = vadd.f32 %v1926, %v2238
  %v2265 = vadd.f32 %v1931, %v2243
  %v2266 = vadd.f32 %v1936, %v2248
  %v2267 = vld [vmem:[%s6] sm:$0xff]
  %v2268 = vld [vmem:[%s6 + $0x8] sm:$0xff]
  %v2269 = vld [vmem:[%s6 + $0x10] sm:$0xff]
  %v2270 = vld [vmem:[%s6 + $0x18] sm:$0xff]
  %v2271 = vld [vmem:[%s6 + $0x20] sm:$0xff]
  %v2272 = vld [vmem:[%s6 + $0x28] sm:$0xff]
  %v2273 = vld [vmem:[%s6 + $0x30] sm:$0xff]
  %v2274 = vld [vmem:[%s6 + $0x38] sm:$0xff]
  %v2275 = vld [vmem:[%s6 + $0x40] sm:$0xff]
  %v2276 = vld [vmem:[%s6 + $0x48] sm:$0xff]
  %v2277 = vld [vmem:[%s6 + $0x50] sm:$0xff]
  %v2278 = vld [vmem:[%s6 + $0x58] sm:$0xff]
  %v2279 = vld [vmem:[%s6 + $0x60] sm:$0xff]
  %v2280 = vld [vmem:[%s6 + $0x68] sm:$0xff]
  %v2281 = vld [vmem:[%s6 + $0x70] sm:$0xff]
  %v2282 = vld [vmem:[%s6 + $0x78] sm:$0xff]
  %2284 = vset.pattern.permute.xlu0 0
  %2285 = vperm.xlu0 %2284, %v2267
  %v2286 = vpop.permute.xlu0 %2285
  %2289 = vset.pattern.permute.xlu0 0
  %2290 = vperm.xlu0 %2289, %v2268
  %v2291 = vpop.permute.xlu0 %2290
  %2294 = vset.pattern.permute.xlu0 0
  %2295 = vperm.xlu0 %2294, %v2269
  %v2296 = vpop.permute.xlu0 %2295
  %2299 = vset.pattern.permute.xlu0 0
  %2300 = vperm.xlu0 %2299, %v2270
  %v2301 = vpop.permute.xlu0 %2300
  %2304 = vset.pattern.permute.xlu0 0
  %2305 = vperm.xlu0 %2304, %v2271
  %v2306 = vpop.permute.xlu0 %2305
  %2309 = vset.pattern.permute.xlu0 0
  %2310 = vperm.xlu0 %2309, %v2272
  %v2311 = vpop.permute.xlu0 %2310
  %2314 = vset.pattern.permute.xlu0 0
  %2315 = vperm.xlu0 %2314, %v2273
  %v2316 = vpop.permute.xlu0 %2315
  %2319 = vset.pattern.permute.xlu0 0
  %2320 = vperm.xlu0 %2319, %v2274
  %v2321 = vpop.permute.xlu0 %2320
  %2324 = vset.pattern.permute.xlu0 0
  %2325 = vperm.xlu0 %2324, %v2275
  %v2326 = vpop.permute.xlu0 %2325
  %2329 = vset.pattern.permute.xlu0 0
  %2330 = vperm.xlu0 %2329, %v2276
  %v2331 = vpop.permute.xlu0 %2330
  %2334 = vset.pattern.permute.xlu0 0
  %2335 = vperm.xlu0 %2334, %v2277
  %v2336 = vpop.permute.xlu0 %2335
  %2339 = vset.pattern.permute.xlu0 0
  %2340 = vperm.xlu0 %2339, %v2278
  %v2341 = vpop.permute.xlu0 %2340
  %2344 = vset.pattern.permute.xlu0 0
  %2345 = vperm.xlu0 %2344, %v2279
  %v2346 = vpop.permute.xlu0 %2345
  %2349 = vset.pattern.permute.xlu0 0
  %2350 = vperm.xlu0 %2349, %v2280
  %v2351 = vpop.permute.xlu0 %2350
  %2354 = vset.pattern.permute.xlu0 0
  %2355 = vperm.xlu0 %2354, %v2281
  %v2356 = vpop.permute.xlu0 %2355
  %2359 = vset.pattern.permute.xlu0 0
  %2360 = vperm.xlu0 %2359, %v2282
  %v2361 = vpop.permute.xlu0 %2360
  %v2363 = vadd.f32 %v2251, %v2286
  %v2364 = vadd.f32 %v2252, %v2291
  %v2365 = vadd.f32 %v2253, %v2296
  %v2366 = vadd.f32 %v2254, %v2301
  %v2367 = vadd.f32 %v2255, %v2306
  %v2368 = vadd.f32 %v2256, %v2311
  %v2369 = vadd.f32 %v2257, %v2316
  %v2370 = vadd.f32 %v2258, %v2321
  %v2371 = vadd.f32 %v2259, %v2326
  %v2372 = vadd.f32 %v2260, %v2331
  %v2373 = vadd.f32 %v2261, %v2336
  %v2374 = vadd.f32 %v2262, %v2341
  %v2375 = vadd.f32 %v2263, %v2346
  %v2376 = vadd.f32 %v2264, %v2351
  %v2377 = vadd.f32 %v2265, %v2356
  %v2378 = vadd.f32 %v2266, %v2361
  %v2379 = vmax.f32 %v2363, 0.0
  %v2380 = vmax.f32 %v2364, 0.0
  %v2381 = vmax.f32 %v2365, 0.0
  %v2382 = vmax.f32 %v2366, 0.0
  %v2383 = vmax.f32 %v2367, 0.0
  %v2384 = vmax.f32 %v2368, 0.0
  %v2385 = vmax.f32 %v2369, 0.0
  %v2386 = vmax.f32 %v2370, 0.0
  %v2387 = vmax.f32 %v2371, 0.0
  %v2388 = vmax.f32 %v2372, 0.0
  %v2389 = vmax.f32 %v2373, 0.0
  %v2390 = vmax.f32 %v2374, 0.0
  %v2391 = vmax.f32 %v2375, 0.0
  %v2392 = vmax.f32 %v2376, 0.0
  %v2393 = vmax.f32 %v2377, 0.0
  %v2394 = vmax.f32 %v2378, 0.0
  %v2395 = vld [vmem:[%s8] sm:$0xff]
  %v2396 = vld [vmem:[%s8 + $0x8] sm:$0xff]
  %vm2397 = vcmask 130048
  %v2399 = vsel %vm2397, %v2379, 0
  %v2402 = vsel %vm2397, %v2380, 0
  %v2405 = vsel %vm2397, %v2381, 0
  %v2408 = vsel %vm2397, %v2382, 0
  %v2411 = vsel %vm2397, %v2383, 0
  %v2414 = vsel %vm2397, %v2384, 0
  %v2417 = vsel %vm2397, %v2385, 0
  %v2420 = vsel %vm2397, %v2386, 0
  %v2423 = vsel %vm2397, %v2387, 0
  %v2426 = vsel %vm2397, %v2388, 0
  %v2429 = vsel %vm2397, %v2389, 0
  %v2432 = vsel %vm2397, %v2390, 0
  %v2435 = vsel %vm2397, %v2391, 0
  %v2438 = vsel %vm2397, %v2392, 0
  %v2441 = vsel %vm2397, %v2393, 0
  %v2444 = vsel %vm2397, %v2394, 0
  %2446 = vmatprep.subr.mxu0 0.0
  %2447 = vmatpush1.msra.mxu0 0.0
  %2448 = vmatprep.subr.mxu0 0.0
  %2449 = vmatpush1.msra.mxu0 0.0
  %2450 = vmatprep.subr.mxu0 0.0
  %2451 = vmatpush1.msra.mxu0 0.0
  %2452 = vmatprep.subr.mxu0 0.0
  %2453 = vmatpush1.msra.mxu0 0.0
  %2454 = vmatprep.subr.mxu0 0.0
  %2455 = vmatpush1.msra.mxu0 0.0
  %2456 = vmatprep.subr.mxu0 0.0
  %2457 = vmatpush1.msra.mxu0 0.0
  %2458 = vmatprep.subr.mxu0 0.0
  %2459 = vmatpush1.msra.mxu0 0.0
  %2460 = vmatprep.subr.mxu0 0.0
  %2461 = vmatpush1.msra.mxu0 0.0
  %2462 = vmatprep.subr.mxu0 0.0
  %2463 = vmatpush1.msra.mxu0 0.0
  %2464 = vmatprep.subr.mxu0 0.0
  %2465 = vmatpush1.msra.mxu0 0.0
  %2466 = vmatprep.subr.mxu0 0.0
  %2467 = vmatpush1.msra.mxu0 0.0
  %2468 = vmatprep.subr.mxu0 0.0
  %2469 = vmatpush1.msra.mxu0 0.0
  %2470 = vmatprep.subr.mxu0 0.0
  %2471 = vmatpush1.msra.mxu0 0.0
  %2472 = vmatprep.subr.mxu0 0.0
  %2473 = vmatpush1.msra.mxu0 0.0
  %2474 = vmatprep.subr.mxu0 0.0
  %2475 = vmatpush1.msra.mxu0 %v2396
  %2476 = vmatprep.subr.mxu0 0.0
  %2477 = vmatpush1.msra.mxu0 %v2395
  %2478 = vmatprep.subr.mxu0 0.0
  %2479 = vmatpush2.msra.mxu0 0.0
  %2480 = vmatprep.subr.mxu0 0.0
  %2481 = vmatpush2.msra.mxu0 0.0
  %2482 = vmatprep.subr.mxu0 0.0
  %2483 = vmatpush2.msra.mxu0 0.0
  %2484 = vmatprep.subr.mxu0 0.0
  %2485 = vmatpush2.msra.mxu0 0.0
  %2486 = vmatprep.subr.mxu0 0.0
  %2487 = vmatpush2.msra.mxu0 0.0
  %2488 = vmatprep.subr.mxu0 0.0
  %2489 = vmatpush2.msra.mxu0 0.0
  %2490 = vmatprep.subr.mxu0 0.0
  %2491 = vmatpush2.msra.mxu0 0.0
  %2492 = vmatprep.subr.mxu0 0.0
  %2493 = vmatpush2.msra.mxu0 0.0
  %2494 = vmatprep.subr.mxu0 0.0
  %2495 = vmatpush2.msra.mxu0 0.0
  %2496 = vmatprep.subr.mxu0 0.0
  %2497 = vmatpush2.msra.mxu0 0.0
  %2498 = vmatprep.subr.mxu0 0.0
  %2499 = vmatpush2.msra.mxu0 0.0
  %2500 = vmatprep.subr.mxu0 0.0
  %2501 = vmatpush2.msra.mxu0 0.0
  %2502 = vmatprep.subr.mxu0 0.0
  %2503 = vmatpush2.msra.mxu0 0.0
  %2504 = vmatprep.subr.mxu0 0.0
  %2505 = vmatpush2.msra.mxu0 0.0
  %2506 = vmatprep.subr.mxu0 0.0
  %2507 = vmatpush2.msra.mxu0 0.0
  %2508 = vmatprep.subr.mxu0 0.0
  %2509 = vmatpush2.msra.mxu0 0.0
  %2510 = vmatprep.mubr.f32.mxu0 0.0
  %2511 = vmatmul.mubr.f32.gmra.mxu0 %v2399
  %v2512 = vpop.f32.mrf.mxu0
  %v2513 = vadd.f32 0.0, %v2512
  %v2514 = vpop.f32.mrf.mxu0
  %2515 = vmatprep.mubr.f32.mxu0 0.0
  %2516 = vmatmul.mubr.f32.gmra.mxu0 %v2402
  %v2517 = vpop.f32.mrf.mxu0
  %v2518 = vadd.f32 0.0, %v2517
  %v2519 = vpop.f32.mrf.mxu0
  %2520 = vmatprep.mubr.f32.mxu0 0.0
  %2521 = vmatmul.mubr.f32.gmra.mxu0 %v2405
  %v2522 = vpop.f32.mrf.mxu0
  %v2523 = vadd.f32 0.0, %v2522
  %v2524 = vpop.f32.mrf.mxu0
  %2525 = vmatprep.mubr.f32.mxu0 0.0
  %2526 = vmatmul.mubr.f32.gmra.mxu0 %v2408
  %v2527 = vpop.f32.mrf.mxu0
  %v2528 = vadd.f32 0.0, %v2527
  %v2529 = vpop.f32.mrf.mxu0
  %2530 = vmatprep.mubr.f32.mxu0 0.0
  %2531 = vmatmul.mubr.f32.gmra.mxu0 %v2411
  %v2532 = vpop.f32.mrf.mxu0
  %v2533 = vadd.f32 0.0, %v2532
  %v2534 = vpop.f32.mrf.mxu0
  %2535 = vmatprep.mubr.f32.mxu0 0.0
  %2536 = vmatmul.mubr.f32.gmra.mxu0 %v2414
  %v2537 = vpop.f32.mrf.mxu0
  %v2538 = vadd.f32 0.0, %v2537
  %v2539 = vpop.f32.mrf.mxu0
  %2540 = vmatprep.mubr.f32.mxu0 0.0
  %2541 = vmatmul.mubr.f32.gmra.mxu0 %v2417
  %v2542 = vpop.f32.mrf.mxu0
  %v2543 = vadd.f32 0.0, %v2542
  %v2544 = vpop.f32.mrf.mxu0
  %2545 = vmatprep.mubr.f32.mxu0 0.0
  %2546 = vmatmul.mubr.f32.gmra.mxu0 %v2420
  %v2547 = vpop.f32.mrf.mxu0
  %v2548 = vadd.f32 0.0, %v2547
  %v2549 = vpop.f32.mrf.mxu0
  %2550 = vmatprep.mubr.f32.mxu0 0.0
  %2551 = vmatmul.mubr.f32.gmra.mxu0 %v2423
  %v2552 = vpop.f32.mrf.mxu0
  %v2553 = vadd.f32 0.0, %v2552
  %v2554 = vpop.f32.mrf.mxu0
  %2555 = vmatprep.mubr.f32.mxu0 0.0
  %2556 = vmatmul.mubr.f32.gmra.mxu0 %v2426
  %v2557 = vpop.f32.mrf.mxu0
  %v2558 = vadd.f32 0.0, %v2557
  %v2559 = vpop.f32.mrf.mxu0
  %2560 = vmatprep.mubr.f32.mxu0 0.0
  %2561 = vmatmul.mubr.f32.gmra.mxu0 %v2429
  %v2562 = vpop.f32.mrf.mxu0
  %v2563 = vadd.f32 0.0, %v2562
  %v2564 = vpop.f32.mrf.mxu0
  %2565 = vmatprep.mubr.f32.mxu0 0.0
  %2566 = vmatmul.mubr.f32.gmra.mxu0 %v2432
  %v2567 = vpop.f32.mrf.mxu0
  %v2568 = vadd.f32 0.0, %v2567
  %v2569 = vpop.f32.mrf.mxu0
  %2570 = vmatprep.mubr.f32.mxu0 0.0
  %2571 = vmatmul.mubr.f32.gmra.mxu0 %v2435
  %v2572 = vpop.f32.mrf.mxu0
  %v2573 = vadd.f32 0.0, %v2572
  %v2574 = vpop.f32.mrf.mxu0
  %2575 = vmatprep.mubr.f32.mxu0 0.0
  %2576 = vmatmul.mubr.f32.gmra.mxu0 %v2438
  %v2577 = vpop.f32.mrf.mxu0
  %v2578 = vadd.f32 0.0, %v2577
  %v2579 = vpop.f32.mrf.mxu0
  %2580 = vmatprep.mubr.f32.mxu0 0.0
  %2581 = vmatmul.mubr.f32.gmra.mxu0 %v2441
  %v2582 = vpop.f32.mrf.mxu0
  %v2583 = vadd.f32 0.0, %v2582
  %v2584 = vpop.f32.mrf.mxu0
  %2585 = vmatprep.mubr.f32.mxu0 0.0
  %2586 = vmatmul.mubr.f32.gmra.mxu0 %v2444
  %v2587 = vpop.f32.mrf.mxu0
  %v2588 = vadd.f32 0.0, %v2587
  %v2589 = vpop.f32.mrf.mxu0
  %2590 = vdwg.mxu0
  %v2591 = vld [vmem:[%s7] sm:$0xff]
  %v2592 = vld [vmem:[%s7 + $0x8] sm:$0xff]
  %v2593 = vld [vmem:[%s7 + $0x10] sm:$0xff]
  %v2594 = vld [vmem:[%s7 + $0x18] sm:$0xff]
  %v2595 = vld [vmem:[%s7 + $0x20] sm:$0xff]
  %v2596 = vld [vmem:[%s7 + $0x28] sm:$0xff]
  %v2597 = vld [vmem:[%s7 + $0x30] sm:$0xff]
  %v2598 = vld [vmem:[%s7 + $0x38] sm:$0xff]
  %v2599 = vld [vmem:[%s7 + $0x40] sm:$0xff]
  %v2600 = vld [vmem:[%s7 + $0x48] sm:$0xff]
  %v2601 = vld [vmem:[%s7 + $0x50] sm:$0xff]
  %v2602 = vld [vmem:[%s7 + $0x58] sm:$0xff]
  %v2603 = vld [vmem:[%s7 + $0x60] sm:$0xff]
  %v2604 = vld [vmem:[%s7 + $0x68] sm:$0xff]
  %v2605 = vld [vmem:[%s7 + $0x70] sm:$0xff]
  %v2606 = vld [vmem:[%s7 + $0x78] sm:$0xff]
  %s2607 = scalar_lea.vmem %s8, 16
  %v2608 = vld [vmem:[%s2607] sm:$0xff]
  %v2609 = vld [vmem:[%s2607 + $0x8] sm:$0xff]
  %2610 = vmatprep.subr.mxu0 0.0
  %2611 = vmatpush1.msra.mxu0 0.0
  %2612 = vmatprep.subr.mxu0 0.0
  %2613 = vmatpush1.msra.mxu0 0.0
  %2614 = vmatprep.subr.mxu0 0.0
  %2615 = vmatpush1.msra.mxu0 0.0
  %2616 = vmatprep.subr.mxu0 0.0
  %2617 = vmatpush1.msra.mxu0 0.0
  %2618 = vmatprep.subr.mxu0 0.0
  %2619 = vmatpush1.msra.mxu0 0.0
  %2620 = vmatprep.subr.mxu0 0.0
  %2621 = vmatpush1.msra.mxu0 0.0
  %2622 = vmatprep.subr.mxu0 0.0
  %2623 = vmatpush1.msra.mxu0 0.0
  %2624 = vmatprep.subr.mxu0 0.0
  %2625 = vmatpush1.msra.mxu0 0.0
  %2626 = vmatprep.subr.mxu0 0.0
  %2627 = vmatpush1.msra.mxu0 0.0
  %2628 = vmatprep.subr.mxu0 0.0
  %2629 = vmatpush1.msra.mxu0 0.0
  %2630 = vmatprep.subr.mxu0 0.0
  %2631 = vmatpush1.msra.mxu0 0.0
  %2632 = vmatprep.subr.mxu0 0.0
  %2633 = vmatpush1.msra.mxu0 0.0
  %2634 = vmatprep.subr.mxu0 0.0
  %2635 = vmatpush1.msra.mxu0 0.0
  %2636 = vmatprep.subr.mxu0 0.0
  %2637 = vmatpush1.msra.mxu0 0.0
  %2638 = vmatprep.subr.mxu0 0.0
  %2639 = vmatpush1.msra.mxu0 %v2609
  %2640 = vmatprep.subr.mxu0 0.0
  %2641 = vmatpush1.msra.mxu0 %v2608
  %2642 = vmatprep.subr.mxu0 0.0
  %2643 = vmatpush2.msra.mxu0 0.0
  %2644 = vmatprep.subr.mxu0 0.0
  %2645 = vmatpush2.msra.mxu0 0.0
  %2646 = vmatprep.subr.mxu0 0.0
  %2647 = vmatpush2.msra.mxu0 0.0
  %2648 = vmatprep.subr.mxu0 0.0
  %2649 = vmatpush2.msra.mxu0 0.0
  %2650 = vmatprep.subr.mxu0 0.0
  %2651 = vmatpush2.msra.mxu0 0.0
  %2652 = vmatprep.subr.mxu0 0.0
  %2653 = vmatpush2.msra.mxu0 0.0
  %2654 = vmatprep.subr.mxu0 0.0
  %2655 = vmatpush2.msra.mxu0 0.0
  %2656 = vmatprep.subr.mxu0 0.0
  %2657 = vmatpush2.msra.mxu0 0.0
  %2658 = vmatprep.subr.mxu0 0.0
  %2659 = vmatpush2.msra.mxu0 0.0
  %2660 = vmatprep.subr.mxu0 0.0
  %2661 = vmatpush2.msra.mxu0 0.0
  %2662 = vmatprep.subr.mxu0 0.0
  %2663 = vmatpush2.msra.mxu0 0.0
  %2664 = vmatprep.subr.mxu0 0.0
  %2665 = vmatpush2.msra.mxu0 0.0
  %2666 = vmatprep.subr.mxu0 0.0
  %2667 = vmatpush2.msra.mxu0 0.0
  %2668 = vmatprep.subr.mxu0 0.0
  %2669 = vmatpush2.msra.mxu0 0.0
  %2670 = vmatprep.subr.mxu0 0.0
  %2671 = vmatpush2.msra.mxu0 0.0
  %2672 = vmatprep.subr.mxu0 0.0
  %2673 = vmatpush2.msra.mxu0 0.0
  %2674 = vmatprep.mubr.f32.mxu0 0.0
  %2675 = vmatmul.mubr.f32.gmra.mxu0 %v2399
  %v2676 = vpop.f32.mrf.mxu0
  %v2677 = vadd.f32 0.0, %v2676
  %v2678 = vpop.f32.mrf.mxu0
  %2679 = vmatprep.mubr.f32.mxu0 0.0
  %2680 = vmatmul.mubr.f32.gmra.mxu0 %v2402
  %v2681 = vpop.f32.mrf.mxu0
  %v2682 = vadd.f32 0.0, %v2681
  %v2683 = vpop.f32.mrf.mxu0
  %2684 = vmatprep.mubr.f32.mxu0 0.0
  %2685 = vmatmul.mubr.f32.gmra.mxu0 %v2405
  %v2686 = vpop.f32.mrf.mxu0
  %v2687 = vadd.f32 0.0, %v2686
  %v2688 = vpop.f32.mrf.mxu0
  %2689 = vmatprep.mubr.f32.mxu0 0.0
  %2690 = vmatmul.mubr.f32.gmra.mxu0 %v2408
  %v2691 = vpop.f32.mrf.mxu0
  %v2692 = vadd.f32 0.0, %v2691
  %v2693 = vpop.f32.mrf.mxu0
  %2694 = vmatprep.mubr.f32.mxu0 0.0
  %2695 = vmatmul.mubr.f32.gmra.mxu0 %v2411
  %v2696 = vpop.f32.mrf.mxu0
  %v2697 = vadd.f32 0.0, %v2696
  %v2698 = vpop.f32.mrf.mxu0
  %2699 = vmatprep.mubr.f32.mxu0 0.0
  %2700 = vmatmul.mubr.f32.gmra.mxu0 %v2414
  %v2701 = vpop.f32.mrf.mxu0
  %v2702 = vadd.f32 0.0, %v2701
  %v2703 = vpop.f32.mrf.mxu0
  %2704 = vmatprep.mubr.f32.mxu0 0.0
  %2705 = vmatmul.mubr.f32.gmra.mxu0 %v2417
  %v2706 = vpop.f32.mrf.mxu0
  %v2707 = vadd.f32 0.0, %v2706
  %v2708 = vpop.f32.mrf.mxu0
  %2709 = vmatprep.mubr.f32.mxu0 0.0
  %2710 = vmatmul.mubr.f32.gmra.mxu0 %v2420
  %v2711 = vpop.f32.mrf.mxu0
  %v2712 = vadd.f32 0.0, %v2711
  %v2713 = vpop.f32.mrf.mxu0
  %2714 = vmatprep.mubr.f32.mxu0 0.0
  %2715 = vmatmul.mubr.f32.gmra.mxu0 %v2423
  %v2716 = vpop.f32.mrf.mxu0
  %v2717 = vadd.f32 0.0, %v2716
  %v2718 = vpop.f32.mrf.mxu0
  %2719 = vmatprep.mubr.f32.mxu0 0.0
  %2720 = vmatmul.mubr.f32.gmra.mxu0 %v2426
  %v2721 = vpop.f32.mrf.mxu0
  %v2722 = vadd.f32 0.0, %v2721
  %v2723 = vpop.f32.mrf.mxu0
  %2724 = vmatprep.mubr.f32.mxu0 0.0
  %2725 = vmatmul.mubr.f32.gmra.mxu0 %v2429
  %v2726 = vpop.f32.mrf.mxu0
  %v2727 = vadd.f32 0.0, %v2726
  %v2728 = vpop.f32.mrf.mxu0
  %2729 = vmatprep.mubr.f32.mxu0 0.0
  %2730 = vmatmul.mubr.f32.gmra.mxu0 %v2432
  %v2731 = vpop.f32.mrf.mxu0
  %v2732 = vadd.f32 0.0, %v2731
  %v2733 = vpop.f32.mrf.mxu0
  %2734 = vmatprep.mubr.f32.mxu0 0.0
  %2735 = vmatmul.mubr.f32.gmra.mxu0 %v2435
  %v2736 = vpop.f32.mrf.mxu0
  %v2737 = vadd.f32 0.0, %v2736
  %v2738 = vpop.f32.mrf.mxu0
  %2739 = vmatprep.mubr.f32.mxu0 0.0
  %2740 = vmatmul.mubr.f32.gmra.mxu0 %v2438
  %v2741 = vpop.f32.mrf.mxu0
  %v2742 = vadd.f32 0.0, %v2741
  %v2743 = vpop.f32.mrf.mxu0
  %2744 = vmatprep.mubr.f32.mxu0 0.0
  %2745 = vmatmul.mubr.f32.gmra.mxu0 %v2441
  %v2746 = vpop.f32.mrf.mxu0
  %v2747 = vadd.f32 0.0, %v2746
  %v2748 = vpop.f32.mrf.mxu0
  %2749 = vmatprep.mubr.f32.mxu0 0.0
  %2750 = vmatmul.mubr.f32.gmra.mxu0 %v2444
  %v2751 = vpop.f32.mrf.mxu0
  %v2752 = vadd.f32 0.0, %v2751
  %v2753 = vpop.f32.mrf.mxu0
  %2754 = vdwg.mxu0
  %s2755 = scalar_lea.vmem %s7, 128
  %v2756 = vld [vmem:[%s2755] sm:$0xff]
  %v2757 = vld [vmem:[%s2755 + $0x8] sm:$0xff]
  %v2758 = vld [vmem:[%s2755 + $0x10] sm:$0xff]
  %v2759 = vld [vmem:[%s2755 + $0x18] sm:$0xff]
  %v2760 = vld [vmem:[%s2755 + $0x20] sm:$0xff]
  %v2761 = vld [vmem:[%s2755 + $0x28] sm:$0xff]
  %v2762 = vld [vmem:[%s2755 + $0x30] sm:$0xff]
  %v2763 = vld [vmem:[%s2755 + $0x38] sm:$0xff]
  %v2764 = vld [vmem:[%s2755 + $0x40] sm:$0xff]
  %v2765 = vld [vmem:[%s2755 + $0x48] sm:$0xff]
  %v2766 = vld [vmem:[%s2755 + $0x50] sm:$0xff]
  %v2767 = vld [vmem:[%s2755 + $0x58] sm:$0xff]
  %v2768 = vld [vmem:[%s2755 + $0x60] sm:$0xff]
  %v2769 = vld [vmem:[%s2755 + $0x68] sm:$0xff]
  %v2770 = vld [vmem:[%s2755 + $0x70] sm:$0xff]
  %v2771 = vld [vmem:[%s2755 + $0x78] sm:$0xff]
  %2772 = vmatprep.subr.mxu0 0.0
  %2773 = vmatpush1.msra.mxu0 %v2752
  %2774 = vmatprep.subr.mxu0 0.0
  %2775 = vmatpush1.msra.mxu0 %v2747
  %2776 = vmatprep.subr.mxu0 0.0
  %2777 = vmatpush1.msra.mxu0 %v2742
  %2778 = vmatprep.subr.mxu0 0.0
  %2779 = vmatpush1.msra.mxu0 %v2737
  %2780 = vmatprep.subr.mxu0 0.0
  %2781 = vmatpush1.msra.mxu0 %v2732
  %2782 = vmatprep.subr.mxu0 0.0
  %2783 = vmatpush1.msra.mxu0 %v2727
  %2784 = vmatprep.subr.mxu0 0.0
  %2785 = vmatpush1.msra.mxu0 %v2722
  %2786 = vmatprep.subr.mxu0 0.0
  %2787 = vmatpush1.msra.mxu0 %v2717
  %2788 = vmatprep.subr.mxu0 0.0
  %2789 = vmatpush1.msra.mxu0 %v2712
  %2790 = vmatprep.subr.mxu0 0.0
  %2791 = vmatpush1.msra.mxu0 %v2707
  %2792 = vmatprep.subr.mxu0 0.0
  %2793 = vmatpush1.msra.mxu0 %v2702
  %2794 = vmatprep.subr.mxu0 0.0
  %2795 = vmatpush1.msra.mxu0 %v2697
  %2796 = vmatprep.subr.mxu0 0.0
  %2797 = vmatpush1.msra.mxu0 %v2692
  %2798 = vmatprep.subr.mxu0 0.0
  %2799 = vmatpush1.msra.mxu0 %v2687
  %2800 = vmatprep.subr.mxu0 0.0
  %2801 = vmatpush1.msra.mxu0 %v2682
  %2802 = vmatprep.subr.mxu0 0.0
  %2803 = vmatpush1.msra.mxu0 %v2677
  %2804 = vmatprep.subr.mxu0 0.0
  %2805 = vmatpush2.msra.mxu0 0.0
  %2806 = vmatprep.subr.mxu0 0.0
  %2807 = vmatpush2.msra.mxu0 0.0
  %2808 = vmatprep.subr.mxu0 0.0
  %2809 = vmatpush2.msra.mxu0 0.0
  %2810 = vmatprep.subr.mxu0 0.0
  %2811 = vmatpush2.msra.mxu0 0.0
  %2812 = vmatprep.subr.mxu0 0.0
  %2813 = vmatpush2.msra.mxu0 0.0
  %2814 = vmatprep.subr.mxu0 0.0
  %2815 = vmatpush2.msra.mxu0 0.0
  %2816 = vmatprep.subr.mxu0 0.0
  %2817 = vmatpush2.msra.mxu0 0.0
  %2818 = vmatprep.subr.mxu0 0.0
  %2819 = vmatpush2.msra.mxu0 0.0
  %2820 = vmatprep.subr.mxu0 0.0
  %2821 = vmatpush2.msra.mxu0 0.0
  %2822 = vmatprep.subr.mxu0 0.0
  %2823 = vmatpush2.msra.mxu0 0.0
  %2824 = vmatprep.subr.mxu0 0.0
  %2825 = vmatpush2.msra.mxu0 0.0
  %2826 = vmatprep.subr.mxu0 0.0
  %2827 = vmatpush2.msra.mxu0 0.0
  %2828 = vmatprep.subr.mxu0 0.0
  %2829 = vmatpush2.msra.mxu0 0.0
  %2830 = vmatprep.subr.mxu0 0.0
  %2831 = vmatpush2.msra.mxu0 0.0
  %2832 = vmatprep.subr.mxu0 0.0
  %2833 = vmatpush2.msra.mxu0 0.0
  %2834 = vmatprep.subr.mxu0 0.0
  %2835 = vmatpush2.msra.mxu0 0.0
  %2836 = vmatprep.mubr.f32.mxu0 0.0
  %2837 = vmatmul.mubr.f32.gmra.mxu0 %v2756
  %v2838 = vpop.f32.mrf.mxu0
  %v2839 = vadd.f32 0.0, %v2838
  %v2840 = vpop.f32.mrf.mxu0
  %2841 = vmatprep.mubr.f32.mxu0 0.0
  %2842 = vmatmul.mubr.f32.gmra.mxu0 %v2757
  %v2843 = vpop.f32.mrf.mxu0
  %v2844 = vadd.f32 0.0, %v2843
  %v2845 = vpop.f32.mrf.mxu0
  %2846 = vmatprep.mubr.f32.mxu0 0.0
  %2847 = vmatmul.mubr.f32.gmra.mxu0 %v2758
  %v2848 = vpop.f32.mrf.mxu0
  %v2849 = vadd.f32 0.0, %v2848
  %v2850 = vpop.f32.mrf.mxu0
  %2851 = vmatprep.mubr.f32.mxu0 0.0
  %2852 = vmatmul.mubr.f32.gmra.mxu0 %v2759
  %v2853 = vpop.f32.mrf.mxu0
  %v2854 = vadd.f32 0.0, %v2853
  %v2855 = vpop.f32.mrf.mxu0
  %2856 = vmatprep.mubr.f32.mxu0 0.0
  %2857 = vmatmul.mubr.f32.gmra.mxu0 %v2760
  %v2858 = vpop.f32.mrf.mxu0
  %v2859 = vadd.f32 0.0, %v2858
  %v2860 = vpop.f32.mrf.mxu0
  %2861 = vmatprep.mubr.f32.mxu0 0.0
  %2862 = vmatmul.mubr.f32.gmra.mxu0 %v2761
  %v2863 = vpop.f32.mrf.mxu0
  %v2864 = vadd.f32 0.0, %v2863
  %v2865 = vpop.f32.mrf.mxu0
  %2866 = vmatprep.mubr.f32.mxu0 0.0
  %2867 = vmatmul.mubr.f32.gmra.mxu0 %v2762
  %v2868 = vpop.f32.mrf.mxu0
  %v2869 = vadd.f32 0.0, %v2868
  %v2870 = vpop.f32.mrf.mxu0
  %2871 = vmatprep.mubr.f32.mxu0 0.0
  %2872 = vmatmul.mubr.f32.gmra.mxu0 %v2763
  %v2873 = vpop.f32.mrf.mxu0
  %v2874 = vadd.f32 0.0, %v2873
  %v2875 = vpop.f32.mrf.mxu0
  %2876 = vmatprep.mubr.f32.mxu0 0.0
  %2877 = vmatmul.mubr.f32.gmra.mxu0 %v2764
  %v2878 = vpop.f32.mrf.mxu0
  %v2879 = vadd.f32 0.0, %v2878
  %v2880 = vpop.f32.mrf.mxu0
  %2881 = vmatprep.mubr.f32.mxu0 0.0
  %2882 = vmatmul.mubr.f32.gmra.mxu0 %v2765
  %v2883 = vpop.f32.mrf.mxu0
  %v2884 = vadd.f32 0.0, %v2883
  %v2885 = vpop.f32.mrf.mxu0
  %2886 = vmatprep.mubr.f32.mxu0 0.0
  %2887 = vmatmul.mubr.f32.gmra.mxu0 %v2766
  %v2888 = vpop.f32.mrf.mxu0
  %v2889 = vadd.f32 0.0, %v2888
  %v2890 = vpop.f32.mrf.mxu0
  %2891 = vmatprep.mubr.f32.mxu0 0.0
  %2892 = vmatmul.mubr.f32.gmra.mxu0 %v2767
  %v2893 = vpop.f32.mrf.mxu0
  %v2894 = vadd.f32 0.0, %v2893
  %v2895 = vpop.f32.mrf.mxu0
  %2896 = vmatprep.mubr.f32.mxu0 0.0
  %2897 = vmatmul.mubr.f32.gmra.mxu0 %v2768
  %v2898 = vpop.f32.mrf.mxu0
  %v2899 = vadd.f32 0.0, %v2898
  %v2900 = vpop.f32.mrf.mxu0
  %2901 = vmatprep.mubr.f32.mxu0 0.0
  %2902 = vmatmul.mubr.f32.gmra.mxu0 %v2769
  %v2903 = vpop.f32.mrf.mxu0
  %v2904 = vadd.f32 0.0, %v2903
  %v2905 = vpop.f32.mrf.mxu0
  %2906 = vmatprep.mubr.f32.mxu0 0.0
  %2907 = vmatmul.mubr.f32.gmra.mxu0 %v2770
  %v2908 = vpop.f32.mrf.mxu0
  %v2909 = vadd.f32 0.0, %v2908
  %v2910 = vpop.f32.mrf.mxu0
  %2911 = vmatprep.mubr.f32.mxu0 0.0
  %2912 = vmatmul.mubr.f32.gmra.mxu0 %v2771
  %v2913 = vpop.f32.mrf.mxu0
  %v2914 = vadd.f32 0.0, %v2913
  %v2915 = vpop.f32.mrf.mxu0
  %2916 = vdwg.mxu0
  %2917 = vmatprep.subr.mxu0 0.0
  %2918 = vmatpush1.msra.mxu0 %v2588
  %2919 = vmatprep.subr.mxu0 0.0
  %2920 = vmatpush1.msra.mxu0 %v2583
  %2921 = vmatprep.subr.mxu0 0.0
  %2922 = vmatpush1.msra.mxu0 %v2578
  %2923 = vmatprep.subr.mxu0 0.0
  %2924 = vmatpush1.msra.mxu0 %v2573
  %2925 = vmatprep.subr.mxu0 0.0
  %2926 = vmatpush1.msra.mxu0 %v2568
  %2927 = vmatprep.subr.mxu0 0.0
  %2928 = vmatpush1.msra.mxu0 %v2563
  %2929 = vmatprep.subr.mxu0 0.0
  %2930 = vmatpush1.msra.mxu0 %v2558
  %2931 = vmatprep.subr.mxu0 0.0
  %2932 = vmatpush1.msra.mxu0 %v2553
  %2933 = vmatprep.subr.mxu0 0.0
  %2934 = vmatpush1.msra.mxu0 %v2548
  %2935 = vmatprep.subr.mxu0 0.0
  %2936 = vmatpush1.msra.mxu0 %v2543
  %2937 = vmatprep.subr.mxu0 0.0
  %2938 = vmatpush1.msra.mxu0 %v2538
  %2939 = vmatprep.subr.mxu0 0.0
  %2940 = vmatpush1.msra.mxu0 %v2533
  %2941 = vmatprep.subr.mxu0 0.0
  %2942 = vmatpush1.msra.mxu0 %v2528
  %2943 = vmatprep.subr.mxu0 0.0
  %2944 = vmatpush1.msra.mxu0 %v2523
  %2945 = vmatprep.subr.mxu0 0.0
  %2946 = vmatpush1.msra.mxu0 %v2518
  %2947 = vmatprep.subr.mxu0 0.0
  %2948 = vmatpush1.msra.mxu0 %v2513
  %2949 = vmatprep.subr.mxu0 0.0
  %2950 = vmatpush2.msra.mxu0 0.0
  %2951 = vmatprep.subr.mxu0 0.0
  %2952 = vmatpush2.msra.mxu0 0.0
  %2953 = vmatprep.subr.mxu0 0.0
  %2954 = vmatpush2.msra.mxu0 0.0
  %2955 = vmatprep.subr.mxu0 0.0
  %2956 = vmatpush2.msra.mxu0 0.0
  %2957 = vmatprep.subr.mxu0 0.0
  %2958 = vmatpush2.msra.mxu0 0.0
  %2959 = vmatprep.subr.mxu0 0.0
  %2960 = vmatpush2.msra.mxu0 0.0
  %2961 = vmatprep.subr.mxu0 0.0
  %2962 = vmatpush2.msra.mxu0 0.0
  %2963 = vmatprep.subr.mxu0 0.0
  %2964 = vmatpush2.msra.mxu0 0.0
  %2965 = vmatprep.subr.mxu0 0.0
  %2966 = vmatpush2.msra.mxu0 0.0
  %2967 = vmatprep.subr.mxu0 0.0
  %2968 = vmatpush2.msra.mxu0 0.0
  %2969 = vmatprep.subr.mxu0 0.0
  %2970 = vmatpush2.msra.mxu0 0.0
  %2971 = vmatprep.subr.mxu0 0.0
  %2972 = vmatpush2.msra.mxu0 0.0
  %2973 = vmatprep.subr.mxu0 0.0
  %2974 = vmatpush2.msra.mxu0 0.0
  %2975 = vmatprep.subr.mxu0 0.0
  %2976 = vmatpush2.msra.mxu0 0.0
  %2977 = vmatprep.subr.mxu0 0.0
  %2978 = vmatpush2.msra.mxu0 0.0
  %2979 = vmatprep.subr.mxu0 0.0
  %2980 = vmatpush2.msra.mxu0 0.0
  %2981 = vmatprep.mubr.f32.mxu0 0.0
  %2982 = vmatmul.mubr.f32.gmra.mxu0 %v2591
  %v2983 = vpop.f32.mrf.mxu0
  %v2984 = vadd.f32 %v2839, %v2983
  %v2985 = vpop.f32.mrf.mxu0
  %2986 = vmatprep.mubr.f32.mxu0 0.0
  %2987 = vmatmul.mubr.f32.gmra.mxu0 %v2592
  %v2988 = vpop.f32.mrf.mxu0
  %v2989 = vadd.f32 %v2844, %v2988
  %v2990 = vpop.f32.mrf.mxu0
  %2991 = vmatprep.mubr.f32.mxu0 0.0
  %2992 = vmatmul.mubr.f32.gmra.mxu0 %v2593
  %v2993 = vpop.f32.mrf.mxu0
  %v2994 = vadd.f32 %v2849, %v2993
  %v2995 = vpop.f32.mrf.mxu0
  %2996 = vmatprep.mubr.f32.mxu0 0.0
  %2997 = vmatmul.mubr.f32.gmra.mxu0 %v2594
  %v2998 = vpop.f32.mrf.mxu0
  %v2999 = vadd.f32 %v2854, %v2998
  %v3000 = vpop.f32.mrf.mxu0
  %3001 = vmatprep.mubr.f32.mxu0 0.0
  %3002 = vmatmul.mubr.f32.gmra.mxu0 %v2595
  %v3003 = vpop.f32.mrf.mxu0
  %v3004 = vadd.f32 %v2859, %v3003
  %v3005 = vpop.f32.mrf.mxu0
  %3006 = vmatprep.mubr.f32.mxu0 0.0
  %3007 = vmatmul.mubr.f32.gmra.mxu0 %v2596
  %v3008 = vpop.f32.mrf.mxu0
  %v3009 = vadd.f32 %v2864, %v3008
  %v3010 = vpop.f32.mrf.mxu0
  %3011 = vmatprep.mubr.f32.mxu0 0.0
  %3012 = vmatmul.mubr.f32.gmra.mxu0 %v2597
  %v3013 = vpop.f32.mrf.mxu0
  %v3014 = vadd.f32 %v2869, %v3013
  %v3015 = vpop.f32.mrf.mxu0
  %3016 = vmatprep.mubr.f32.mxu0 0.0
  %3017 = vmatmul.mubr.f32.gmra.mxu0 %v2598
  %v3018 = vpop.f32.mrf.mxu0
  %v3019 = vadd.f32 %v2874, %v3018
  %v3020 = vpop.f32.mrf.mxu0
  %3021 = vmatprep.mubr.f32.mxu0 0.0
  %3022 = vmatmul.mubr.f32.gmra.mxu0 %v2599
  %v3023 = vpop.f32.mrf.mxu0
  %v3024 = vadd.f32 %v2879, %v3023
  %v3025 = vpop.f32.mrf.mxu0
  %3026 = vmatprep.mubr.f32.mxu0 0.0
  %3027 = vmatmul.mubr.f32.gmra.mxu0 %v2600
  %v3028 = vpop.f32.mrf.mxu0
  %v3029 = vadd.f32 %v2884, %v3028
  %v3030 = vpop.f32.mrf.mxu0
  %3031 = vmatprep.mubr.f32.mxu0 0.0
  %3032 = vmatmul.mubr.f32.gmra.mxu0 %v2601
  %v3033 = vpop.f32.mrf.mxu0
  %v3034 = vadd.f32 %v2889, %v3033
  %v3035 = vpop.f32.mrf.mxu0
  %3036 = vmatprep.mubr.f32.mxu0 0.0
  %3037 = vmatmul.mubr.f32.gmra.mxu0 %v2602
  %v3038 = vpop.f32.mrf.mxu0
  %v3039 = vadd.f32 %v2894, %v3038
  %v3040 = vpop.f32.mrf.mxu0
  %3041 = vmatprep.mubr.f32.mxu0 0.0
  %3042 = vmatmul.mubr.f32.gmra.mxu0 %v2603
  %v3043 = vpop.f32.mrf.mxu0
  %v3044 = vadd.f32 %v2899, %v3043
  %v3045 = vpop.f32.mrf.mxu0
  %3046 = vmatprep.mubr.f32.mxu0 0.0
  %3047 = vmatmul.mubr.f32.gmra.mxu0 %v2604
  %v3048 = vpop.f32.mrf.mxu0
  %v3049 = vadd.f32 %v2904, %v3048
  %v3050 = vpop.f32.mrf.mxu0
  %3051 = vmatprep.mubr.f32.mxu0 0.0
  %3052 = vmatmul.mubr.f32.gmra.mxu0 %v2605
  %v3053 = vpop.f32.mrf.mxu0
  %v3054 = vadd.f32 %v2909, %v3053
  %v3055 = vpop.f32.mrf.mxu0
  %3056 = vmatprep.mubr.f32.mxu0 0.0
  %3057 = vmatmul.mubr.f32.gmra.mxu0 %v2606
  %v3058 = vpop.f32.mrf.mxu0
  %v3059 = vadd.f32 %v2914, %v3058
  %v3060 = vpop.f32.mrf.mxu0
  %3061 = vdwg.mxu0
  %s3062 = scalar_lea.vmem %s8, 32
  %v3063 = vld [vmem:[%s3062] sm:$0xff]
  %v3064 = vld [vmem:[%s3062 + $0x8] sm:$0xff]
  %3065 = vmatprep.subr.mxu0 0.0
  %3066 = vmatpush1.msra.mxu0 0.0
  %3067 = vmatprep.subr.mxu0 0.0
  %3068 = vmatpush1.msra.mxu0 0.0
  %3069 = vmatprep.subr.mxu0 0.0
  %3070 = vmatpush1.msra.mxu0 0.0
  %3071 = vmatprep.subr.mxu0 0.0
  %3072 = vmatpush1.msra.mxu0 0.0
  %3073 = vmatprep.subr.mxu0 0.0
  %3074 = vmatpush1.msra.mxu0 0.0
  %3075 = vmatprep.subr.mxu0 0.0
  %3076 = vmatpush1.msra.mxu0 0.0
  %3077 = vmatprep.subr.mxu0 0.0
  %3078 = vmatpush1.msra.mxu0 0.0
  %3079 = vmatprep.subr.mxu0 0.0
  %3080 = vmatpush1.msra.mxu0 0.0
  %3081 = vmatprep.subr.mxu0 0.0
  %3082 = vmatpush1.msra.mxu0 0.0
  %3083 = vmatprep.subr.mxu0 0.0
  %3084 = vmatpush1.msra.mxu0 0.0
  %3085 = vmatprep.subr.mxu0 0.0
  %3086 = vmatpush1.msra.mxu0 0.0
  %3087 = vmatprep.subr.mxu0 0.0
  %3088 = vmatpush1.msra.mxu0 0.0
  %3089 = vmatprep.subr.mxu0 0.0
  %3090 = vmatpush1.msra.mxu0 0.0
  %3091 = vmatprep.subr.mxu0 0.0
  %3092 = vmatpush1.msra.mxu0 0.0
  %3093 = vmatprep.subr.mxu0 0.0
  %3094 = vmatpush1.msra.mxu0 %v3064
  %3095 = vmatprep.subr.mxu0 0.0
  %3096 = vmatpush1.msra.mxu0 %v3063
  %3097 = vmatprep.subr.mxu0 0.0
  %3098 = vmatpush2.msra.mxu0 0.0
  %3099 = vmatprep.subr.mxu0 0.0
  %3100 = vmatpush2.msra.mxu0 0.0
  %3101 = vmatprep.subr.mxu0 0.0
  %3102 = vmatpush2.msra.mxu0 0.0
  %3103 = vmatprep.subr.mxu0 0.0
  %3104 = vmatpush2.msra.mxu0 0.0
  %3105 = vmatprep.subr.mxu0 0.0
  %3106 = vmatpush2.msra.mxu0 0.0
  %3107 = vmatprep.subr.mxu0 0.0
  %3108 = vmatpush2.msra.mxu0 0.0
  %3109 = vmatprep.subr.mxu0 0.0
  %3110 = vmatpush2.msra.mxu0 0.0
  %3111 = vmatprep.subr.mxu0 0.0
  %3112 = vmatpush2.msra.mxu0 0.0
  %3113 = vmatprep.subr.mxu0 0.0
  %3114 = vmatpush2.msra.mxu0 0.0
  %3115 = vmatprep.subr.mxu0 0.0
  %3116 = vmatpush2.msra.mxu0 0.0
  %3117 = vmatprep.subr.mxu0 0.0
  %3118 = vmatpush2.msra.mxu0 0.0
  %3119 = vmatprep.subr.mxu0 0.0
  %3120 = vmatpush2.msra.mxu0 0.0
  %3121 = vmatprep.subr.mxu0 0.0
  %3122 = vmatpush2.msra.mxu0 0.0
  %3123 = vmatprep.subr.mxu0 0.0
  %3124 = vmatpush2.msra.mxu0 0.0
  %3125 = vmatprep.subr.mxu0 0.0
  %3126 = vmatpush2.msra.mxu0 0.0
  %3127 = vmatprep.subr.mxu0 0.0
  %3128 = vmatpush2.msra.mxu0 0.0
  %3129 = vmatprep.mubr.f32.mxu0 0.0
  %3130 = vmatmul.mubr.f32.gmra.mxu0 %v2399
  %v3131 = vpop.f32.mrf.mxu0
  %v3132 = vadd.f32 0.0, %v3131
  %v3133 = vpop.f32.mrf.mxu0
  %3134 = vmatprep.mubr.f32.mxu0 0.0
  %3135 = vmatmul.mubr.f32.gmra.mxu0 %v2402
  %v3136 = vpop.f32.mrf.mxu0
  %v3137 = vadd.f32 0.0, %v3136
  %v3138 = vpop.f32.mrf.mxu0
  %3139 = vmatprep.mubr.f32.mxu0 0.0
  %3140 = vmatmul.mubr.f32.gmra.mxu0 %v2405
  %v3141 = vpop.f32.mrf.mxu0
  %v3142 = vadd.f32 0.0, %v3141
  %v3143 = vpop.f32.mrf.mxu0
  %3144 = vmatprep.mubr.f32.mxu0 0.0
  %3145 = vmatmul.mubr.f32.gmra.mxu0 %v2408
  %v3146 = vpop.f32.mrf.mxu0
  %v3147 = vadd.f32 0.0, %v3146
  %v3148 = vpop.f32.mrf.mxu0
  %3149 = vmatprep.mubr.f32.mxu0 0.0
  %3150 = vmatmul.mubr.f32.gmra.mxu0 %v2411
  %v3151 = vpop.f32.mrf.mxu0
  %v3152 = vadd.f32 0.0, %v3151
  %v3153 = vpop.f32.mrf.mxu0
  %3154 = vmatprep.mubr.f32.mxu0 0.0
  %3155 = vmatmul.mubr.f32.gmra.mxu0 %v2414
  %v3156 = vpop.f32.mrf.mxu0
  %v3157 = vadd.f32 0.0, %v3156
  %v3158 = vpop.f32.mrf.mxu0
  %3159 = vmatprep.mubr.f32.mxu0 0.0
  %3160 = vmatmul.mubr.f32.gmra.mxu0 %v2417
  %v3161 = vpop.f32.mrf.mxu0
  %v3162 = vadd.f32 0.0, %v3161
  %v3163 = vpop.f32.mrf.mxu0
  %3164 = vmatprep.mubr.f32.mxu0 0.0
  %3165 = vmatmul.mubr.f32.gmra.mxu0 %v2420
  %v3166 = vpop.f32.mrf.mxu0
  %v3167 = vadd.f32 0.0, %v3166
  %v3168 = vpop.f32.mrf.mxu0
  %3169 = vmatprep.mubr.f32.mxu0 0.0
  %3170 = vmatmul.mubr.f32.gmra.mxu0 %v2423
  %v3171 = vpop.f32.mrf.mxu0
  %v3172 = vadd.f32 0.0, %v3171
  %v3173 = vpop.f32.mrf.mxu0
  %3174 = vmatprep.mubr.f32.mxu0 0.0
  %3175 = vmatmul.mubr.f32.gmra.mxu0 %v2426
  %v3176 = vpop.f32.mrf.mxu0
  %v3177 = vadd.f32 0.0, %v3176
  %v3178 = vpop.f32.mrf.mxu0
  %3179 = vmatprep.mubr.f32.mxu0 0.0
  %3180 = vmatmul.mubr.f32.gmra.mxu0 %v2429
  %v3181 = vpop.f32.mrf.mxu0
  %v3182 = vadd.f32 0.0, %v3181
  %v3183 = vpop.f32.mrf.mxu0
  %3184 = vmatprep.mubr.f32.mxu0 0.0
  %3185 = vmatmul.mubr.f32.gmra.mxu0 %v2432
  %v3186 = vpop.f32.mrf.mxu0
  %v3187 = vadd.f32 0.0, %v3186
  %v3188 = vpop.f32.mrf.mxu0
  %3189 = vmatprep.mubr.f32.mxu0 0.0
  %3190 = vmatmul.mubr.f32.gmra.mxu0 %v2435
  %v3191 = vpop.f32.mrf.mxu0
  %v3192 = vadd.f32 0.0, %v3191
  %v3193 = vpop.f32.mrf.mxu0
  %3194 = vmatprep.mubr.f32.mxu0 0.0
  %3195 = vmatmul.mubr.f32.gmra.mxu0 %v2438
  %v3196 = vpop.f32.mrf.mxu0
  %v3197 = vadd.f32 0.0, %v3196
  %v3198 = vpop.f32.mrf.mxu0
  %3199 = vmatprep.mubr.f32.mxu0 0.0
  %3200 = vmatmul.mubr.f32.gmra.mxu0 %v2441
  %v3201 = vpop.f32.mrf.mxu0
  %v3202 = vadd.f32 0.0, %v3201
  %v3203 = vpop.f32.mrf.mxu0
  %3204 = vmatprep.mubr.f32.mxu0 0.0
  %3205 = vmatmul.mubr.f32.gmra.mxu0 %v2444
  %v3206 = vpop.f32.mrf.mxu0
  %v3207 = vadd.f32 0.0, %v3206
  %v3208 = vpop.f32.mrf.mxu0
  %3209 = vdwg.mxu0
  %s3210 = scalar_lea.vmem %s7, 256
  %v3211 = vld [vmem:[%s3210] sm:$0xff]
  %v3212 = vld [vmem:[%s3210 + $0x8] sm:$0xff]
  %v3213 = vld [vmem:[%s3210 + $0x10] sm:$0xff]
  %v3214 = vld [vmem:[%s3210 + $0x18] sm:$0xff]
  %v3215 = vld [vmem:[%s3210 + $0x20] sm:$0xff]
  %v3216 = vld [vmem:[%s3210 + $0x28] sm:$0xff]
  %v3217 = vld [vmem:[%s3210 + $0x30] sm:$0xff]
  %v3218 = vld [vmem:[%s3210 + $0x38] sm:$0xff]
  %v3219 = vld [vmem:[%s3210 + $0x40] sm:$0xff]
  %v3220 = vld [vmem:[%s3210 + $0x48] sm:$0xff]
  %v3221 = vld [vmem:[%s3210 + $0x50] sm:$0xff]
  %v3222 = vld [vmem:[%s3210 + $0x58] sm:$0xff]
  %v3223 = vld [vmem:[%s3210 + $0x60] sm:$0xff]
  %v3224 = vld [vmem:[%s3210 + $0x68] sm:$0xff]
  %v3225 = vld [vmem:[%s3210 + $0x70] sm:$0xff]
  %v3226 = vld [vmem:[%s3210 + $0x78] sm:$0xff]
  %3227 = vmatprep.subr.mxu0 0.0
  %3228 = vmatpush1.msra.mxu0 %v3207
  %3229 = vmatprep.subr.mxu0 0.0
  %3230 = vmatpush1.msra.mxu0 %v3202
  %3231 = vmatprep.subr.mxu0 0.0
  %3232 = vmatpush1.msra.mxu0 %v3197
  %3233 = vmatprep.subr.mxu0 0.0
  %3234 = vmatpush1.msra.mxu0 %v3192
  %3235 = vmatprep.subr.mxu0 0.0
  %3236 = vmatpush1.msra.mxu0 %v3187
  %3237 = vmatprep.subr.mxu0 0.0
  %3238 = vmatpush1.msra.mxu0 %v3182
  %3239 = vmatprep.subr.mxu0 0.0
  %3240 = vmatpush1.msra.mxu0 %v3177
  %3241 = vmatprep.subr.mxu0 0.0
  %3242 = vmatpush1.msra.mxu0 %v3172
  %3243 = vmatprep.subr.mxu0 0.0
  %3244 = vmatpush1.msra.mxu0 %v3167
  %3245 = vmatprep.subr.mxu0 0.0
  %3246 = vmatpush1.msra.mxu0 %v3162
  %3247 = vmatprep.subr.mxu0 0.0
  %3248 = vmatpush1.msra.mxu0 %v3157
  %3249 = vmatprep.subr.mxu0 0.0
  %3250 = vmatpush1.msra.mxu0 %v3152
  %3251 = vmatprep.subr.mxu0 0.0
  %3252 = vmatpush1.msra.mxu0 %v3147
  %3253 = vmatprep.subr.mxu0 0.0
  %3254 = vmatpush1.msra.mxu0 %v3142
  %3255 = vmatprep.subr.mxu0 0.0
  %3256 = vmatpush1.msra.mxu0 %v3137
  %3257 = vmatprep.subr.mxu0 0.0
  %3258 = vmatpush1.msra.mxu0 %v3132
  %3259 = vmatprep.subr.mxu0 0.0
  %3260 = vmatpush2.msra.mxu0 0.0
  %3261 = vmatprep.subr.mxu0 0.0
  %3262 = vmatpush2.msra.mxu0 0.0
  %3263 = vmatprep.subr.mxu0 0.0
  %3264 = vmatpush2.msra.mxu0 0.0
  %3265 = vmatprep.subr.mxu0 0.0
  %3266 = vmatpush2.msra.mxu0 0.0
  %3267 = vmatprep.subr.mxu0 0.0
  %3268 = vmatpush2.msra.mxu0 0.0
  %3269 = vmatprep.subr.mxu0 0.0
  %3270 = vmatpush2.msra.mxu0 0.0
  %3271 = vmatprep.subr.mxu0 0.0
  %3272 = vmatpush2.msra.mxu0 0.0
  %3273 = vmatprep.subr.mxu0 0.0
  %3274 = vmatpush2.msra.mxu0 0.0
  %3275 = vmatprep.subr.mxu0 0.0
  %3276 = vmatpush2.msra.mxu0 0.0
  %3277 = vmatprep.subr.mxu0 0.0
  %3278 = vmatpush2.msra.mxu0 0.0
  %3279 = vmatprep.subr.mxu0 0.0
  %3280 = vmatpush2.msra.mxu0 0.0
  %3281 = vmatprep.subr.mxu0 0.0
  %3282 = vmatpush2.msra.mxu0 0.0
  %3283 = vmatprep.subr.mxu0 0.0
  %3284 = vmatpush2.msra.mxu0 0.0
  %3285 = vmatprep.subr.mxu0 0.0
  %3286 = vmatpush2.msra.mxu0 0.0
  %3287 = vmatprep.subr.mxu0 0.0
  %3288 = vmatpush2.msra.mxu0 0.0
  %3289 = vmatprep.subr.mxu0 0.0
  %3290 = vmatpush2.msra.mxu0 0.0
  %3291 = vmatprep.mubr.f32.mxu0 0.0
  %3292 = vmatmul.mubr.f32.gmra.mxu0 %v3211
  %v3293 = vpop.f32.mrf.mxu0
  %v3294 = vadd.f32 0.0, %v3293
  %v3295 = vpop.f32.mrf.mxu0
  %3296 = vmatprep.mubr.f32.mxu0 0.0
  %3297 = vmatmul.mubr.f32.gmra.mxu0 %v3212
  %v3298 = vpop.f32.mrf.mxu0
  %v3299 = vadd.f32 0.0, %v3298
  %v3300 = vpop.f32.mrf.mxu0
  %3301 = vmatprep.mubr.f32.mxu0 0.0
  %3302 = vmatmul.mubr.f32.gmra.mxu0 %v3213
  %v3303 = vpop.f32.mrf.mxu0
  %v3304 = vadd.f32 0.0, %v3303
  %v3305 = vpop.f32.mrf.mxu0
  %3306 = vmatprep.mubr.f32.mxu0 0.0
  %3307 = vmatmul.mubr.f32.gmra.mxu0 %v3214
  %v3308 = vpop.f32.mrf.mxu0
  %v3309 = vadd.f32 0.0, %v3308
  %v3310 = vpop.f32.mrf.mxu0
  %3311 = vmatprep.mubr.f32.mxu0 0.0
  %3312 = vmatmul.mubr.f32.gmra.mxu0 %v3215
  %v3313 = vpop.f32.mrf.mxu0
  %v3314 = vadd.f32 0.0, %v3313
  %v3315 = vpop.f32.mrf.mxu0
  %3316 = vmatprep.mubr.f32.mxu0 0.0
  %3317 = vmatmul.mubr.f32.gmra.mxu0 %v3216
  %v3318 = vpop.f32.mrf.mxu0
  %v3319 = vadd.f32 0.0, %v3318
  %v3320 = vpop.f32.mrf.mxu0
  %3321 = vmatprep.mubr.f32.mxu0 0.0
  %3322 = vmatmul.mubr.f32.gmra.mxu0 %v3217
  %v3323 = vpop.f32.mrf.mxu0
  %v3324 = vadd.f32 0.0, %v3323
  %v3325 = vpop.f32.mrf.mxu0
  %3326 = vmatprep.mubr.f32.mxu0 0.0
  %3327 = vmatmul.mubr.f32.gmra.mxu0 %v3218
  %v3328 = vpop.f32.mrf.mxu0
  %v3329 = vadd.f32 0.0, %v3328
  %v3330 = vpop.f32.mrf.mxu0
  %3331 = vmatprep.mubr.f32.mxu0 0.0
  %3332 = vmatmul.mubr.f32.gmra.mxu0 %v3219
  %v3333 = vpop.f32.mrf.mxu0
  %v3334 = vadd.f32 0.0, %v3333
  %v3335 = vpop.f32.mrf.mxu0
  %3336 = vmatprep.mubr.f32.mxu0 0.0
  %3337 = vmatmul.mubr.f32.gmra.mxu0 %v3220
  %v3338 = vpop.f32.mrf.mxu0
  %v3339 = vadd.f32 0.0, %v3338
  %v3340 = vpop.f32.mrf.mxu0
  %3341 = vmatprep.mubr.f32.mxu0 0.0
  %3342 = vmatmul.mubr.f32.gmra.mxu0 %v3221
  %v3343 = vpop.f32.mrf.mxu0
  %v3344 = vadd.f32 0.0, %v3343
  %v3345 = vpop.f32.mrf.mxu0
  %3346 = vmatprep.mubr.f32.mxu0 0.0
  %3347 = vmatmul.mubr.f32.gmra.mxu0 %v3222
  %v3348 = vpop.f32.mrf.mxu0
  %v3349 = vadd.f32 0.0, %v3348
  %v3350 = vpop.f32.mrf.mxu0
  %3351 = vmatprep.mubr.f32.mxu0 0.0
  %3352 = vmatmul.mubr.f32.gmra.mxu0 %v3223
  %v3353 = vpop.f32.mrf.mxu0
  %v3354 = vadd.f32 0.0, %v3353
  %v3355 = vpop.f32.mrf.mxu0
  %3356 = vmatprep.mubr.f32.mxu0 0.0
  %3357 = vmatmul.mubr.f32.gmra.mxu0 %v3224
  %v3358 = vpop.f32.mrf.mxu0
  %v3359 = vadd.f32 0.0, %v3358
  %v3360 = vpop.f32.mrf.mxu0
  %3361 = vmatprep.mubr.f32.mxu0 0.0
  %3362 = vmatmul.mubr.f32.gmra.mxu0 %v3225
  %v3363 = vpop.f32.mrf.mxu0
  %v3364 = vadd.f32 0.0, %v3363
  %v3365 = vpop.f32.mrf.mxu0
  %3366 = vmatprep.mubr.f32.mxu0 0.0
  %3367 = vmatmul.mubr.f32.gmra.mxu0 %v3226
  %v3368 = vpop.f32.mrf.mxu0
  %v3369 = vadd.f32 0.0, %v3368
  %v3370 = vpop.f32.mrf.mxu0
  %3371 = vdwg.mxu0
  %v3372 = vadd.f32 %v2984, %v3294
  %v3373 = vadd.f32 %v2989, %v3299
  %v3374 = vadd.f32 %v2994, %v3304
  %v3375 = vadd.f32 %v2999, %v3309
  %v3376 = vadd.f32 %v3004, %v3314
  %v3377 = vadd.f32 %v3009, %v3319
  %v3378 = vadd.f32 %v3014, %v3324
  %v3379 = vadd.f32 %v3019, %v3329
  %v3380 = vadd.f32 %v3024, %v3334
  %v3381 = vadd.f32 %v3029, %v3339
  %v3382 = vadd.f32 %v3034, %v3344
  %v3383 = vadd.f32 %v3039, %v3349
  %v3384 = vadd.f32 %v3044, %v3354
  %v3385 = vadd.f32 %v3049, %v3359
  %v3386 = vadd.f32 %v3054, %v3364
  %v3387 = vadd.f32 %v3059, %v3369
  %v3388 = vld [vmem:[%s9] sm:$0xff]
  %v3389 = vld [vmem:[%s9 + $0x8] sm:$0xff]
  %v3390 = vld [vmem:[%s9 + $0x10] sm:$0xff]
  %v3391 = vld [vmem:[%s9 + $0x18] sm:$0xff]
  %v3392 = vld [vmem:[%s9 + $0x20] sm:$0xff]
  %v3393 = vld [vmem:[%s9 + $0x28] sm:$0xff]
  %v3394 = vld [vmem:[%s9 + $0x30] sm:$0xff]
  %v3395 = vld [vmem:[%s9 + $0x38] sm:$0xff]
  %v3396 = vld [vmem:[%s9 + $0x40] sm:$0xff]
  %v3397 = vld [vmem:[%s9 + $0x48] sm:$0xff]
  %v3398 = vld [vmem:[%s9 + $0x50] sm:$0xff]
  %v3399 = vld [vmem:[%s9 + $0x58] sm:$0xff]
  %v3400 = vld [vmem:[%s9 + $0x60] sm:$0xff]
  %v3401 = vld [vmem:[%s9 + $0x68] sm:$0xff]
  %v3402 = vld [vmem:[%s9 + $0x70] sm:$0xff]
  %v3403 = vld [vmem:[%s9 + $0x78] sm:$0xff]
  %3405 = vset.pattern.permute.xlu0 0
  %3406 = vperm.xlu0 %3405, %v3388
  %v3407 = vpop.permute.xlu0 %3406
  %3410 = vset.pattern.permute.xlu0 0
  %3411 = vperm.xlu0 %3410, %v3389
  %v3412 = vpop.permute.xlu0 %3411
  %3415 = vset.pattern.permute.xlu0 0
  %3416 = vperm.xlu0 %3415, %v3390
  %v3417 = vpop.permute.xlu0 %3416
  %3420 = vset.pattern.permute.xlu0 0
  %3421 = vperm.xlu0 %3420, %v3391
  %v3422 = vpop.permute.xlu0 %3421
  %3425 = vset.pattern.permute.xlu0 0
  %3426 = vperm.xlu0 %3425, %v3392
  %v3427 = vpop.permute.xlu0 %3426
  %3430 = vset.pattern.permute.xlu0 0
  %3431 = vperm.xlu0 %3430, %v3393
  %v3432 = vpop.permute.xlu0 %3431
  %3435 = vset.pattern.permute.xlu0 0
  %3436 = vperm.xlu0 %3435, %v3394
  %v3437 = vpop.permute.xlu0 %3436
  %3440 = vset.pattern.permute.xlu0 0
  %3441 = vperm.xlu0 %3440, %v3395
  %v3442 = vpop.permute.xlu0 %3441
  %3445 = vset.pattern.permute.xlu0 0
  %3446 = vperm.xlu0 %3445, %v3396
  %v3447 = vpop.permute.xlu0 %3446
  %3450 = vset.pattern.permute.xlu0 0
  %3451 = vperm.xlu0 %3450, %v3397
  %v3452 = vpop.permute.xlu0 %3451
  %3455 = vset.pattern.permute.xlu0 0
  %3456 = vperm.xlu0 %3455, %v3398
  %v3457 = vpop.permute.xlu0 %3456
  %3460 = vset.pattern.permute.xlu0 0
  %3461 = vperm.xlu0 %3460, %v3399
  %v3462 = vpop.permute.xlu0 %3461
  %3465 = vset.pattern.permute.xlu0 0
  %3466 = vperm.xlu0 %3465, %v3400
  %v3467 = vpop.permute.xlu0 %3466
  %3470 = vset.pattern.permute.xlu0 0
  %3471 = vperm.xlu0 %3470, %v3401
  %v3472 = vpop.permute.xlu0 %3471
  %3475 = vset.pattern.permute.xlu0 0
  %3476 = vperm.xlu0 %3475, %v3402
  %v3477 = vpop.permute.xlu0 %3476
  %3480 = vset.pattern.permute.xlu0 0
  %3481 = vperm.xlu0 %3480, %v3403
  %v3482 = vpop.permute.xlu0 %3481
  %v3484 = vadd.f32 %v3372, %v3407
  %v3485 = vadd.f32 %v3373, %v3412
  %v3486 = vadd.f32 %v3374, %v3417
  %v3487 = vadd.f32 %v3375, %v3422
  %v3488 = vadd.f32 %v3376, %v3427
  %v3489 = vadd.f32 %v3377, %v3432
  %v3490 = vadd.f32 %v3378, %v3437
  %v3491 = vadd.f32 %v3379, %v3442
  %v3492 = vadd.f32 %v3380, %v3447
  %v3493 = vadd.f32 %v3381, %v3452
  %v3494 = vadd.f32 %v3382, %v3457
  %v3495 = vadd.f32 %v3383, %v3462
  %v3496 = vadd.f32 %v3384, %v3467
  %v3497 = vadd.f32 %v3385, %v3472
  %v3498 = vadd.f32 %v3386, %v3477
  %v3499 = vadd.f32 %v3387, %v3482
  %v3500 = vmax.f32 %v3484, 0.0
  %v3501 = vmax.f32 %v3485, 0.0
  %v3502 = vmax.f32 %v3486, 0.0
  %v3503 = vmax.f32 %v3487, 0.0
  %v3504 = vmax.f32 %v3488, 0.0
  %v3505 = vmax.f32 %v3489, 0.0
  %v3506 = vmax.f32 %v3490, 0.0
  %v3507 = vmax.f32 %v3491, 0.0
  %v3508 = vmax.f32 %v3492, 0.0
  %v3509 = vmax.f32 %v3493, 0.0
  %v3510 = vmax.f32 %v3494, 0.0
  %v3511 = vmax.f32 %v3495, 0.0
  %v3512 = vmax.f32 %v3496, 0.0
  %v3513 = vmax.f32 %v3497, 0.0
  %v3514 = vmax.f32 %v3498, 0.0
  %v3515 = vmax.f32 %v3499, 0.0
  %v3516 = vld [vmem:[%s11] sm:$0xff]
  %vm3517 = vcmask 64512
  %v3519 = vsel %vm3517, %v3500, 0
  %v3522 = vsel %vm3517, %v3501, 0
  %v3525 = vsel %vm3517, %v3502, 0
  %v3528 = vsel %vm3517, %v3503, 0
  %v3531 = vsel %vm3517, %v3504, 0
  %v3534 = vsel %vm3517, %v3505, 0
  %v3537 = vsel %vm3517, %v3506, 0
  %v3540 = vsel %vm3517, %v3507, 0
  %v3543 = vsel %vm3517, %v3508, 0
  %v3546 = vsel %vm3517, %v3509, 0
  %v3549 = vsel %vm3517, %v3510, 0
  %v3552 = vsel %vm3517, %v3511, 0
  %v3555 = vsel %vm3517, %v3512, 0
  %v3558 = vsel %vm3517, %v3513, 0
  %v3561 = vsel %vm3517, %v3514, 0
  %v3564 = vsel %vm3517, %v3515, 0
  %3566 = vmatprep.subr.mxu0 0.0
  %3567 = vmatpush1.msra.mxu0 0.0
  %3568 = vmatprep.subr.mxu0 0.0
  %3569 = vmatpush1.msra.mxu0 0.0
  %3570 = vmatprep.subr.mxu0 0.0
  %3571 = vmatpush1.msra.mxu0 0.0
  %3572 = vmatprep.subr.mxu0 0.0
  %3573 = vmatpush1.msra.mxu0 0.0
  %3574 = vmatprep.subr.mxu0 0.0
  %3575 = vmatpush1.msra.mxu0 0.0
  %3576 = vmatprep.subr.mxu0 0.0
  %3577 = vmatpush1.msra.mxu0 0.0
  %3578 = vmatprep.subr.mxu0 0.0
  %3579 = vmatpush1.msra.mxu0 0.0
  %3580 = vmatprep.subr.mxu0 0.0
  %3581 = vmatpush1.msra.mxu0 0.0
  %3582 = vmatprep.subr.mxu0 0.0
  %3583 = vmatpush1.msra.mxu0 0.0
  %3584 = vmatprep.subr.mxu0 0.0
  %3585 = vmatpush1.msra.mxu0 0.0
  %3586 = vmatprep.subr.mxu0 0.0
  %3587 = vmatpush1.msra.mxu0 0.0
  %3588 = vmatprep.subr.mxu0 0.0
  %3589 = vmatpush1.msra.mxu0 0.0
  %3590 = vmatprep.subr.mxu0 0.0
  %3591 = vmatpush1.msra.mxu0 0.0
  %3592 = vmatprep.subr.mxu0 0.0
  %3593 = vmatpush1.msra.mxu0 0.0
  %3594 = vmatprep.subr.mxu0 0.0
  %3595 = vmatpush1.msra.mxu0 0.0
  %3596 = vmatprep.subr.mxu0 0.0
  %3597 = vmatpush1.msra.mxu0 %v3516
  %3598 = vmatprep.subr.mxu0 0.0
  %3599 = vmatpush2.msra.mxu0 0.0
  %3600 = vmatprep.subr.mxu0 0.0
  %3601 = vmatpush2.msra.mxu0 0.0
  %3602 = vmatprep.subr.mxu0 0.0
  %3603 = vmatpush2.msra.mxu0 0.0
  %3604 = vmatprep.subr.mxu0 0.0
  %3605 = vmatpush2.msra.mxu0 0.0
  %3606 = vmatprep.subr.mxu0 0.0
  %3607 = vmatpush2.msra.mxu0 0.0
  %3608 = vmatprep.subr.mxu0 0.0
  %3609 = vmatpush2.msra.mxu0 0.0
  %3610 = vmatprep.subr.mxu0 0.0
  %3611 = vmatpush2.msra.mxu0 0.0
  %3612 = vmatprep.subr.mxu0 0.0
  %3613 = vmatpush2.msra.mxu0 0.0
  %3614 = vmatprep.subr.mxu0 0.0
  %3615 = vmatpush2.msra.mxu0 0.0
  %3616 = vmatprep.subr.mxu0 0.0
  %3617 = vmatpush2.msra.mxu0 0.0
  %3618 = vmatprep.subr.mxu0 0.0
  %3619 = vmatpush2.msra.mxu0 0.0
  %3620 = vmatprep.subr.mxu0 0.0
  %3621 = vmatpush2.msra.mxu0 0.0
  %3622 = vmatprep.subr.mxu0 0.0
  %3623 = vmatpush2.msra.mxu0 0.0
  %3624 = vmatprep.subr.mxu0 0.0
  %3625 = vmatpush2.msra.mxu0 0.0
  %3626 = vmatprep.subr.mxu0 0.0
  %3627 = vmatpush2.msra.mxu0 0.0
  %3628 = vmatprep.subr.mxu0 0.0
  %3629 = vmatpush2.msra.mxu0 0.0
  %3630 = vmatprep.mubr.f32.mxu0 0.0
  %3631 = vmatmul.mubr.f32.gmra.mxu0 %v3519
  %v3632 = vpop.f32.mrf.mxu0
  %v3633 = vadd.f32 0.0, %v3632
  %v3634 = vpop.f32.mrf.mxu0
  %3635 = vmatprep.mubr.f32.mxu0 0.0
  %3636 = vmatmul.mubr.f32.gmra.mxu0 %v3522
  %v3637 = vpop.f32.mrf.mxu0
  %v3638 = vadd.f32 0.0, %v3637
  %v3639 = vpop.f32.mrf.mxu0
  %3640 = vmatprep.mubr.f32.mxu0 0.0
  %3641 = vmatmul.mubr.f32.gmra.mxu0 %v3525
  %v3642 = vpop.f32.mrf.mxu0
  %v3643 = vadd.f32 0.0, %v3642
  %v3644 = vpop.f32.mrf.mxu0
  %3645 = vmatprep.mubr.f32.mxu0 0.0
  %3646 = vmatmul.mubr.f32.gmra.mxu0 %v3528
  %v3647 = vpop.f32.mrf.mxu0
  %v3648 = vadd.f32 0.0, %v3647
  %v3649 = vpop.f32.mrf.mxu0
  %3650 = vmatprep.mubr.f32.mxu0 0.0
  %3651 = vmatmul.mubr.f32.gmra.mxu0 %v3531
  %v3652 = vpop.f32.mrf.mxu0
  %v3653 = vadd.f32 0.0, %v3652
  %v3654 = vpop.f32.mrf.mxu0
  %3655 = vmatprep.mubr.f32.mxu0 0.0
  %3656 = vmatmul.mubr.f32.gmra.mxu0 %v3534
  %v3657 = vpop.f32.mrf.mxu0
  %v3658 = vadd.f32 0.0, %v3657
  %v3659 = vpop.f32.mrf.mxu0
  %3660 = vmatprep.mubr.f32.mxu0 0.0
  %3661 = vmatmul.mubr.f32.gmra.mxu0 %v3537
  %v3662 = vpop.f32.mrf.mxu0
  %v3663 = vadd.f32 0.0, %v3662
  %v3664 = vpop.f32.mrf.mxu0
  %3665 = vmatprep.mubr.f32.mxu0 0.0
  %3666 = vmatmul.mubr.f32.gmra.mxu0 %v3540
  %v3667 = vpop.f32.mrf.mxu0
  %v3668 = vadd.f32 0.0, %v3667
  %v3669 = vpop.f32.mrf.mxu0
  %3670 = vmatprep.mubr.f32.mxu0 0.0
  %3671 = vmatmul.mubr.f32.gmra.mxu0 %v3543
  %v3672 = vpop.f32.mrf.mxu0
  %v3673 = vadd.f32 0.0, %v3672
  %v3674 = vpop.f32.mrf.mxu0
  %3675 = vmatprep.mubr.f32.mxu0 0.0
  %3676 = vmatmul.mubr.f32.gmra.mxu0 %v3546
  %v3677 = vpop.f32.mrf.mxu0
  %v3678 = vadd.f32 0.0, %v3677
  %v3679 = vpop.f32.mrf.mxu0
  %3680 = vmatprep.mubr.f32.mxu0 0.0
  %3681 = vmatmul.mubr.f32.gmra.mxu0 %v3549
  %v3682 = vpop.f32.mrf.mxu0
  %v3683 = vadd.f32 0.0, %v3682
  %v3684 = vpop.f32.mrf.mxu0
  %3685 = vmatprep.mubr.f32.mxu0 0.0
  %3686 = vmatmul.mubr.f32.gmra.mxu0 %v3552
  %v3687 = vpop.f32.mrf.mxu0
  %v3688 = vadd.f32 0.0, %v3687
  %v3689 = vpop.f32.mrf.mxu0
  %3690 = vmatprep.mubr.f32.mxu0 0.0
  %3691 = vmatmul.mubr.f32.gmra.mxu0 %v3555
  %v3692 = vpop.f32.mrf.mxu0
  %v3693 = vadd.f32 0.0, %v3692
  %v3694 = vpop.f32.mrf.mxu0
  %3695 = vmatprep.mubr.f32.mxu0 0.0
  %3696 = vmatmul.mubr.f32.gmra.mxu0 %v3558
  %v3697 = vpop.f32.mrf.mxu0
  %v3698 = vadd.f32 0.0, %v3697
  %v3699 = vpop.f32.mrf.mxu0
  %3700 = vmatprep.mubr.f32.mxu0 0.0
  %3701 = vmatmul.mubr.f32.gmra.mxu0 %v3561
  %v3702 = vpop.f32.mrf.mxu0
  %v3703 = vadd.f32 0.0, %v3702
  %v3704 = vpop.f32.mrf.mxu0
  %3705 = vmatprep.mubr.f32.mxu0 0.0
  %3706 = vmatmul.mubr.f32.gmra.mxu0 %v3564
  %v3707 = vpop.f32.mrf.mxu0
  %v3708 = vadd.f32 0.0, %v3707
  %v3709 = vpop.f32.mrf.mxu0
  %3710 = vdwg.mxu0
  %v3711 = vld [vmem:[%s10] sm:$0xff]
  %v3712 = vld [vmem:[%s10 + $0x8] sm:$0xff]
  %v3713 = vld [vmem:[%s10 + $0x10] sm:$0xff]
  %v3714 = vld [vmem:[%s10 + $0x18] sm:$0xff]
  %v3715 = vld [vmem:[%s10 + $0x20] sm:$0xff]
  %v3716 = vld [vmem:[%s10 + $0x28] sm:$0xff]
  %v3717 = vld [vmem:[%s10 + $0x30] sm:$0xff]
  %v3718 = vld [vmem:[%s10 + $0x38] sm:$0xff]
  %v3719 = vld [vmem:[%s10 + $0x40] sm:$0xff]
  %v3720 = vld [vmem:[%s10 + $0x48] sm:$0xff]
  %v3721 = vld [vmem:[%s10 + $0x50] sm:$0xff]
  %v3722 = vld [vmem:[%s10 + $0x58] sm:$0xff]
  %v3723 = vld [vmem:[%s10 + $0x60] sm:$0xff]
  %v3724 = vld [vmem:[%s10 + $0x68] sm:$0xff]
  %v3725 = vld [vmem:[%s10 + $0x70] sm:$0xff]
  %v3726 = vld [vmem:[%s10 + $0x78] sm:$0xff]
  %s3727 = scalar_lea.vmem %s11, 8
  %v3728 = vld [vmem:[%s3727] sm:$0xff]
  %3729 = vmatprep.subr.mxu0 0.0
  %3730 = vmatpush1.msra.mxu0 0.0
  %3731 = vmatprep.subr.mxu0 0.0
  %3732 = vmatpush1.msra.mxu0 0.0
  %3733 = vmatprep.subr.mxu0 0.0
  %3734 = vmatpush1.msra.mxu0 0.0
  %3735 = vmatprep.subr.mxu0 0.0
  %3736 = vmatpush1.msra.mxu0 0.0
  %3737 = vmatprep.subr.mxu0 0.0
  %3738 = vmatpush1.msra.mxu0 0.0
  %3739 = vmatprep.subr.mxu0 0.0
  %3740 = vmatpush1.msra.mxu0 0.0
  %3741 = vmatprep.subr.mxu0 0.0
  %3742 = vmatpush1.msra.mxu0 0.0
  %3743 = vmatprep.subr.mxu0 0.0
  %3744 = vmatpush1.msra.mxu0 0.0
  %3745 = vmatprep.subr.mxu0 0.0
  %3746 = vmatpush1.msra.mxu0 0.0
  %3747 = vmatprep.subr.mxu0 0.0
  %3748 = vmatpush1.msra.mxu0 0.0
  %3749 = vmatprep.subr.mxu0 0.0
  %3750 = vmatpush1.msra.mxu0 0.0
  %3751 = vmatprep.subr.mxu0 0.0
  %3752 = vmatpush1.msra.mxu0 0.0
  %3753 = vmatprep.subr.mxu0 0.0
  %3754 = vmatpush1.msra.mxu0 0.0
  %3755 = vmatprep.subr.mxu0 0.0
  %3756 = vmatpush1.msra.mxu0 0.0
  %3757 = vmatprep.subr.mxu0 0.0
  %3758 = vmatpush1.msra.mxu0 0.0
  %3759 = vmatprep.subr.mxu0 0.0
  %3760 = vmatpush1.msra.mxu0 %v3728
  %3761 = vmatprep.subr.mxu0 0.0
  %3762 = vmatpush2.msra.mxu0 0.0
  %3763 = vmatprep.subr.mxu0 0.0
  %3764 = vmatpush2.msra.mxu0 0.0
  %3765 = vmatprep.subr.mxu0 0.0
  %3766 = vmatpush2.msra.mxu0 0.0
  %3767 = vmatprep.subr.mxu0 0.0
  %3768 = vmatpush2.msra.mxu0 0.0
  %3769 = vmatprep.subr.mxu0 0.0
  %3770 = vmatpush2.msra.mxu0 0.0
  %3771 = vmatprep.subr.mxu0 0.0
  %3772 = vmatpush2.msra.mxu0 0.0
  %3773 = vmatprep.subr.mxu0 0.0
  %3774 = vmatpush2.msra.mxu0 0.0
  %3775 = vmatprep.subr.mxu0 0.0
  %3776 = vmatpush2.msra.mxu0 0.0
  %3777 = vmatprep.subr.mxu0 0.0
  %3778 = vmatpush2.msra.mxu0 0.0
  %3779 = vmatprep.subr.mxu0 0.0
  %3780 = vmatpush2.msra.mxu0 0.0
  %3781 = vmatprep.subr.mxu0 0.0
  %3782 = vmatpush2.msra.mxu0 0.0
  %3783 = vmatprep.subr.mxu0 0.0
  %3784 = vmatpush2.msra.mxu0 0.0
  %3785 = vmatprep.subr.mxu0 0.0
  %3786 = vmatpush2.msra.mxu0 0.0
  %3787 = vmatprep.subr.mxu0 0.0
  %3788 = vmatpush2.msra.mxu0 0.0
  %3789 = vmatprep.subr.mxu0 0.0
  %3790 = vmatpush2.msra.mxu0 0.0
  %3791 = vmatprep.subr.mxu0 0.0
  %3792 = vmatpush2.msra.mxu0 0.0
  %3793 = vmatprep.mubr.f32.mxu0 0.0
  %3794 = vmatmul.mubr.f32.gmra.mxu0 %v3519
  %v3795 = vpop.f32.mrf.mxu0
  %v3796 = vadd.f32 0.0, %v3795
  %v3797 = vpop.f32.mrf.mxu0
  %3798 = vmatprep.mubr.f32.mxu0 0.0
  %3799 = vmatmul.mubr.f32.gmra.mxu0 %v3522
  %v3800 = vpop.f32.mrf.mxu0
  %v3801 = vadd.f32 0.0, %v3800
  %v3802 = vpop.f32.mrf.mxu0
  %3803 = vmatprep.mubr.f32.mxu0 0.0
  %3804 = vmatmul.mubr.f32.gmra.mxu0 %v3525
  %v3805 = vpop.f32.mrf.mxu0
  %v3806 = vadd.f32 0.0, %v3805
  %v3807 = vpop.f32.mrf.mxu0
  %3808 = vmatprep.mubr.f32.mxu0 0.0
  %3809 = vmatmul.mubr.f32.gmra.mxu0 %v3528
  %v3810 = vpop.f32.mrf.mxu0
  %v3811 = vadd.f32 0.0, %v3810
  %v3812 = vpop.f32.mrf.mxu0
  %3813 = vmatprep.mubr.f32.mxu0 0.0
  %3814 = vmatmul.mubr.f32.gmra.mxu0 %v3531
  %v3815 = vpop.f32.mrf.mxu0
  %v3816 = vadd.f32 0.0, %v3815
  %v3817 = vpop.f32.mrf.mxu0
  %3818 = vmatprep.mubr.f32.mxu0 0.0
  %3819 = vmatmul.mubr.f32.gmra.mxu0 %v3534
  %v3820 = vpop.f32.mrf.mxu0
  %v3821 = vadd.f32 0.0, %v3820
  %v3822 = vpop.f32.mrf.mxu0
  %3823 = vmatprep.mubr.f32.mxu0 0.0
  %3824 = vmatmul.mubr.f32.gmra.mxu0 %v3537
  %v3825 = vpop.f32.mrf.mxu0
  %v3826 = vadd.f32 0.0, %v3825
  %v3827 = vpop.f32.mrf.mxu0
  %3828 = vmatprep.mubr.f32.mxu0 0.0
  %3829 = vmatmul.mubr.f32.gmra.mxu0 %v3540
  %v3830 = vpop.f32.mrf.mxu0
  %v3831 = vadd.f32 0.0, %v3830
  %v3832 = vpop.f32.mrf.mxu0
  %3833 = vmatprep.mubr.f32.mxu0 0.0
  %3834 = vmatmul.mubr.f32.gmra.mxu0 %v3543
  %v3835 = vpop.f32.mrf.mxu0
  %v3836 = vadd.f32 0.0, %v3835
  %v3837 = vpop.f32.mrf.mxu0
  %3838 = vmatprep.mubr.f32.mxu0 0.0
  %3839 = vmatmul.mubr.f32.gmra.mxu0 %v3546
  %v3840 = vpop.f32.mrf.mxu0
  %v3841 = vadd.f32 0.0, %v3840
  %v3842 = vpop.f32.mrf.mxu0
  %3843 = vmatprep.mubr.f32.mxu0 0.0
  %3844 = vmatmul.mubr.f32.gmra.mxu0 %v3549
  %v3845 = vpop.f32.mrf.mxu0
  %v3846 = vadd.f32 0.0, %v3845
  %v3847 = vpop.f32.mrf.mxu0
  %3848 = vmatprep.mubr.f32.mxu0 0.0
  %3849 = vmatmul.mubr.f32.gmra.mxu0 %v3552
  %v3850 = vpop.f32.mrf.mxu0
  %v3851 = vadd.f32 0.0, %v3850
  %v3852 = vpop.f32.mrf.mxu0
  %3853 = vmatprep.mubr.f32.mxu0 0.0
  %3854 = vmatmul.mubr.f32.gmra.mxu0 %v3555
  %v3855 = vpop.f32.mrf.mxu0
  %v3856 = vadd.f32 0.0, %v3855
  %v3857 = vpop.f32.mrf.mxu0
  %3858 = vmatprep.mubr.f32.mxu0 0.0
  %3859 = vmatmul.mubr.f32.gmra.mxu0 %v3558
  %v3860 = vpop.f32.mrf.mxu0
  %v3861 = vadd.f32 0.0, %v3860
  %v3862 = vpop.f32.mrf.mxu0
  %3863 = vmatprep.mubr.f32.mxu0 0.0
  %3864 = vmatmul.mubr.f32.gmra.mxu0 %v3561
  %v3865 = vpop.f32.mrf.mxu0
  %v3866 = vadd.f32 0.0, %v3865
  %v3867 = vpop.f32.mrf.mxu0
  %3868 = vmatprep.mubr.f32.mxu0 0.0
  %3869 = vmatmul.mubr.f32.gmra.mxu0 %v3564
  %v3870 = vpop.f32.mrf.mxu0
  %v3871 = vadd.f32 0.0, %v3870
  %v3872 = vpop.f32.mrf.mxu0
  %3873 = vdwg.mxu0
  %s3874 = scalar_lea.vmem %s10, 128
  %v3875 = vld [vmem:[%s3874] sm:$0xff]
  %v3876 = vld [vmem:[%s3874 + $0x8] sm:$0xff]
  %v3877 = vld [vmem:[%s3874 + $0x10] sm:$0xff]
  %v3878 = vld [vmem:[%s3874 + $0x18] sm:$0xff]
  %v3879 = vld [vmem:[%s3874 + $0x20] sm:$0xff]
  %v3880 = vld [vmem:[%s3874 + $0x28] sm:$0xff]
  %v3881 = vld [vmem:[%s3874 + $0x30] sm:$0xff]
  %v3882 = vld [vmem:[%s3874 + $0x38] sm:$0xff]
  %v3883 = vld [vmem:[%s3874 + $0x40] sm:$0xff]
  %v3884 = vld [vmem:[%s3874 + $0x48] sm:$0xff]
  %v3885 = vld [vmem:[%s3874 + $0x50] sm:$0xff]
  %v3886 = vld [vmem:[%s3874 + $0x58] sm:$0xff]
  %v3887 = vld [vmem:[%s3874 + $0x60] sm:$0xff]
  %v3888 = vld [vmem:[%s3874 + $0x68] sm:$0xff]
  %v3889 = vld [vmem:[%s3874 + $0x70] sm:$0xff]
  %v3890 = vld [vmem:[%s3874 + $0x78] sm:$0xff]
  %3891 = vmatprep.subr.mxu0 0.0
  %3892 = vmatpush1.msra.mxu0 %v3871
  %3893 = vmatprep.subr.mxu0 0.0
  %3894 = vmatpush1.msra.mxu0 %v3866
  %3895 = vmatprep.subr.mxu0 0.0
  %3896 = vmatpush1.msra.mxu0 %v3861
  %3897 = vmatprep.subr.mxu0 0.0
  %3898 = vmatpush1.msra.mxu0 %v3856
  %3899 = vmatprep.subr.mxu0 0.0
  %3900 = vmatpush1.msra.mxu0 %v3851
  %3901 = vmatprep.subr.mxu0 0.0
  %3902 = vmatpush1.msra.mxu0 %v3846
  %3903 = vmatprep.subr.mxu0 0.0
  %3904 = vmatpush1.msra.mxu0 %v3841
  %3905 = vmatprep.subr.mxu0 0.0
  %3906 = vmatpush1.msra.mxu0 %v3836
  %3907 = vmatprep.subr.mxu0 0.0
  %3908 = vmatpush1.msra.mxu0 %v3831
  %3909 = vmatprep.subr.mxu0 0.0
  %3910 = vmatpush1.msra.mxu0 %v3826
  %3911 = vmatprep.subr.mxu0 0.0
  %3912 = vmatpush1.msra.mxu0 %v3821
  %3913 = vmatprep.subr.mxu0 0.0
  %3914 = vmatpush1.msra.mxu0 %v3816
  %3915 = vmatprep.subr.mxu0 0.0
  %3916 = vmatpush1.msra.mxu0 %v3811
  %3917 = vmatprep.subr.mxu0 0.0
  %3918 = vmatpush1.msra.mxu0 %v3806
  %3919 = vmatprep.subr.mxu0 0.0
  %3920 = vmatpush1.msra.mxu0 %v3801
  %3921 = vmatprep.subr.mxu0 0.0
  %3922 = vmatpush1.msra.mxu0 %v3796
  %3923 = vmatprep.subr.mxu0 0.0
  %3924 = vmatpush2.msra.mxu0 0.0
  %3925 = vmatprep.subr.mxu0 0.0
  %3926 = vmatpush2.msra.mxu0 0.0
  %3927 = vmatprep.subr.mxu0 0.0
  %3928 = vmatpush2.msra.mxu0 0.0
  %3929 = vmatprep.subr.mxu0 0.0
  %3930 = vmatpush2.msra.mxu0 0.0
  %3931 = vmatprep.subr.mxu0 0.0
  %3932 = vmatpush2.msra.mxu0 0.0
  %3933 = vmatprep.subr.mxu0 0.0
  %3934 = vmatpush2.msra.mxu0 0.0
  %3935 = vmatprep.subr.mxu0 0.0
  %3936 = vmatpush2.msra.mxu0 0.0
  %3937 = vmatprep.subr.mxu0 0.0
  %3938 = vmatpush2.msra.mxu0 0.0
  %3939 = vmatprep.subr.mxu0 0.0
  %3940 = vmatpush2.msra.mxu0 0.0
  %3941 = vmatprep.subr.mxu0 0.0
  %3942 = vmatpush2.msra.mxu0 0.0
  %3943 = vmatprep.subr.mxu0 0.0
  %3944 = vmatpush2.msra.mxu0 0.0
  %3945 = vmatprep.subr.mxu0 0.0
  %3946 = vmatpush2.msra.mxu0 0.0
  %3947 = vmatprep.subr.mxu0 0.0
  %3948 = vmatpush2.msra.mxu0 0.0
  %3949 = vmatprep.subr.mxu0 0.0
  %3950 = vmatpush2.msra.mxu0 0.0
  %3951 = vmatprep.subr.mxu0 0.0
  %3952 = vmatpush2.msra.mxu0 0.0
  %3953 = vmatprep.subr.mxu0 0.0
  %3954 = vmatpush2.msra.mxu0 0.0
  %3955 = vmatprep.mubr.f32.mxu0 0.0
  %3956 = vmatmul.mubr.f32.gmra.mxu0 %v3875
  %v3957 = vpop.f32.mrf.mxu0
  %v3958 = vadd.f32 0.0, %v3957
  %v3959 = vpop.f32.mrf.mxu0
  %3960 = vmatprep.mubr.f32.mxu0 0.0
  %3961 = vmatmul.mubr.f32.gmra.mxu0 %v3876
  %v3962 = vpop.f32.mrf.mxu0
  %v3963 = vadd.f32 0.0, %v3962
  %v3964 = vpop.f32.mrf.mxu0
  %3965 = vmatprep.mubr.f32.mxu0 0.0
  %3966 = vmatmul.mubr.f32.gmra.mxu0 %v3877
  %v3967 = vpop.f32.mrf.mxu0
  %v3968 = vadd.f32 0.0, %v3967
  %v3969 = vpop.f32.mrf.mxu0
  %3970 = vmatprep.mubr.f32.mxu0 0.0
  %3971 = vmatmul.mubr.f32.gmra.mxu0 %v3878
  %v3972 = vpop.f32.mrf.mxu0
  %v3973 = vadd.f32 0.0, %v3972
  %v3974 = vpop.f32.mrf.mxu0
  %3975 = vmatprep.mubr.f32.mxu0 0.0
  %3976 = vmatmul.mubr.f32.gmra.mxu0 %v3879
  %v3977 = vpop.f32.mrf.mxu0
  %v3978 = vadd.f32 0.0, %v3977
  %v3979 = vpop.f32.mrf.mxu0
  %3980 = vmatprep.mubr.f32.mxu0 0.0
  %3981 = vmatmul.mubr.f32.gmra.mxu0 %v3880
  %v3982 = vpop.f32.mrf.mxu0
  %v3983 = vadd.f32 0.0, %v3982
  %v3984 = vpop.f32.mrf.mxu0
  %3985 = vmatprep.mubr.f32.mxu0 0.0
  %3986 = vmatmul.mubr.f32.gmra.mxu0 %v3881
  %v3987 = vpop.f32.mrf.mxu0
  %v3988 = vadd.f32 0.0, %v3987
  %v3989 = vpop.f32.mrf.mxu0
  %3990 = vmatprep.mubr.f32.mxu0 0.0
  %3991 = vmatmul.mubr.f32.gmra.mxu0 %v3882
  %v3992 = vpop.f32.mrf.mxu0
  %v3993 = vadd.f32 0.0, %v3992
  %v3994 = vpop.f32.mrf.mxu0
  %3995 = vmatprep.mubr.f32.mxu0 0.0
  %3996 = vmatmul.mubr.f32.gmra.mxu0 %v3883
  %v3997 = vpop.f32.mrf.mxu0
  %v3998 = vadd.f32 0.0, %v3997
  %v3999 = vpop.f32.mrf.mxu0
  %4000 = vmatprep.mubr.f32.mxu0 0.0
  %4001 = vmatmul.mubr.f32.gmra.mxu0 %v3884
  %v4002 = vpop.f32.mrf.mxu0
  %v4003 = vadd.f32 0.0, %v4002
  %v4004 = vpop.f32.mrf.mxu0
  %4005 = vmatprep.mubr.f32.mxu0 0.0
  %4006 = vmatmul.mubr.f32.gmra.mxu0 %v3885
  %v4007 = vpop.f32.mrf.mxu0
  %v4008 = vadd.f32 0.0, %v4007
  %v4009 = vpop.f32.mrf.mxu0
  %4010 = vmatprep.mubr.f32.mxu0 0.0
  %4011 = vmatmul.mubr.f32.gmra.mxu0 %v3886
  %v4012 = vpop.f32.mrf.mxu0
  %v4013 = vadd.f32 0.0, %v4012
  %v4014 = vpop.f32.mrf.mxu0
  %4015 = vmatprep.mubr.f32.mxu0 0.0
  %4016 = vmatmul.mubr.f32.gmra.mxu0 %v3887
  %v4017 = vpop.f32.mrf.mxu0
  %v4018 = vadd.f32 0.0, %v4017
  %v4019 = vpop.f32.mrf.mxu0
  %4020 = vmatprep.mubr.f32.mxu0 0.0
  %4021 = vmatmul.mubr.f32.gmra.mxu0 %v3888
  %v4022 = vpop.f32.mrf.mxu0
  %v4023 = vadd.f32 0.0, %v4022
  %v4024 = vpop.f32.mrf.mxu0
  %4025 = vmatprep.mubr.f32.mxu0 0.0
  %4026 = vmatmul.mubr.f32.gmra.mxu0 %v3889
  %v4027 = vpop.f32.mrf.mxu0
  %v4028 = vadd.f32 0.0, %v4027
  %v4029 = vpop.f32.mrf.mxu0
  %4030 = vmatprep.mubr.f32.mxu0 0.0
  %4031 = vmatmul.mubr.f32.gmra.mxu0 %v3890
  %v4032 = vpop.f32.mrf.mxu0
  %v4033 = vadd.f32 0.0, %v4032
  %v4034 = vpop.f32.mrf.mxu0
  %4035 = vdwg.mxu0
  %4036 = vmatprep.subr.mxu0 0.0
  %4037 = vmatpush1.msra.mxu0 %v3708
  %4038 = vmatprep.subr.mxu0 0.0
  %4039 = vmatpush1.msra.mxu0 %v3703
  %4040 = vmatprep.subr.mxu0 0.0
  %4041 = vmatpush1.msra.mxu0 %v3698
  %4042 = vmatprep.subr.mxu0 0.0
  %4043 = vmatpush1.msra.mxu0 %v3693
  %4044 = vmatprep.subr.mxu0 0.0
  %4045 = vmatpush1.msra.mxu0 %v3688
  %4046 = vmatprep.subr.mxu0 0.0
  %4047 = vmatpush1.msra.mxu0 %v3683
  %4048 = vmatprep.subr.mxu0 0.0
  %4049 = vmatpush1.msra.mxu0 %v3678
  %4050 = vmatprep.subr.mxu0 0.0
  %4051 = vmatpush1.msra.mxu0 %v3673
  %4052 = vmatprep.subr.mxu0 0.0
  %4053 = vmatpush1.msra.mxu0 %v3668
  %4054 = vmatprep.subr.mxu0 0.0
  %4055 = vmatpush1.msra.mxu0 %v3663
  %4056 = vmatprep.subr.mxu0 0.0
  %4057 = vmatpush1.msra.mxu0 %v3658
  %4058 = vmatprep.subr.mxu0 0.0
  %4059 = vmatpush1.msra.mxu0 %v3653
  %4060 = vmatprep.subr.mxu0 0.0
  %4061 = vmatpush1.msra.mxu0 %v3648
  %4062 = vmatprep.subr.mxu0 0.0
  %4063 = vmatpush1.msra.mxu0 %v3643
  %4064 = vmatprep.subr.mxu0 0.0
  %4065 = vmatpush1.msra.mxu0 %v3638
  %4066 = vmatprep.subr.mxu0 0.0
  %4067 = vmatpush1.msra.mxu0 %v3633
  %4068 = vmatprep.subr.mxu0 0.0
  %4069 = vmatpush2.msra.mxu0 0.0
  %4070 = vmatprep.subr.mxu0 0.0
  %4071 = vmatpush2.msra.mxu0 0.0
  %4072 = vmatprep.subr.mxu0 0.0
  %4073 = vmatpush2.msra.mxu0 0.0
  %4074 = vmatprep.subr.mxu0 0.0
  %4075 = vmatpush2.msra.mxu0 0.0
  %4076 = vmatprep.subr.mxu0 0.0
  %4077 = vmatpush2.msra.mxu0 0.0
  %4078 = vmatprep.subr.mxu0 0.0
  %4079 = vmatpush2.msra.mxu0 0.0
  %4080 = vmatprep.subr.mxu0 0.0
  %4081 = vmatpush2.msra.mxu0 0.0
  %4082 = vmatprep.subr.mxu0 0.0
  %4083 = vmatpush2.msra.mxu0 0.0
  %4084 = vmatprep.subr.mxu0 0.0
  %4085 = vmatpush2.msra.mxu0 0.0
  %4086 = vmatprep.subr.mxu0 0.0
  %4087 = vmatpush2.msra.mxu0 0.0
  %4088 = vmatprep.subr.mxu0 0.0
  %4089 = vmatpush2.msra.mxu0 0.0
  %4090 = vmatprep.subr.mxu0 0.0
  %4091 = vmatpush2.msra.mxu0 0.0
  %4092 = vmatprep.subr.mxu0 0.0
  %4093 = vmatpush2.msra.mxu0 0.0
  %4094 = vmatprep.subr.mxu0 0.0
  %4095 = vmatpush2.msra.mxu0 0.0
  %4096 = vmatprep.subr.mxu0 0.0
  %4097 = vmatpush2.msra.mxu0 0.0
  %4098 = vmatprep.subr.mxu0 0.0
  %4099 = vmatpush2.msra.mxu0 0.0
  %4100 = vmatprep.mubr.f32.mxu0 0.0
  %4101 = vmatmul.mubr.f32.gmra.mxu0 %v3711
  %v4102 = vpop.f32.mrf.mxu0
  %v4103 = vadd.f32 %v3958, %v4102
  %v4104 = vpop.f32.mrf.mxu0
  %4105 = vmatprep.mubr.f32.mxu0 0.0
  %4106 = vmatmul.mubr.f32.gmra.mxu0 %v3712
  %v4107 = vpop.f32.mrf.mxu0
  %v4108 = vadd.f32 %v3963, %v4107
  %v4109 = vpop.f32.mrf.mxu0
  %4110 = vmatprep.mubr.f32.mxu0 0.0
  %4111 = vmatmul.mubr.f32.gmra.mxu0 %v3713
  %v4112 = vpop.f32.mrf.mxu0
  %v4113 = vadd.f32 %v3968, %v4112
  %v4114 = vpop.f32.mrf.mxu0
  %4115 = vmatprep.mubr.f32.mxu0 0.0
  %4116 = vmatmul.mubr.f32.gmra.mxu0 %v3714
  %v4117 = vpop.f32.mrf.mxu0
  %v4118 = vadd.f32 %v3973, %v4117
  %v4119 = vpop.f32.mrf.mxu0
  %4120 = vmatprep.mubr.f32.mxu0 0.0
  %4121 = vmatmul.mubr.f32.gmra.mxu0 %v3715
  %v4122 = vpop.f32.mrf.mxu0
  %v4123 = vadd.f32 %v3978, %v4122
  %v4124 = vpop.f32.mrf.mxu0
  %4125 = vmatprep.mubr.f32.mxu0 0.0
  %4126 = vmatmul.mubr.f32.gmra.mxu0 %v3716
  %v4127 = vpop.f32.mrf.mxu0
  %v4128 = vadd.f32 %v3983, %v4127
  %v4129 = vpop.f32.mrf.mxu0
  %4130 = vmatprep.mubr.f32.mxu0 0.0
  %4131 = vmatmul.mubr.f32.gmra.mxu0 %v3717
  %v4132 = vpop.f32.mrf.mxu0
  %v4133 = vadd.f32 %v3988, %v4132
  %v4134 = vpop.f32.mrf.mxu0
  %4135 = vmatprep.mubr.f32.mxu0 0.0
  %4136 = vmatmul.mubr.f32.gmra.mxu0 %v3718
  %v4137 = vpop.f32.mrf.mxu0
  %v4138 = vadd.f32 %v3993, %v4137
  %v4139 = vpop.f32.mrf.mxu0
  %4140 = vmatprep.mubr.f32.mxu0 0.0
  %4141 = vmatmul.mubr.f32.gmra.mxu0 %v3719
  %v4142 = vpop.f32.mrf.mxu0
  %v4143 = vadd.f32 %v3998, %v4142
  %v4144 = vpop.f32.mrf.mxu0
  %4145 = vmatprep.mubr.f32.mxu0 0.0
  %4146 = vmatmul.mubr.f32.gmra.mxu0 %v3720
  %v4147 = vpop.f32.mrf.mxu0
  %v4148 = vadd.f32 %v4003, %v4147
  %v4149 = vpop.f32.mrf.mxu0
  %4150 = vmatprep.mubr.f32.mxu0 0.0
  %4151 = vmatmul.mubr.f32.gmra.mxu0 %v3721
  %v4152 = vpop.f32.mrf.mxu0
  %v4153 = vadd.f32 %v4008, %v4152
  %v4154 = vpop.f32.mrf.mxu0
  %4155 = vmatprep.mubr.f32.mxu0 0.0
  %4156 = vmatmul.mubr.f32.gmra.mxu0 %v3722
  %v4157 = vpop.f32.mrf.mxu0
  %v4158 = vadd.f32 %v4013, %v4157
  %v4159 = vpop.f32.mrf.mxu0
  %4160 = vmatprep.mubr.f32.mxu0 0.0
  %4161 = vmatmul.mubr.f32.gmra.mxu0 %v3723
  %v4162 = vpop.f32.mrf.mxu0
  %v4163 = vadd.f32 %v4018, %v4162
  %v4164 = vpop.f32.mrf.mxu0
  %4165 = vmatprep.mubr.f32.mxu0 0.0
  %4166 = vmatmul.mubr.f32.gmra.mxu0 %v3724
  %v4167 = vpop.f32.mrf.mxu0
  %v4168 = vadd.f32 %v4023, %v4167
  %v4169 = vpop.f32.mrf.mxu0
  %4170 = vmatprep.mubr.f32.mxu0 0.0
  %4171 = vmatmul.mubr.f32.gmra.mxu0 %v3725
  %v4172 = vpop.f32.mrf.mxu0
  %v4173 = vadd.f32 %v4028, %v4172
  %v4174 = vpop.f32.mrf.mxu0
  %4175 = vmatprep.mubr.f32.mxu0 0.0
  %4176 = vmatmul.mubr.f32.gmra.mxu0 %v3726
  %v4177 = vpop.f32.mrf.mxu0
  %v4178 = vadd.f32 %v4033, %v4177
  %v4179 = vpop.f32.mrf.mxu0
  %4180 = vdwg.mxu0
  %s4181 = scalar_lea.vmem %s11, 16
  %v4182 = vld [vmem:[%s4181] sm:$0xff]
  %4183 = vmatprep.subr.mxu0 0.0
  %4184 = vmatpush1.msra.mxu0 0.0
  %4185 = vmatprep.subr.mxu0 0.0
  %4186 = vmatpush1.msra.mxu0 0.0
  %4187 = vmatprep.subr.mxu0 0.0
  %4188 = vmatpush1.msra.mxu0 0.0
  %4189 = vmatprep.subr.mxu0 0.0
  %4190 = vmatpush1.msra.mxu0 0.0
  %4191 = vmatprep.subr.mxu0 0.0
  %4192 = vmatpush1.msra.mxu0 0.0
  %4193 = vmatprep.subr.mxu0 0.0
  %4194 = vmatpush1.msra.mxu0 0.0
  %4195 = vmatprep.subr.mxu0 0.0
  %4196 = vmatpush1.msra.mxu0 0.0
  %4197 = vmatprep.subr.mxu0 0.0
  %4198 = vmatpush1.msra.mxu0 0.0
  %4199 = vmatprep.subr.mxu0 0.0
  %4200 = vmatpush1.msra.mxu0 0.0
  %4201 = vmatprep.subr.mxu0 0.0
  %4202 = vmatpush1.msra.mxu0 0.0
  %4203 = vmatprep.subr.mxu0 0.0
  %4204 = vmatpush1.msra.mxu0 0.0
  %4205 = vmatprep.subr.mxu0 0.0
  %4206 = vmatpush1.msra.mxu0 0.0
  %4207 = vmatprep.subr.mxu0 0.0
  %4208 = vmatpush1.msra.mxu0 0.0
  %4209 = vmatprep.subr.mxu0 0.0
  %4210 = vmatpush1.msra.mxu0 0.0
  %4211 = vmatprep.subr.mxu0 0.0
  %4212 = vmatpush1.msra.mxu0 0.0
  %4213 = vmatprep.subr.mxu0 0.0
  %4214 = vmatpush1.msra.mxu0 %v4182
  %4215 = vmatprep.subr.mxu0 0.0
  %4216 = vmatpush2.msra.mxu0 0.0
  %4217 = vmatprep.subr.mxu0 0.0
  %4218 = vmatpush2.msra.mxu0 0.0
  %4219 = vmatprep.subr.mxu0 0.0
  %4220 = vmatpush2.msra.mxu0 0.0
  %4221 = vmatprep.subr.mxu0 0.0
  %4222 = vmatpush2.msra.mxu0 0.0
  %4223 = vmatprep.subr.mxu0 0.0
  %4224 = vmatpush2.msra.mxu0 0.0
  %4225 = vmatprep.subr.mxu0 0.0
  %4226 = vmatpush2.msra.mxu0 0.0
  %4227 = vmatprep.subr.mxu0 0.0
  %4228 = vmatpush2.msra.mxu0 0.0
  %4229 = vmatprep.subr.mxu0 0.0
  %4230 = vmatpush2.msra.mxu0 0.0
  %4231 = vmatprep.subr.mxu0 0.0
  %4232 = vmatpush2.msra.mxu0 0.0
  %4233 = vmatprep.subr.mxu0 0.0
  %4234 = vmatpush2.msra.mxu0 0.0
  %4235 = vmatprep.subr.mxu0 0.0
  %4236 = vmatpush2.msra.mxu0 0.0
  %4237 = vmatprep.subr.mxu0 0.0
  %4238 = vmatpush2.msra.mxu0 0.0
  %4239 = vmatprep.subr.mxu0 0.0
  %4240 = vmatpush2.msra.mxu0 0.0
  %4241 = vmatprep.subr.mxu0 0.0
  %4242 = vmatpush2.msra.mxu0 0.0
  %4243 = vmatprep.subr.mxu0 0.0
  %4244 = vmatpush2.msra.mxu0 0.0
  %4245 = vmatprep.subr.mxu0 0.0
  %4246 = vmatpush2.msra.mxu0 0.0
  %4247 = vmatprep.mubr.f32.mxu0 0.0
  %4248 = vmatmul.mubr.f32.gmra.mxu0 %v3519
  %v4249 = vpop.f32.mrf.mxu0
  %v4250 = vadd.f32 0.0, %v4249
  %v4251 = vpop.f32.mrf.mxu0
  %4252 = vmatprep.mubr.f32.mxu0 0.0
  %4253 = vmatmul.mubr.f32.gmra.mxu0 %v3522
  %v4254 = vpop.f32.mrf.mxu0
  %v4255 = vadd.f32 0.0, %v4254
  %v4256 = vpop.f32.mrf.mxu0
  %4257 = vmatprep.mubr.f32.mxu0 0.0
  %4258 = vmatmul.mubr.f32.gmra.mxu0 %v3525
  %v4259 = vpop.f32.mrf.mxu0
  %v4260 = vadd.f32 0.0, %v4259
  %v4261 = vpop.f32.mrf.mxu0
  %4262 = vmatprep.mubr.f32.mxu0 0.0
  %4263 = vmatmul.mubr.f32.gmra.mxu0 %v3528
  %v4264 = vpop.f32.mrf.mxu0
  %v4265 = vadd.f32 0.0, %v4264
  %v4266 = vpop.f32.mrf.mxu0
  %4267 = vmatprep.mubr.f32.mxu0 0.0
  %4268 = vmatmul.mubr.f32.gmra.mxu0 %v3531
  %v4269 = vpop.f32.mrf.mxu0
  %v4270 = vadd.f32 0.0, %v4269
  %v4271 = vpop.f32.mrf.mxu0
  %4272 = vmatprep.mubr.f32.mxu0 0.0
  %4273 = vmatmul.mubr.f32.gmra.mxu0 %v3534
  %v4274 = vpop.f32.mrf.mxu0
  %v4275 = vadd.f32 0.0, %v4274
  %v4276 = vpop.f32.mrf.mxu0
  %4277 = vmatprep.mubr.f32.mxu0 0.0
  %4278 = vmatmul.mubr.f32.gmra.mxu0 %v3537
  %v4279 = vpop.f32.mrf.mxu0
  %v4280 = vadd.f32 0.0, %v4279
  %v4281 = vpop.f32.mrf.mxu0
  %4282 = vmatprep.mubr.f32.mxu0 0.0
  %4283 = vmatmul.mubr.f32.gmra.mxu0 %v3540
  %v4284 = vpop.f32.mrf.mxu0
  %v4285 = vadd.f32 0.0, %v4284
  %v4286 = vpop.f32.mrf.mxu0
  %4287 = vmatprep.mubr.f32.mxu0 0.0
  %4288 = vmatmul.mubr.f32.gmra.mxu0 %v3543
  %v4289 = vpop.f32.mrf.mxu0
  %v4290 = vadd.f32 0.0, %v4289
  %v4291 = vpop.f32.mrf.mxu0
  %4292 = vmatprep.mubr.f32.mxu0 0.0
  %4293 = vmatmul.mubr.f32.gmra.mxu0 %v3546
  %v4294 = vpop.f32.mrf.mxu0
  %v4295 = vadd.f32 0.0, %v4294
  %v4296 = vpop.f32.mrf.mxu0
  %4297 = vmatprep.mubr.f32.mxu0 0.0
  %4298 = vmatmul.mubr.f32.gmra.mxu0 %v3549
  %v4299 = vpop.f32.mrf.mxu0
  %v4300 = vadd.f32 0.0, %v4299
  %v4301 = vpop.f32.mrf.mxu0
  %4302 = vmatprep.mubr.f32.mxu0 0.0
  %4303 = vmatmul.mubr.f32.gmra.mxu0 %v3552
  %v4304 = vpop.f32.mrf.mxu0
  %v4305 = vadd.f32 0.0, %v4304
  %v4306 = vpop.f32.mrf.mxu0
  %4307 = vmatprep.mubr.f32.mxu0 0.0
  %4308 = vmatmul.mubr.f32.gmra.mxu0 %v3555
  %v4309 = vpop.f32.mrf.mxu0
  %v4310 = vadd.f32 0.0, %v4309
  %v4311 = vpop.f32.mrf.mxu0
  %4312 = vmatprep.mubr.f32.mxu0 0.0
  %4313 = vmatmul.mubr.f32.gmra.mxu0 %v3558
  %v4314 = vpop.f32.mrf.mxu0
  %v4315 = vadd.f32 0.0, %v4314
  %v4316 = vpop.f32.mrf.mxu0
  %4317 = vmatprep.mubr.f32.mxu0 0.0
  %4318 = vmatmul.mubr.f32.gmra.mxu0 %v3561
  %v4319 = vpop.f32.mrf.mxu0
  %v4320 = vadd.f32 0.0, %v4319
  %v4321 = vpop.f32.mrf.mxu0
  %4322 = vmatprep.mubr.f32.mxu0 0.0
  %4323 = vmatmul.mubr.f32.gmra.mxu0 %v3564
  %v4324 = vpop.f32.mrf.mxu0
  %v4325 = vadd.f32 0.0, %v4324
  %v4326 = vpop.f32.mrf.mxu0
  %4327 = vdwg.mxu0
  %s4328 = scalar_lea.vmem %s10, 256
  %v4329 = vld [vmem:[%s4328] sm:$0xff]
  %v4330 = vld [vmem:[%s4328 + $0x8] sm:$0xff]
  %v4331 = vld [vmem:[%s4328 + $0x10] sm:$0xff]
  %v4332 = vld [vmem:[%s4328 + $0x18] sm:$0xff]
  %v4333 = vld [vmem:[%s4328 + $0x20] sm:$0xff]
  %v4334 = vld [vmem:[%s4328 + $0x28] sm:$0xff]
  %v4335 = vld [vmem:[%s4328 + $0x30] sm:$0xff]
  %v4336 = vld [vmem:[%s4328 + $0x38] sm:$0xff]
  %v4337 = vld [vmem:[%s4328 + $0x40] sm:$0xff]
  %v4338 = vld [vmem:[%s4328 + $0x48] sm:$0xff]
  %v4339 = vld [vmem:[%s4328 + $0x50] sm:$0xff]
  %v4340 = vld [vmem:[%s4328 + $0x58] sm:$0xff]
  %v4341 = vld [vmem:[%s4328 + $0x60] sm:$0xff]
  %v4342 = vld [vmem:[%s4328 + $0x68] sm:$0xff]
  %v4343 = vld [vmem:[%s4328 + $0x70] sm:$0xff]
  %v4344 = vld [vmem:[%s4328 + $0x78] sm:$0xff]
  %4345 = vmatprep.subr.mxu0 0.0
  %4346 = vmatpush1.msra.mxu0 %v4325
  %4347 = vmatprep.subr.mxu0 0.0
  %4348 = vmatpush1.msra.mxu0 %v4320
  %4349 = vmatprep.subr.mxu0 0.0
  %4350 = vmatpush1.msra.mxu0 %v4315
  %4351 = vmatprep.subr.mxu0 0.0
  %4352 = vmatpush1.msra.mxu0 %v4310
  %4353 = vmatprep.subr.mxu0 0.0
  %4354 = vmatpush1.msra.mxu0 %v4305
  %4355 = vmatprep.subr.mxu0 0.0
  %4356 = vmatpush1.msra.mxu0 %v4300
  %4357 = vmatprep.subr.mxu0 0.0
  %4358 = vmatpush1.msra.mxu0 %v4295
  %4359 = vmatprep.subr.mxu0 0.0
  %4360 = vmatpush1.msra.mxu0 %v4290
  %4361 = vmatprep.subr.mxu0 0.0
  %4362 = vmatpush1.msra.mxu0 %v4285
  %4363 = vmatprep.subr.mxu0 0.0
  %4364 = vmatpush1.msra.mxu0 %v4280
  %4365 = vmatprep.subr.mxu0 0.0
  %4366 = vmatpush1.msra.mxu0 %v4275
  %4367 = vmatprep.subr.mxu0 0.0
  %4368 = vmatpush1.msra.mxu0 %v4270
  %4369 = vmatprep.subr.mxu0 0.0
  %4370 = vmatpush1.msra.mxu0 %v4265
  %4371 = vmatprep.subr.mxu0 0.0
  %4372 = vmatpush1.msra.mxu0 %v4260
  %4373 = vmatprep.subr.mxu0 0.0
  %4374 = vmatpush1.msra.mxu0 %v4255
  %4375 = vmatprep.subr.mxu0 0.0
  %4376 = vmatpush1.msra.mxu0 %v4250
  %4377 = vmatprep.subr.mxu0 0.0
  %4378 = vmatpush2.msra.mxu0 0.0
  %4379 = vmatprep.subr.mxu0 0.0
  %4380 = vmatpush2.msra.mxu0 0.0
  %4381 = vmatprep.subr.mxu0 0.0
  %4382 = vmatpush2.msra.mxu0 0.0
  %4383 = vmatprep.subr.mxu0 0.0
  %4384 = vmatpush2.msra.mxu0 0.0
  %4385 = vmatprep.subr.mxu0 0.0
  %4386 = vmatpush2.msra.mxu0 0.0
  %4387 = vmatprep.subr.mxu0 0.0
  %4388 = vmatpush2.msra.mxu0 0.0
  %4389 = vmatprep.subr.mxu0 0.0
  %4390 = vmatpush2.msra.mxu0 0.0
  %4391 = vmatprep.subr.mxu0 0.0
  %4392 = vmatpush2.msra.mxu0 0.0
  %4393 = vmatprep.subr.mxu0 0.0
  %4394 = vmatpush2.msra.mxu0 0.0
  %4395 = vmatprep.subr.mxu0 0.0
  %4396 = vmatpush2.msra.mxu0 0.0
  %4397 = vmatprep.subr.mxu0 0.0
  %4398 = vmatpush2.msra.mxu0 0.0
  %4399 = vmatprep.subr.mxu0 0.0
  %4400 = vmatpush2.msra.mxu0 0.0
  %4401 = vmatprep.subr.mxu0 0.0
  %4402 = vmatpush2.msra.mxu0 0.0
  %4403 = vmatprep.subr.mxu0 0.0
  %4404 = vmatpush2.msra.mxu0 0.0
  %4405 = vmatprep.subr.mxu0 0.0
  %4406 = vmatpush2.msra.mxu0 0.0
  %4407 = vmatprep.subr.mxu0 0.0
  %4408 = vmatpush2.msra.mxu0 0.0
  %4409 = vmatprep.mubr.f32.mxu0 0.0
  %4410 = vmatmul.mubr.f32.gmra.mxu0 %v4329
  %v4411 = vpop.f32.mrf.mxu0
  %v4412 = vadd.f32 0.0, %v4411
  %v4413 = vpop.f32.mrf.mxu0
  %4414 = vmatprep.mubr.f32.mxu0 0.0
  %4415 = vmatmul.mubr.f32.gmra.mxu0 %v4330
  %v4416 = vpop.f32.mrf.mxu0
  %v4417 = vadd.f32 0.0, %v4416
  %v4418 = vpop.f32.mrf.mxu0
  %4419 = vmatprep.mubr.f32.mxu0 0.0
  %4420 = vmatmul.mubr.f32.gmra.mxu0 %v4331
  %v4421 = vpop.f32.mrf.mxu0
  %v4422 = vadd.f32 0.0, %v4421
  %v4423 = vpop.f32.mrf.mxu0
  %4424 = vmatprep.mubr.f32.mxu0 0.0
  %4425 = vmatmul.mubr.f32.gmra.mxu0 %v4332
  %v4426 = vpop.f32.mrf.mxu0
  %v4427 = vadd.f32 0.0, %v4426
  %v4428 = vpop.f32.mrf.mxu0
  %4429 = vmatprep.mubr.f32.mxu0 0.0
  %4430 = vmatmul.mubr.f32.gmra.mxu0 %v4333
  %v4431 = vpop.f32.mrf.mxu0
  %v4432 = vadd.f32 0.0, %v4431
  %v4433 = vpop.f32.mrf.mxu0
  %4434 = vmatprep.mubr.f32.mxu0 0.0
  %4435 = vmatmul.mubr.f32.gmra.mxu0 %v4334
  %v4436 = vpop.f32.mrf.mxu0
  %v4437 = vadd.f32 0.0, %v4436
  %v4438 = vpop.f32.mrf.mxu0
  %4439 = vmatprep.mubr.f32.mxu0 0.0
  %4440 = vmatmul.mubr.f32.gmra.mxu0 %v4335
  %v4441 = vpop.f32.mrf.mxu0
  %v4442 = vadd.f32 0.0, %v4441
  %v4443 = vpop.f32.mrf.mxu0
  %4444 = vmatprep.mubr.f32.mxu0 0.0
  %4445 = vmatmul.mubr.f32.gmra.mxu0 %v4336
  %v4446 = vpop.f32.mrf.mxu0
  %v4447 = vadd.f32 0.0, %v4446
  %v4448 = vpop.f32.mrf.mxu0
  %4449 = vmatprep.mubr.f32.mxu0 0.0
  %4450 = vmatmul.mubr.f32.gmra.mxu0 %v4337
  %v4451 = vpop.f32.mrf.mxu0
  %v4452 = vadd.f32 0.0, %v4451
  %v4453 = vpop.f32.mrf.mxu0
  %4454 = vmatprep.mubr.f32.mxu0 0.0
  %4455 = vmatmul.mubr.f32.gmra.mxu0 %v4338
  %v4456 = vpop.f32.mrf.mxu0
  %v4457 = vadd.f32 0.0, %v4456
  %v4458 = vpop.f32.mrf.mxu0
  %4459 = vmatprep.mubr.f32.mxu0 0.0
  %4460 = vmatmul.mubr.f32.gmra.mxu0 %v4339
  %v4461 = vpop.f32.mrf.mxu0
  %v4462 = vadd.f32 0.0, %v4461
  %v4463 = vpop.f32.mrf.mxu0
  %4464 = vmatprep.mubr.f32.mxu0 0.0
  %4465 = vmatmul.mubr.f32.gmra.mxu0 %v4340
  %v4466 = vpop.f32.mrf.mxu0
  %v4467 = vadd.f32 0.0, %v4466
  %v4468 = vpop.f32.mrf.mxu0
  %4469 = vmatprep.mubr.f32.mxu0 0.0
  %4470 = vmatmul.mubr.f32.gmra.mxu0 %v4341
  %v4471 = vpop.f32.mrf.mxu0
  %v4472 = vadd.f32 0.0, %v4471
  %v4473 = vpop.f32.mrf.mxu0
  %4474 = vmatprep.mubr.f32.mxu0 0.0
  %4475 = vmatmul.mubr.f32.gmra.mxu0 %v4342
  %v4476 = vpop.f32.mrf.mxu0
  %v4477 = vadd.f32 0.0, %v4476
  %v4478 = vpop.f32.mrf.mxu0
  %4479 = vmatprep.mubr.f32.mxu0 0.0
  %4480 = vmatmul.mubr.f32.gmra.mxu0 %v4343
  %v4481 = vpop.f32.mrf.mxu0
  %v4482 = vadd.f32 0.0, %v4481
  %v4483 = vpop.f32.mrf.mxu0
  %4484 = vmatprep.mubr.f32.mxu0 0.0
  %4485 = vmatmul.mubr.f32.gmra.mxu0 %v4344
  %v4486 = vpop.f32.mrf.mxu0
  %v4487 = vadd.f32 0.0, %v4486
  %v4488 = vpop.f32.mrf.mxu0
  %4489 = vdwg.mxu0
  %v4490 = vadd.f32 %v4103, %v4412
  %v4491 = vadd.f32 %v4108, %v4417
  %v4492 = vadd.f32 %v4113, %v4422
  %v4493 = vadd.f32 %v4118, %v4427
  %v4494 = vadd.f32 %v4123, %v4432
  %v4495 = vadd.f32 %v4128, %v4437
  %v4496 = vadd.f32 %v4133, %v4442
  %v4497 = vadd.f32 %v4138, %v4447
  %v4498 = vadd.f32 %v4143, %v4452
  %v4499 = vadd.f32 %v4148, %v4457
  %v4500 = vadd.f32 %v4153, %v4462
  %v4501 = vadd.f32 %v4158, %v4467
  %v4502 = vadd.f32 %v4163, %v4472
  %v4503 = vadd.f32 %v4168, %v4477
  %v4504 = vadd.f32 %v4173, %v4482
  %v4505 = vadd.f32 %v4178, %v4487
  %v4506 = vld [vmem:[%s12] sm:$0xff]
  %v4507 = vld [vmem:[%s12 + $0x8] sm:$0xff]
  %v4508 = vld [vmem:[%s12 + $0x10] sm:$0xff]
  %v4509 = vld [vmem:[%s12 + $0x18] sm:$0xff]
  %v4510 = vld [vmem:[%s12 + $0x20] sm:$0xff]
  %v4511 = vld [vmem:[%s12 + $0x28] sm:$0xff]
  %v4512 = vld [vmem:[%s12 + $0x30] sm:$0xff]
  %v4513 = vld [vmem:[%s12 + $0x38] sm:$0xff]
  %v4514 = vld [vmem:[%s12 + $0x40] sm:$0xff]
  %v4515 = vld [vmem:[%s12 + $0x48] sm:$0xff]
  %v4516 = vld [vmem:[%s12 + $0x50] sm:$0xff]
  %v4517 = vld [vmem:[%s12 + $0x58] sm:$0xff]
  %v4518 = vld [vmem:[%s12 + $0x60] sm:$0xff]
  %v4519 = vld [vmem:[%s12 + $0x68] sm:$0xff]
  %v4520 = vld [vmem:[%s12 + $0x70] sm:$0xff]
  %v4521 = vld [vmem:[%s12 + $0x78] sm:$0xff]
  %4523 = vset.pattern.permute.xlu0 0
  %4524 = vperm.xlu0 %4523, %v4506
  %v4525 = vpop.permute.xlu0 %4524
  %4528 = vset.pattern.permute.xlu0 0
  %4529 = vperm.xlu0 %4528, %v4507
  %v4530 = vpop.permute.xlu0 %4529
  %4533 = vset.pattern.permute.xlu0 0
  %4534 = vperm.xlu0 %4533, %v4508
  %v4535 = vpop.permute.xlu0 %4534
  %4538 = vset.pattern.permute.xlu0 0
  %4539 = vperm.xlu0 %4538, %v4509
  %v4540 = vpop.permute.xlu0 %4539
  %4543 = vset.pattern.permute.xlu0 0
  %4544 = vperm.xlu0 %4543, %v4510
  %v4545 = vpop.permute.xlu0 %4544
  %4548 = vset.pattern.permute.xlu0 0
  %4549 = vperm.xlu0 %4548, %v4511
  %v4550 = vpop.permute.xlu0 %4549
  %4553 = vset.pattern.permute.xlu0 0
  %4554 = vperm.xlu0 %4553, %v4512
  %v4555 = vpop.permute.xlu0 %4554
  %4558 = vset.pattern.permute.xlu0 0
  %4559 = vperm.xlu0 %4558, %v4513
  %v4560 = vpop.permute.xlu0 %4559
  %4563 = vset.pattern.permute.xlu0 0
  %4564 = vperm.xlu0 %4563, %v4514
  %v4565 = vpop.permute.xlu0 %4564
  %4568 = vset.pattern.permute.xlu0 0
  %4569 = vperm.xlu0 %4568, %v4515
  %v4570 = vpop.permute.xlu0 %4569
  %4573 = vset.pattern.permute.xlu0 0
  %4574 = vperm.xlu0 %4573, %v4516
  %v4575 = vpop.permute.xlu0 %4574
  %4578 = vset.pattern.permute.xlu0 0
  %4579 = vperm.xlu0 %4578, %v4517
  %v4580 = vpop.permute.xlu0 %4579
  %4583 = vset.pattern.permute.xlu0 0
  %4584 = vperm.xlu0 %4583, %v4518
  %v4585 = vpop.permute.xlu0 %4584
  %4588 = vset.pattern.permute.xlu0 0
  %4589 = vperm.xlu0 %4588, %v4519
  %v4590 = vpop.permute.xlu0 %4589
  %4593 = vset.pattern.permute.xlu0 0
  %4594 = vperm.xlu0 %4593, %v4520
  %v4595 = vpop.permute.xlu0 %4594
  %4598 = vset.pattern.permute.xlu0 0
  %4599 = vperm.xlu0 %4598, %v4521
  %v4600 = vpop.permute.xlu0 %4599
  %v4602 = vadd.f32 %v4490, %v4525
  %v4603 = vadd.f32 %v4491, %v4530
  %v4604 = vadd.f32 %v4492, %v4535
  %v4605 = vadd.f32 %v4493, %v4540
  %v4606 = vadd.f32 %v4494, %v4545
  %v4607 = vadd.f32 %v4495, %v4550
  %v4608 = vadd.f32 %v4496, %v4555
  %v4609 = vadd.f32 %v4497, %v4560
  %v4610 = vadd.f32 %v4498, %v4565
  %v4611 = vadd.f32 %v4499, %v4570
  %v4612 = vadd.f32 %v4500, %v4575
  %v4613 = vadd.f32 %v4501, %v4580
  %v4614 = vadd.f32 %v4502, %v4585
  %v4615 = vadd.f32 %v4503, %v4590
  %v4616 = vadd.f32 %v4504, %v4595
  %v4617 = vadd.f32 %v4505, %v4600
  %v4618 = vmax.f32 %v4602, 0.0
  %v4619 = vmax.f32 %v4603, 0.0
  %v4620 = vmax.f32 %v4604, 0.0
  %v4621 = vmax.f32 %v4605, 0.0
  %v4622 = vmax.f32 %v4606, 0.0
  %v4623 = vmax.f32 %v4607, 0.0
  %v4624 = vmax.f32 %v4608, 0.0
  %v4625 = vmax.f32 %v4609, 0.0
  %v4626 = vmax.f32 %v4610, 0.0
  %v4627 = vmax.f32 %v4611, 0.0
  %v4628 = vmax.f32 %v4612, 0.0
  %v4629 = vmax.f32 %v4613, 0.0
  %v4630 = vmax.f32 %v4614, 0.0
  %v4631 = vmax.f32 %v4615, 0.0
  %v4632 = vmax.f32 %v4616, 0.0
  %v4633 = vmax.f32 %v4617, 0.0
  %vm4634 = vcmask 31744
  %4635 = vst.msk [vmem:[%s13] sm:$0xff] %vm4634, %v4618
  %4636 = vst.msk [vmem:[%s13 + $0x8] sm:$0xff] %vm4634, %v4619
  %4637 = vst.msk [vmem:[%s13 + $0x10] sm:$0xff] %vm4634, %v4620
  %4638 = vst.msk [vmem:[%s13 + $0x18] sm:$0xff] %vm4634, %v4621
  %4639 = vst.msk [vmem:[%s13 + $0x20] sm:$0xff] %vm4634, %v4622
  %4640 = vst.msk [vmem:[%s13 + $0x28] sm:$0xff] %vm4634, %v4623
  %4641 = vst.msk [vmem:[%s13 + $0x30] sm:$0xff] %vm4634, %v4624
  %4642 = vst.msk [vmem:[%s13 + $0x38] sm:$0xff] %vm4634, %v4625
  %4643 = vst.msk [vmem:[%s13 + $0x40] sm:$0xff] %vm4634, %v4626
  %4644 = vst.msk [vmem:[%s13 + $0x48] sm:$0xff] %vm4634, %v4627
  %4645 = vst.msk [vmem:[%s13 + $0x50] sm:$0xff] %vm4634, %v4628
  %4646 = vst.msk [vmem:[%s13 + $0x58] sm:$0xff] %vm4634, %v4629
  %4647 = vst.msk [vmem:[%s13 + $0x60] sm:$0xff] %vm4634, %v4630
  %4648 = vst.msk [vmem:[%s13 + $0x68] sm:$0xff] %vm4634, %v4631
  %4649 = vst.msk [vmem:[%s13 + $0x70] sm:$0xff] %vm4634, %v4632
  %4650 = vst.msk [vmem:[%s13 + $0x78] sm:$0xff] %vm4634, %v4633
  // Predicated region
  $region54: #{encoder_forward.1} parent=0 // pred_check
    _
  $region55: #{encoder_forward.1} parent=0 // pred_check_branch
    %4652 = sbr.rel (0) target = $region57
  $region56: #{encoder_forward.1} parent=0 // pred_region
    _
  $region57: #{encoder_forward.1} parent=0 // pred_fallthru
    _
  // Predicated region
  $region58: #{encoder_forward.1} parent=0 // pred_check
    _
  $region59: #{encoder_forward.1} parent=0 // pred_check_branch
    %4654 = sbr.rel (0) target = $region61
  $region60: #{encoder_forward.1} parent=0 // pred_region
    _
  $region61: #{encoder_forward.1} parent=0 // pred_fallthru
    _

</llo_original>
